<compile_context>
chip_gen: v6e
topology: v6e:2x2x1
jax: 0.10.0
libtpu: 0.0.40
codegen_flags: <defaults>
</compile_context>

<pallas_src>
import functools
import math

import jax
import jax.numpy as jnp
from jax import lax
from jax.experimental import pallas as pl
from jax.experimental.pallas import tpu as pltpu

_MXU_DTYPE = jnp.bfloat16          # MXU operand dtype; accumulation stays f32
_VMEM_LIMIT = 48 * 1024 * 1024     # safe on v7x (64 MiB physical); raiseable on v5e/v6e


def _pick_tile(dim, target, base):
    """Largest tile <= target that divides `dim` and is a multiple of `base`;
    falls back to the full dim (block == array extent is always legal).
    NOTE: for odd production shapes this fallback can create one large block —
    pad such dims to a multiple of `base` upstream."""
    if dim <= target or dim % base:
        return dim
    t = (target // base) * base
    while t >= base:
        if dim % t == 0:
            return t
        t -= base
    return dim


# --------------------------- tiled matmul (projections) ---------------------------

def _matmul_single_kernel(x_ref, w_ref, o_ref):
    # K fits in one step: no accumulator scratch, no zero-init, no final copy.
    o_ref[...] = jnp.dot(x_ref[...].astype(_MXU_DTYPE), w_ref[...].astype(_MXU_DTYPE),
                         preferred_element_type=jnp.float32).astype(o_ref.dtype)


def _matmul_acc_kernel(x_ref, w_ref, o_ref, acc_ref):
    @pl.when(pl.program_id(2) == 0)
    def _():
        acc_ref[...] = jnp.zeros_like(acc_ref)

    acc_ref[...] += jnp.dot(x_ref[...].astype(_MXU_DTYPE), w_ref[...].astype(_MXU_DTYPE),
                            preferred_element_type=jnp.float32)

    @pl.when(pl.program_id(2) == pl.num_programs(2) - 1)
    def _():
        o_ref[...] = acc_ref[...].astype(o_ref.dtype)


def matmul(x, w, *, tm=512, tn=512, tk=1024, out_dtype=None):
    """x: (M, K) @ w: (K, N) -> (M, N).  bf16 MXU operands, f32 accumulation."""
    M, K = x.shape
    N = w.shape[1]
    out_dtype = x.dtype if out_dtype is None else out_dtype
    tm = _pick_tile(M, tm, 8)
    tn = _pick_tile(N, tn, 128)
    tk = _pick_tile(K, tk, 128)
    if tk == K:   # common case for the D x {D,2D,3D} projections
        return pl.pallas_call(
            _matmul_single_kernel,
            grid=(M // tm, N // tn),
            out_shape=jax.ShapeDtypeStruct((M, N), out_dtype),
            in_specs=[pl.BlockSpec((tm, K), lambda i, j: (i, 0)),
                      pl.BlockSpec((K, tn), lambda i, j: (0, j))],
            out_specs=pl.BlockSpec((tm, tn), lambda i, j: (i, j)),
            compiler_params=pltpu.CompilerParams(
                dimension_semantics=("parallel", "parallel"),
                vmem_limit_bytes=_VMEM_LIMIT),
        )(x, w)
    return pl.pallas_call(
        _matmul_acc_kernel,
        grid=(M // tm, N // tn, K // tk),
        out_shape=jax.ShapeDtypeStruct((M, N), out_dtype),
        in_specs=[pl.BlockSpec((tm, tk), lambda i, j, k: (i, k)),
                  pl.BlockSpec((tk, tn), lambda i, j, k: (k, j))],
        out_specs=pl.BlockSpec((tm, tn), lambda i, j, k: (i, j)),
        scratch_shapes=[pltpu.VMEM((tm, tn), jnp.float32)],
        compiler_params=pltpu.CompilerParams(
            dimension_semantics=("parallel", "parallel", "arbitrary"),
            vmem_limit_bytes=_VMEM_LIMIT),
    )(x, w)


# --------------------------------- LayerNorm helper --------------------------------

def _ln_f32(y, g, b, eps):
    mu = jnp.mean(y, axis=-1, keepdims=True)
    var = jnp.mean((y - mu) ** 2, axis=-1, keepdims=True)
    return (y - mu) * lax.rsqrt(var + eps) * g + b


# ------------------- fused embedding add (token+pos) + LayerNorm -------------------

def _embed_ln_kernel(tok_ref, pos_ref, g_ref, b_ref, o_ref, *, eps):
    y = tok_ref[0].astype(jnp.float32) + pos_ref[...].astype(jnp.float32)
    y = _ln_f32(y, g_ref[...].astype(jnp.float32), b_ref[...].astype(jnp.float32), eps)
    o_ref[0] = y.astype(o_ref.dtype)


def embed_ln(tok, pos, gamma, beta, eps=1e-6):
    """LayerNorm(tok + pos), bf16 output.  tok: (B,T,D) f32, pos: (T,D) f32."""
    B, T, D = tok.shape
    tt = _pick_tile(T, 256, 8)
    return pl.pallas_call(
        functools.partial(_embed_ln_kernel, eps=eps),
        grid=(B, T // tt),
        out_shape=jax.ShapeDtypeStruct((B, T, D), _MXU_DTYPE),
        in_specs=[pl.BlockSpec((1, tt, D), lambda b, i: (b, i, 0)),
                  pl.BlockSpec((tt, D), lambda b, i: (i, 0)),
                  pl.BlockSpec((1, D), lambda b, i: (0, 0)),
                  pl.BlockSpec((1, D), lambda b, i: (0, 0))],
        out_specs=pl.BlockSpec((1, tt, D), lambda b, i: (b, i, 0)),
        compiler_params=pltpu.CompilerParams(
            dimension_semantics=("parallel", "parallel"),
            vmem_limit_bytes=_VMEM_LIMIT),
    )(tok, pos, gamma, beta)


# --------------------- fused out-projection + residual + LayerNorm ----------------

def _proj_add_ln_kernel(x_ref, w_ref, r_ref, g_ref, b_ref, o_ref, *, eps):
    y = jnp.dot(x_ref[...].astype(_MXU_DTYPE), w_ref[...].astype(_MXU_DTYPE),
                preferred_element_type=jnp.float32)
    y = y + r_ref[...].astype(jnp.float32)
    y = _ln_f32(y, g_ref[...].astype(jnp.float32), b_ref[...].astype(jnp.float32), eps)
    o_ref[...] = y.astype(o_ref.dtype)


def proj_add_ln(x, w, res, gamma, beta, eps=1e-6):
    """LayerNorm(x @ w + res).  x: (M, K), w: (K, N) bf16, res: (M, N)."""
    M, K = x.shape
    N = w.shape[1]
    tm = _pick_tile(M, 256, 8)
    return pl.pallas_call(
        functools.partial(_proj_add_ln_kernel, eps=eps),
        grid=(M // tm,),
        out_shape=jax.ShapeDtypeStruct((M, N), x.dtype),
        in_specs=[pl.BlockSpec((tm, K), lambda i: (i, 0)),
                  pl.BlockSpec((K, N), lambda i: (0, 0)),      # constant block idx -> DMA'd once
                  pl.BlockSpec((tm, N), lambda i: (i, 0)),
                  pl.BlockSpec((1, N), lambda i: (0, 0)),
                  pl.BlockSpec((1, N), lambda i: (0, 0))],
        out_specs=pl.BlockSpec((tm, N), lambda i: (i, 0)),
        compiler_params=pltpu.CompilerParams(
            dimension_semantics=("parallel",),
            vmem_limit_bytes=_VMEM_LIMIT),
    )(x, w, res, gamma, beta)


# ------------------------------ fused position-wise FFN ---------------------------
# grid = (row tiles, d_inner tiles): relu(x@w1+b1) tiles accumulate into a (tm, D) f32
# scratch; finalize adds b2 + residual and applies LayerNorm.  Bounds VMEM at large
# d_inner (v7x) while keeping the (tm, th) intermediate on-chip.

def _ffn_kernel(x_ref, w1_ref, b1_ref, w2_ref, b2_ref, g_ref, b_ref, o_ref, acc_ref, *, eps):
    j = pl.program_id(1)

    @pl.when(j == 0)
    def _():
        acc_ref[...] = jnp.zeros_like(acc_ref)

    h = jnp.dot(x_ref[...].astype(_MXU_DTYPE), w1_ref[...].astype(_MXU_DTYPE),
                preferred_element_type=jnp.float32)
    h = jnp.maximum(h + b1_ref[...].astype(jnp.float32), 0.0)
    acc_ref[...] += jnp.dot(h.astype(_MXU_DTYPE), w2_ref[...].astype(_MXU_DTYPE),
                            preferred_element_type=jnp.float32)

    @pl.when(j == pl.num_programs(1) - 1)
    def _():
        y = acc_ref[...] + b2_ref[...].astype(jnp.float32) + x_ref[...].astype(jnp.float32)
        y = _ln_f32(y, g_ref[...].astype(jnp.float32), b_ref[...].astype(jnp.float32), eps)
        o_ref[...] = y.astype(o_ref.dtype)


def ffn_block(p, x, eps=1e-6):
    B, T, D = x.shape
    H = p["w1"].shape[1]
    M = B * T
    x2d = x.reshape(M, D)
    tm = _pick_tile(M, 256, 8)
    th = _pick_tile(H, 1024, 128)
    out = pl.pallas_call(
        functools.partial(_ffn_kernel, eps=eps),
        grid=(M // tm, H // th),
        out_shape=jax.ShapeDtypeStruct((M, D), x.dtype),
        in_specs=[pl.BlockSpec((tm, D), lambda i, j: (i, 0)),
                  pl.BlockSpec((D, th), lambda i, j: (0, j)),
                  pl.BlockSpec((1, th), lambda i, j: (0, j)),
                  pl.BlockSpec((th, D), lambda i, j: (j, 0)),
                  pl.BlockSpec((1, D), lambda i, j: (0, 0)),
                  pl.BlockSpec((1, D), lambda i, j: (0, 0)),
                  pl.BlockSpec((1, D), lambda i, j: (0, 0))],
        out_specs=pl.BlockSpec((tm, D), lambda i, j: (i, 0)),
        scratch_shapes=[pltpu.VMEM((tm, D), jnp.float32)],
        compiler_params=pltpu.CompilerParams(
            dimension_semantics=("parallel", "arbitrary"),
            vmem_limit_bytes=_VMEM_LIMIT),
    )(x2d, p["w1"], p["b1"], p["w2"], p["b2"], p["ln_g"], p["ln_b"])
    return out.reshape(B, T, D)


# ------------------------------------ attention ------------------------------------
# grid = (B, T/tq).  The packed K|V block for the batch is VMEM-resident (constant block
# index across q tiles); the mask is generated in-kernel; heads are concatenated into one
# lane-dense (tq, D) store.  1/sqrt(d_k) is folded into wq at param-prep time.

def _attend_heads(read_q, read_k, read_v, keep, n_head, d_k, out_dtype):
    outs = []
    for h in range(n_head):
        q = read_q(h).astype(_MXU_DTYPE)                       # (tq, dk)
        k = read_k(h).astype(_MXU_DTYPE)                       # (Tk, dk)
        v = read_v(h).astype(_MXU_DTYPE)                       # (Tk, dk)
        s = lax.dot_general(q, k, (((1,), (1,)), ((), ())),
                            preferred_element_type=jnp.float32)   # (tq, Tk) f32
        s = jnp.where(keep, s, -1e9)                           # mask hoisted out of the loop
        s = s - jnp.max(s, axis=-1, keepdims=True)
        p = jnp.exp(s)
        p = p * pl.reciprocal(jnp.sum(p, axis=-1, keepdims=True), approx=True)
        outs.append(jnp.dot(p.astype(_MXU_DTYPE), v, preferred_element_type=jnp.float32))
    return jnp.concatenate(outs, axis=-1).astype(out_dtype)      # single (tq, D) value


def _self_attn_kernel(q_ref, kv_ref, pad_ref, o_ref, *, n_head, d_k):
    D = n_head * d_k
    tq = q_ref.shape[1]
    Tk = kv_ref.shape[1]
    qi = pl.program_id(1)
    pad = pad_ref[0]                                            # (1, Tk) int32
    row = lax.broadcasted_iota(jnp.int32, (tq, Tk), 0) + qi * tq
    col = lax.broadcasted_iota(jnp.int32, (tq, Tk), 1)
    keep = jnp.logical_and(pad != 0, col <= row)                # causal & key-pad, in-kernel
    o_ref[0] = _attend_heads(
        lambda h: q_ref[0, :, h * d_k:(h + 1) * d_k],
        lambda h: kv_ref[0, :, D + h * d_k:D + (h + 1) * d_k],
        lambda h: kv_ref[0, :, 2 * D + h * d_k:2 * D + (h + 1) * d_k],
        keep, n_head, d_k, o_ref.dtype)


def _cross_attn_kernel(q_ref, kv_ref, pad_ref, o_ref, *, n_head, d_k):
    D = n_head * d_k
    pad = pad_ref[0]                                            # (1, Sk) int32, broadcasts
    keep = pad != 0
    o_ref[0] = _attend_heads(
        lambda h: q_ref[0, :, h * d_k:(h + 1) * d_k],
        lambda h: kv_ref[0, :, h * d_k:(h + 1) * d_k],
        lambda h: kv_ref[0, :, D + h * d_k:D + (h + 1) * d_k],
        keep, n_head, d_k, o_ref.dtype)


def self_attention(qkv, key_pad, n_head):
    """qkv: (B, T, 3D) packed Q|K|V, key_pad: (B, 1, T) int32 -> (B, T, D)."""
    B, T, D3 = qkv.shape
    D = D3 // 3
    tq = _pick_tile(T, 256, 8)
    return pl.pallas_call(
        functools.partial(_self_attn_kernel, n_head=n_head, d_k=D // n_head),
        grid=(B, T // tq),
        out_shape=jax.ShapeDtypeStruct((B, T, D), qkv.dtype),
        in_specs=[pl.BlockSpec((1, tq, D3), lambda b, i: (b, i, 0)),
                  pl.BlockSpec((1, T, D3), lambda b, i: (b, 0, 0)),
                  pl.BlockSpec((1, 1, T), lambda b, i: (b, 0, 0))],
        out_specs=pl.BlockSpec((1, tq, D), lambda b, i: (b, i, 0)),
        compiler_params=pltpu.CompilerParams(
            dimension_semantics=("parallel", "parallel"),
            vmem_limit_bytes=_VMEM_LIMIT),
    )(qkv, qkv, key_pad)


def cross_attention(q, kv, key_pad, n_head):
    """q: (B, T, D), kv: (B, S, 2D) packed K|V, key_pad: (B, 1, S) int32 -> (B, T, D)."""
    B, T, D = q.shape
    S = kv.shape[1]
    tq = _pick_tile(T, 256, 8)
    return pl.pallas_call(
        functools.partial(_cross_attn_kernel, n_head=n_head, d_k=D // n_head),
        grid=(B, T // tq),
        out_shape=jax.ShapeDtypeStruct((B, T, D), q.dtype),
        in_specs=[pl.BlockSpec((1, tq, D), lambda b, i: (b, i, 0)),
                  pl.BlockSpec((1, S, 2 * D), lambda b, i: (b, 0, 0)),
                  pl.BlockSpec((1, 1, S), lambda b, i: (b, 0, 0))],
        out_specs=pl.BlockSpec((1, tq, D), lambda b, i: (b, i, 0)),
        compiler_params=pltpu.CompilerParams(
            dimension_semantics=("parallel", "parallel"),
            vmem_limit_bytes=_VMEM_LIMIT),
    )(q, kv, key_pad)


# --------------------------------- model pieces -----------------------------------

def self_mha_block(p, x, key_pad, n_head):
    B, T, D = x.shape
    x2d = x.reshape(B * T, D)
    qkv = matmul(x2d, p["w_qkv"]).reshape(B, T, 3 * D)          # one fused bf16 projection
    attn = self_attention(qkv, key_pad, n_head)                 # (B, T, D) bf16
    out = proj_add_ln(attn.reshape(B * T, D), p["wo"], x2d, p["ln_g"], p["ln_b"])
    return out.reshape(B, T, D)


def cross_mha_block(p, x, enc, key_pad, n_head):
    B, T, D = x.shape
    S = enc.shape[1]
    x2d = x.reshape(B * T, D)
    q = matmul(x2d, p["wq"]).reshape(B, T, D)                   # wq pre-scaled by 1/sqrt(dk)
    kv = matmul(enc.reshape(B * S, D), p["w_kv"]).reshape(B, S, 2 * D)
    attn = cross_attention(q, kv, key_pad, n_head)
    out = proj_add_ln(attn.reshape(B * T, D), p["wo"], x2d, p["ln_g"], p["ln_b"])
    return out.reshape(B, T, D)


def decoder_forward(params, trg_seq, trg_key_pad, enc_output, src_mask, n_head):
    """trg_key_pad: (B,1,T) key-padding mask for the target; the causal part of the
    canonical trg_mask (pad & subsequent) is generated inside the self-attn kernel."""
    B, T = trg_seq.shape

    # TODO(synk): embedding gather stays in XLA (no clean Pallas gather); dropout = identity.
    tok = jnp.take(params["token_emb"], trg_seq, axis=0)                 # (B, T, D) f32
    x = embed_ln(tok, params["pos_table"][:T], params["ln_g"], params["ln_b"])  # bf16

    trg_pad = trg_key_pad.astype(jnp.int32)     # (B, 1, T)
    src_pad = src_mask.astype(jnp.int32)        # (B, 1, S) — never broadcast to (B, T, S)
    enc = enc_output.astype(_MXU_DTYPE)

    for lp in params["layers"]:
        x = self_mha_block(lp["slf"], x, trg_pad, n_head)
        x = cross_mha_block(lp["enc"], x, enc, src_pad, n_head)
        x = ffn_block(lp["ffn"], x)
    return x.astype(jnp.float32)


# ------------------------------------ params --------------------------------------

def sinusoid_table(max_len, d):
    pos = jnp.arange(max_len, dtype=jnp.float32)[:, None]
    i = jnp.arange(d)[None, :]
    angle = pos / jnp.power(10000.0, (2.0 * (i // 2)) / d)
    return jnp.where(i % 2 == 0, jnp.sin(angle), jnp.cos(angle)).astype(jnp.float32)


def init_params(key, voc_size, max_len, d_model, n_layers, n_head, d_inner):
    """Raw f32 parameters mirroring the PyTorch module."""
    def dense(k, din, dout, scale=0.05):
        return scale * jax.random.normal(k, (din, dout), jnp.float32)

    keys = jax.random.split(key, 1 + n_layers)
    tok = 0.05 * jax.random.normal(keys[0], (voc_size, d_model), jnp.float32)
    tok = tok.at[0].set(0.0)                                     # padding_idx=0

    layers = []
    for li in range(n_layers):
        ks = jax.random.split(keys[1 + li], 12)
        mha_p = lambda a, b_, c, d_: dict(
            wq=dense(a, d_model, d_model), wk=dense(b_, d_model, d_model),
            wv=dense(c, d_model, d_model), wo=dense(d_, d_model, d_model),
            ln_g=jnp.ones((d_model,), jnp.float32), ln_b=jnp.zeros((d_model,), jnp.float32))
        layers.append(dict(
            slf=mha_p(ks[0], ks[1], ks[2], ks[3]),
            enc=mha_p(ks[4], ks[5], ks[6], ks[7]),
            ffn=dict(
                w1=dense(ks[8], d_model, d_inner), b1=jnp.zeros((d_inner,), jnp.float32),
                w2=dense(ks[9], d_inner, d_model), b2=jnp.zeros((d_model,), jnp.float32),
                ln_g=jnp.ones((d_model,), jnp.float32), ln_b=jnp.zeros((d_model,), jnp.float32)),
        ))
    return dict(
        token_emb=tok,
        pos_table=sinusoid_table(max_len, d_model),
        ln_g=jnp.ones((d_model,), jnp.float32),
        ln_b=jnp.zeros((d_model,), jnp.float32),
        layers=layers,
    )


def prepare_params(raw, n_head):
    """One-time (outside jit) packing: bf16 weights, pre-scaled wq, fused QKV / KV mats,
    (1, D)-shaped LN params and biases."""
    D = raw["token_emb"].shape[1]
    scale = 1.0 / math.sqrt(D // n_head)

    def prep_mha(p, fuse_qkv):
        if fuse_qkv:
            d = dict(w_qkv=jnp.concatenate([p["wq"] * scale, p["wk"], p["wv"]],
                                           axis=1).astype(_MXU_DTYPE))
        else:
            d = dict(wq=(p["wq"] * scale).astype(_MXU_DTYPE),
                     w_kv=jnp.concatenate([p["wk"], p["wv"]], axis=1).astype(_MXU_DTYPE))
        d.update(wo=p["wo"].astype(_MXU_DTYPE),
                 ln_g=p["ln_g"].reshape(1, D), ln_b=p["ln_b"].reshape(1, D))
        return d

    layers = []
    for lp in raw["layers"]:
        H = lp["ffn"]["w1"].shape[1]
        layers.append(dict(
            slf=prep_mha(lp["slf"], True),
            enc=prep_mha(lp["enc"], False),
            ffn=dict(w1=lp["ffn"]["w1"].astype(_MXU_DTYPE),
                     b1=lp["ffn"]["b1"].reshape(1, H),
                     w2=lp["ffn"]["w2"].astype(_MXU_DTYPE),
                     b2=lp["ffn"]["b2"].reshape(1, D),
                     ln_g=lp["ffn"]["ln_g"].reshape(1, D),
                     ln_b=lp["ffn"]["ln_b"].reshape(1, D))))
    return dict(token_emb=raw["token_emb"],
                pos_table=raw["pos_table"],
                ln_g=raw["ln_g"].reshape(1, D),
                ln_b=raw["ln_b"].reshape(1, D),
                layers=layers)


# --------------------------------------- main ---------------------------------------

if __name__ == "__main__":
    VOC, MAX_LEN = 50, 16
    D_MODEL, N_LAYERS, N_HEAD, D_INNER = 32, 2, 4, 64
    B, T, S = 2, 8, 8
    # NOTE: these toy shapes are far below the (8,128) vreg tile / MXU size; measured
    # numbers here reflect overhead, not kernel quality.  The tiling logic scales to
    # 128/256-aligned production shapes (and bounds VMEM for v7x).

    key = jax.random.PRNGKey(0)
    k_par, k_seq, k_enc = jax.random.split(key, 3)

    raw = init_params(k_par, VOC, MAX_LEN, D_MODEL, N_LAYERS, N_HEAD, D_INNER)
    params = prepare_params(raw, N_HEAD)         # bf16 pre-packed weights, done once

    trg_seq = jax.random.randint(k_seq, (B, T), 1, VOC, dtype=jnp.int32)
    trg_seq = trg_seq.at[:, -2:].set(0)                          # some padding tokens

    trg_key_pad = (trg_seq != 0)[:, None, :]                     # (B, 1, T); causal in-kernel
    src_mask = jnp.ones((B, 1, S), jnp.bool_).at[:, :, -1].set(False)  # (B, 1, S)
    enc_output = 0.1 * jax.random.normal(k_enc, (B, S, D_MODEL), jnp.float32)

    fwd = jax.jit(decoder_forward, static_argnums=(5,))
    out = fwd(params, trg_seq, trg_key_pad, enc_output, src_mask, N_HEAD)
    out = jax.block_until_ready(out)
    assert out.shape == (B, T, D_MODEL) and bool(jnp.all(jnp.isfinite(out)))
    print("KERNEL_OK")
</pallas_src>

<mosaic_0001>
module attributes {stable_mosaic.version = 11 : i64} {
  func.func @_self_attn_kernel(%arg0: i32, %arg1: i32, %arg2: memref<1x8x96xbf16, #tpu.memory_space<vmem>>, %arg3: memref<1x8x96xbf16, #tpu.memory_space<vmem>>, %arg4: memref<1x1x8xi32, #tpu.memory_space<vmem>>, %arg5: memref<1x8x32xbf16, #tpu.memory_space<vmem>>) attributes {dimension_semantics = [#tpu.dimension_semantics<parallel>, #tpu.dimension_semantics<parallel>], iteration_bounds = array<i64: 2, 1>, scalar_prefetch = 0 : i64, scratch_operands = 0 : i64, tpu.core_type = #tpu.core_type<tc>, window_params = [{transform_indices = @transform_0, window_bounds = array<i64: 1, 8, 96>}, {transform_indices = @transform_1, window_bounds = array<i64: 1, 8, 96>}, {transform_indices = @transform_2, window_bounds = array<i64: 1, 1, 8>}, {transform_indices = @transform_3, window_bounds = array<i64: 1, 8, 32>}]} {
    %c0 = arith.constant 0 : index
    %c0_0 = arith.constant 0 : index
    %c0_1 = arith.constant 0 : index
    %0 = vector.load %arg4[%c0, %c0_0, %c0_1] : memref<1x1x8xi32, #tpu.memory_space<vmem>>, vector<1x1x8xi32>
    %1 = vector.shape_cast %0 : vector<1x1x8xi32> to vector<1x8xi32>
    %2 = tpu.iota {dimensions = array<i32: 0>} : vector<8x8xi32>
    %c8_i32 = arith.constant 8 : i32
    %3 = arith.muli %arg1, %c8_i32 : i32
    %4 = vector.broadcast %3 : i32 to vector<8x8xi32>
    %5 = arith.addi %2, %4 : vector<8x8xi32>
    %6 = tpu.iota {dimensions = array<i32: 1>} : vector<8x8xi32>
    %c0_i32 = arith.constant 0 : i32
    %7 = vector.broadcast %c0_i32 : i32 to vector<1x8xi32>
    %8 = arith.cmpi ne, %1, %7 : vector<1x8xi32>
    %9 = arith.cmpi sle, %6, %5 : vector<8x8xi32>
    %10 = vector.broadcast %8 : vector<1x8xi1> to vector<8x8xi1>
    %11 = arith.andi %10, %9 : vector<8x8xi1>
    %c0_2 = arith.constant 0 : index
    %c0_3 = arith.constant 0 : index
    %c0_4 = arith.constant 0 : index
    %12 = vector.load %arg2[%c0_2, %c0_3, %c0_4] : memref<1x8x96xbf16, #tpu.memory_space<vmem>>, vector<1x8x8xbf16>
    %13 = vector.shape_cast %12 : vector<1x8x8xbf16> to vector<8x8xbf16>
    %c0_5 = arith.constant 0 : index
    %c0_6 = arith.constant 0 : index
    %c32 = arith.constant 32 : index
    %14 = vector.load %arg3[%c0_5, %c0_6, %c32] : memref<1x8x96xbf16, #tpu.memory_space<vmem>>, vector<1x8x8xbf16>
    %15 = vector.shape_cast %14 : vector<1x8x8xbf16> to vector<8x8xbf16>
    %c0_7 = arith.constant 0 : index
    %c0_8 = arith.constant 0 : index
    %c64 = arith.constant 64 : index
    %16 = vector.load %arg3[%c0_7, %c0_8, %c64] : memref<1x8x96xbf16, #tpu.memory_space<vmem>>, vector<1x8x8xbf16>
    %17 = vector.shape_cast %16 : vector<1x8x8xbf16> to vector<8x8xbf16>
    %cst = arith.constant dense<0.000000e+00> : vector<8x8xf32>
    %18 = tpu.matmul %13, %15, %cst {dimension_numbers = #tpu.dot_dimension_numbers<[1], [1], [0], [0], [0, 0, 1, 0], [], []>} : vector<8x8xbf16>, vector<8x8xbf16>, vector<8x8xf32> -> vector<8x8xf32>
    %cst_9 = arith.constant -1.000000e+09 : f32
    %19 = vector.broadcast %cst_9 : f32 to vector<8x8xf32>
    %20 = arith.select %11, %18, %19 : vector<8x8xi1>, vector<8x8xf32>
    %cst_10 = arith.constant dense<0xFF800000> : vector<8xf32>
    %21 = vector.multi_reduction <maximumf>, %20, %cst_10 [1] : vector<8x8xf32> to vector<8xf32>
    %22 = vector.shape_cast %21 : vector<8xf32> to vector<8x1xf32>
    %23 = vector.broadcast %22 : vector<8x1xf32> to vector<8x8xf32>
    %24 = arith.subf %20, %23 : vector<8x8xf32>
    %25 = math.exp %24 : vector<8x8xf32>
    %cst_11 = arith.constant dense<0.000000e+00> : vector<8xf32>
    %26 = vector.multi_reduction <add>, %25, %cst_11 [1] : vector<8x8xf32> to vector<8xf32>
    %27 = vector.shape_cast %26 : vector<8xf32> to vector<8x1xf32>
    %28 = tpu.reciprocal %27 {approx = true} : vector<8x1xf32> -> vector<8x1xf32>
    %29 = vector.broadcast %28 : vector<8x1xf32> to vector<8x8xf32>
    %30 = arith.mulf %25, %29 : vector<8x8xf32>
    %31 = arith.truncf %30 : vector<8x8xf32> to vector<8x8xbf16>
    %cst_12 = arith.constant dense<0.000000e+00> : vector<8x8xf32>
    %32 = tpu.matmul %31, %17, %cst_12 {dimension_numbers = #tpu.dot_dimension_numbers<[1], [0], [0], [1], [0, 0, 1, 1], [], []>} : vector<8x8xbf16>, vector<8x8xbf16>, vector<8x8xf32> -> vector<8x8xf32>
    %c0_13 = arith.constant 0 : index
    %c0_14 = arith.constant 0 : index
    %c8 = arith.constant 8 : index
    %33 = vector.load %arg2[%c0_13, %c0_14, %c8] : memref<1x8x96xbf16, #tpu.memory_space<vmem>>, vector<1x8x8xbf16>
    %34 = vector.shape_cast %33 : vector<1x8x8xbf16> to vector<8x8xbf16>
    %c0_15 = arith.constant 0 : index
    %c0_16 = arith.constant 0 : index
    %c40 = arith.constant 40 : index
    %35 = vector.load %arg3[%c0_15, %c0_16, %c40] : memref<1x8x96xbf16, #tpu.memory_space<vmem>>, vector<1x8x8xbf16>
    %36 = vector.shape_cast %35 : vector<1x8x8xbf16> to vector<8x8xbf16>
    %c0_17 = arith.constant 0 : index
    %c0_18 = arith.constant 0 : index
    %c72 = arith.constant 72 : index
    %37 = vector.load %arg3[%c0_17, %c0_18, %c72] : memref<1x8x96xbf16, #tpu.memory_space<vmem>>, vector<1x8x8xbf16>
    %38 = vector.shape_cast %37 : vector<1x8x8xbf16> to vector<8x8xbf16>
    %cst_19 = arith.constant dense<0.000000e+00> : vector<8x8xf32>
    %39 = tpu.matmul %34, %36, %cst_19 {dimension_numbers = #tpu.dot_dimension_numbers<[1], [1], [0], [0], [0, 0, 1, 0], [], []>} : vector<8x8xbf16>, vector<8x8xbf16>, vector<8x8xf32> -> vector<8x8xf32>
    %cst_20 = arith.constant -1.000000e+09 : f32
    %40 = vector.broadcast %cst_20 : f32 to vector<8x8xf32>
    %41 = arith.select %11, %39, %40 : vector<8x8xi1>, vector<8x8xf32>
    %cst_21 = arith.constant dense<0xFF800000> : vector<8xf32>
    %42 = vector.multi_reduction <maximumf>, %41, %cst_21 [1] : vector<8x8xf32> to vector<8xf32>
    %43 = vector.shape_cast %42 : vector<8xf32> to vector<8x1xf32>
    %44 = vector.broadcast %43 : vector<8x1xf32> to vector<8x8xf32>
    %45 = arith.subf %41, %44 : vector<8x8xf32>
    %46 = math.exp %45 : vector<8x8xf32>
    %cst_22 = arith.constant dense<0.000000e+00> : vector<8xf32>
    %47 = vector.multi_reduction <add>, %46, %cst_22 [1] : vector<8x8xf32> to vector<8xf32>
    %48 = vector.shape_cast %47 : vector<8xf32> to vector<8x1xf32>
    %49 = tpu.reciprocal %48 {approx = true} : vector<8x1xf32> -> vector<8x1xf32>
    %50 = vector.broadcast %49 : vector<8x1xf32> to vector<8x8xf32>
    %51 = arith.mulf %46, %50 : vector<8x8xf32>
    %52 = arith.truncf %51 : vector<8x8xf32> to vector<8x8xbf16>
    %cst_23 = arith.constant dense<0.000000e+00> : vector<8x8xf32>
    %53 = tpu.matmul %52, %38, %cst_23 {dimension_numbers = #tpu.dot_dimension_numbers<[1], [0], [0], [1], [0, 0, 1, 1], [], []>} : vector<8x8xbf16>, vector<8x8xbf16>, vector<8x8xf32> -> vector<8x8xf32>
    %c0_24 = arith.constant 0 : index
    %c0_25 = arith.constant 0 : index
    %c16 = arith.constant 16 : index
    %54 = vector.load %arg2[%c0_24, %c0_25, %c16] : memref<1x8x96xbf16, #tpu.memory_space<vmem>>, vector<1x8x8xbf16>
    %55 = vector.shape_cast %54 : vector<1x8x8xbf16> to vector<8x8xbf16>
    %c0_26 = arith.constant 0 : index
    %c0_27 = arith.constant 0 : index
    %c48 = arith.constant 48 : index
    %56 = vector.load %arg3[%c0_26, %c0_27, %c48] : memref<1x8x96xbf16, #tpu.memory_space<vmem>>, vector<1x8x8xbf16>
    %57 = vector.shape_cast %56 : vector<1x8x8xbf16> to vector<8x8xbf16>
    %c0_28 = arith.constant 0 : index
    %c0_29 = arith.constant 0 : index
    %c80 = arith.constant 80 : index
    %58 = vector.load %arg3[%c0_28, %c0_29, %c80] : memref<1x8x96xbf16, #tpu.memory_space<vmem>>, vector<1x8x8xbf16>
    %59 = vector.shape_cast %58 : vector<1x8x8xbf16> to vector<8x8xbf16>
    %cst_30 = arith.constant dense<0.000000e+00> : vector<8x8xf32>
    %60 = tpu.matmul %55, %57, %cst_30 {dimension_numbers = #tpu.dot_dimension_numbers<[1], [1], [0], [0], [0, 0, 1, 0], [], []>} : vector<8x8xbf16>, vector<8x8xbf16>, vector<8x8xf32> -> vector<8x8xf32>
    %cst_31 = arith.constant -1.000000e+09 : f32
    %61 = vector.broadcast %cst_31 : f32 to vector<8x8xf32>
    %62 = arith.select %11, %60, %61 : vector<8x8xi1>, vector<8x8xf32>
    %cst_32 = arith.constant dense<0xFF800000> : vector<8xf32>
    %63 = vector.multi_reduction <maximumf>, %62, %cst_32 [1] : vector<8x8xf32> to vector<8xf32>
    %64 = vector.shape_cast %63 : vector<8xf32> to vector<8x1xf32>
    %65 = vector.broadcast %64 : vector<8x1xf32> to vector<8x8xf32>
    %66 = arith.subf %62, %65 : vector<8x8xf32>
    %67 = math.exp %66 : vector<8x8xf32>
    %cst_33 = arith.constant dense<0.000000e+00> : vector<8xf32>
    %68 = vector.multi_reduction <add>, %67, %cst_33 [1] : vector<8x8xf32> to vector<8xf32>
    %69 = vector.shape_cast %68 : vector<8xf32> to vector<8x1xf32>
    %70 = tpu.reciprocal %69 {approx = true} : vector<8x1xf32> -> vector<8x1xf32>
    %71 = vector.broadcast %70 : vector<8x1xf32> to vector<8x8xf32>
    %72 = arith.mulf %67, %71 : vector<8x8xf32>
    %73 = arith.truncf %72 : vector<8x8xf32> to vector<8x8xbf16>
    %cst_34 = arith.constant dense<0.000000e+00> : vector<8x8xf32>
    %74 = tpu.matmul %73, %59, %cst_34 {dimension_numbers = #tpu.dot_dimension_numbers<[1], [0], [0], [1], [0, 0, 1, 1], [], []>} : vector<8x8xbf16>, vector<8x8xbf16>, vector<8x8xf32> -> vector<8x8xf32>
    %c0_35 = arith.constant 0 : index
    %c0_36 = arith.constant 0 : index
    %c24 = arith.constant 24 : index
    %75 = vector.load %arg2[%c0_35, %c0_36, %c24] : memref<1x8x96xbf16, #tpu.memory_space<vmem>>, vector<1x8x8xbf16>
    %76 = vector.shape_cast %75 : vector<1x8x8xbf16> to vector<8x8xbf16>
    %c0_37 = arith.constant 0 : index
    %c0_38 = arith.constant 0 : index
    %c56 = arith.constant 56 : index
    %77 = vector.load %arg3[%c0_37, %c0_38, %c56] : memref<1x8x96xbf16, #tpu.memory_space<vmem>>, vector<1x8x8xbf16>
    %78 = vector.shape_cast %77 : vector<1x8x8xbf16> to vector<8x8xbf16>
    %c0_39 = arith.constant 0 : index
    %c0_40 = arith.constant 0 : index
    %c88 = arith.constant 88 : index
    %79 = vector.load %arg3[%c0_39, %c0_40, %c88] : memref<1x8x96xbf16, #tpu.memory_space<vmem>>, vector<1x8x8xbf16>
    %80 = vector.shape_cast %79 : vector<1x8x8xbf16> to vector<8x8xbf16>
    %cst_41 = arith.constant dense<0.000000e+00> : vector<8x8xf32>
    %81 = tpu.matmul %76, %78, %cst_41 {dimension_numbers = #tpu.dot_dimension_numbers<[1], [1], [0], [0], [0, 0, 1, 0], [], []>} : vector<8x8xbf16>, vector<8x8xbf16>, vector<8x8xf32> -> vector<8x8xf32>
    %cst_42 = arith.constant -1.000000e+09 : f32
    %82 = vector.broadcast %cst_42 : f32 to vector<8x8xf32>
    %83 = arith.select %11, %81, %82 : vector<8x8xi1>, vector<8x8xf32>
    %cst_43 = arith.constant dense<0xFF800000> : vector<8xf32>
    %84 = vector.multi_reduction <maximumf>, %83, %cst_43 [1] : vector<8x8xf32> to vector<8xf32>
    %85 = vector.shape_cast %84 : vector<8xf32> to vector<8x1xf32>
    %86 = vector.broadcast %85 : vector<8x1xf32> to vector<8x8xf32>
    %87 = arith.subf %83, %86 : vector<8x8xf32>
    %88 = math.exp %87 : vector<8x8xf32>
    %cst_44 = arith.constant dense<0.000000e+00> : vector<8xf32>
    %89 = vector.multi_reduction <add>, %88, %cst_44 [1] : vector<8x8xf32> to vector<8xf32>
    %90 = vector.shape_cast %89 : vector<8xf32> to vector<8x1xf32>
    %91 = tpu.reciprocal %90 {approx = true} : vector<8x1xf32> -> vector<8x1xf32>
    %92 = vector.broadcast %91 : vector<8x1xf32> to vector<8x8xf32>
    %93 = arith.mulf %88, %92 : vector<8x8xf32>
    %94 = arith.truncf %93 : vector<8x8xf32> to vector<8x8xbf16>
    %cst_45 = arith.constant dense<0.000000e+00> : vector<8x8xf32>
    %95 = tpu.matmul %94, %80, %cst_45 {dimension_numbers = #tpu.dot_dimension_numbers<[1], [0], [0], [1], [0, 0, 1, 1], [], []>} : vector<8x8xbf16>, vector<8x8xbf16>, vector<8x8xf32> -> vector<8x8xf32>
    %96 = tpu.concatenate %32, %53, %74, %95 in 1 : vector<8x8xf32>, vector<8x8xf32>, vector<8x8xf32>, vector<8x8xf32> -> vector<8x32xf32>
    %97 = arith.truncf %96 : vector<8x32xf32> to vector<8x32xbf16>
    %c0_46 = arith.constant 0 : index
    %c0_47 = arith.constant 0 : index
    %c0_48 = arith.constant 0 : index
    %98 = vector.load %arg5[%c0_46, %c0_47, %c0_48] : memref<1x8x32xbf16, #tpu.memory_space<vmem>>, vector<1x8x32xbf16>
    %99 = vector.shape_cast %98 : vector<1x8x32xbf16> to vector<8x32xbf16>
    %100 = vector.shape_cast %97 : vector<8x32xbf16> to vector<1x8x32xbf16>
    tpu.vector_store %arg5[%c0_46, %c0_47, %c0_48], %100 {strides = array<i32>} : memref<1x8x32xbf16, #tpu.memory_space<vmem>>, vector<1x8x32xbf16>,
    return
  }
  func.func @transform_0(%arg0: i32, %arg1: i32) -> (i32, i32, i32) {
    %c0_i32 = arith.constant 0 : i32
    %c0_i32_0 = arith.constant 0 : i32
    return %arg0, %arg1, %c0_i32 : i32, i32, i32
  }
  func.func @transform_1(%arg0: i32, %arg1: i32) -> (i32, i32, i32) {
    %c0_i32 = arith.constant 0 : i32
    %c0_i32_0 = arith.constant 0 : i32
    %c0_i32_1 = arith.constant 0 : i32
    return %arg0, %c0_i32, %c0_i32_0 : i32, i32, i32
  }
  func.func @transform_2(%arg0: i32, %arg1: i32) -> (i32, i32, i32) {
    %c0_i32 = arith.constant 0 : i32
    %c0_i32_0 = arith.constant 0 : i32
    %c0_i32_1 = arith.constant 0 : i32
    return %arg0, %c0_i32, %c0_i32_0 : i32, i32, i32
  }
  func.func @transform_3(%arg0: i32, %arg1: i32) -> (i32, i32, i32) {
    %c0_i32 = arith.constant 0 : i32
    %c0_i32_0 = arith.constant 0 : i32
    return %arg0, %arg1, %c0_i32 : i32, i32, i32
  }
}

module attributes {stable_mosaic.version = 11 : i64} {
  func.func @_matmul_single_kernel(%arg0: i32, %arg1: i32, %arg2: memref<16x32xbf16, #tpu.memory_space<vmem>>, %arg3: memref<32x96xbf16, #tpu.memory_space<vmem>>, %arg4: memref<16x96xbf16, #tpu.memory_space<vmem>>) attributes {dimension_semantics = [#tpu.dimension_semantics<parallel>, #tpu.dimension_semantics<parallel>], iteration_bounds = array<i64: 1, 1>, scalar_prefetch = 0 : i64, scratch_operands = 0 : i64, tpu.core_type = #tpu.core_type<tc>, window_params = [{transform_indices = @transform_0, window_bounds = array<i64: 16, 32>}, {transform_indices = @transform_1, window_bounds = array<i64: 32, 96>}, {transform_indices = @transform_2, window_bounds = array<i64: 16, 96>}]} {
    %c0 = arith.constant 0 : index
    %c0_0 = arith.constant 0 : index
    %0 = vector.load %arg2[%c0, %c0_0] : memref<16x32xbf16, #tpu.memory_space<vmem>>, vector<16x32xbf16>
    %c0_1 = arith.constant 0 : index
    %c0_2 = arith.constant 0 : index
    %1 = vector.load %arg3[%c0_1, %c0_2] : memref<32x96xbf16, #tpu.memory_space<vmem>>, vector<32x96xbf16>
    %cst = arith.constant dense<0.000000e+00> : vector<16x96xf32>
    %2 = tpu.matmul %0, %1, %cst {dimension_numbers = #tpu.dot_dimension_numbers<[1], [0], [0], [1], [0, 0, 1, 1], [], []>} : vector<16x32xbf16>, vector<32x96xbf16>, vector<16x96xf32> -> vector<16x96xf32>
    %3 = arith.truncf %2 : vector<16x96xf32> to vector<16x96xbf16>
    %c0_3 = arith.constant 0 : index
    %c0_4 = arith.constant 0 : index
    %4 = vector.load %arg4[%c0_3, %c0_4] : memref<16x96xbf16, #tpu.memory_space<vmem>>, vector<16x96xbf16>
    tpu.vector_store %arg4[%c0_3, %c0_4], %3 {strides = array<i32>} : memref<16x96xbf16, #tpu.memory_space<vmem>>, vector<16x96xbf16>,
    return
  }
  func.func @transform_0(%arg0: i32, %arg1: i32) -> (i32, i32) {
    %c0_i32 = arith.constant 0 : i32
    %c0_i32_0 = arith.constant 0 : i32
    return %arg0, %c0_i32 : i32, i32
  }
  func.func @transform_1(%arg0: i32, %arg1: i32) -> (i32, i32) {
    %c0_i32 = arith.constant 0 : i32
    %c0_i32_0 = arith.constant 0 : i32
    return %c0_i32, %arg1 : i32, i32
  }
  func.func @transform_2(%arg0: i32, %arg1: i32) -> (i32, i32) {
    %c0_i32 = arith.constant 0 : i32
    return %arg0, %arg1 : i32, i32
  }
}

module attributes {stable_mosaic.version = 11 : i64} {
  func.func @_embed_ln_kernel(%arg0: i32, %arg1: i32, %arg2: memref<1x8x32xf32, #tpu.memory_space<vmem>>, %arg3: memref<8x32xf32, #tpu.memory_space<vmem>>, %arg4: memref<1x32xf32, #tpu.memory_space<vmem>>, %arg5: memref<1x32xf32, #tpu.memory_space<vmem>>, %arg6: memref<1x8x32xbf16, #tpu.memory_space<vmem>>) attributes {dimension_semantics = [#tpu.dimension_semantics<parallel>, #tpu.dimension_semantics<parallel>], iteration_bounds = array<i64: 2, 1>, scalar_prefetch = 0 : i64, scratch_operands = 0 : i64, tpu.core_type = #tpu.core_type<tc>, window_params = [{transform_indices = @transform_0, window_bounds = array<i64: 1, 8, 32>}, {transform_indices = @transform_1, window_bounds = array<i64: 8, 32>}, {pipeline_mode = #tpu.pipeline_mode<synchronous>, transform_indices = @transform_2, window_bounds = array<i64: 1, 32>}, {pipeline_mode = #tpu.pipeline_mode<synchronous>, transform_indices = @transform_3, window_bounds = array<i64: 1, 32>}, {transform_indices = @transform_4, window_bounds = array<i64: 1, 8, 32>}]} {
    %c0 = arith.constant 0 : index
    %c0_0 = arith.constant 0 : index
    %c0_1 = arith.constant 0 : index
    %0 = vector.load %arg2[%c0, %c0_0, %c0_1] : memref<1x8x32xf32, #tpu.memory_space<vmem>>, vector<1x8x32xf32>
    %1 = vector.shape_cast %0 : vector<1x8x32xf32> to vector<8x32xf32>
    %c0_2 = arith.constant 0 : index
    %c0_3 = arith.constant 0 : index
    %2 = vector.load %arg3[%c0_2, %c0_3] : memref<8x32xf32, #tpu.memory_space<vmem>>, vector<8x32xf32>
    %3 = arith.addf %1, %2 : vector<8x32xf32>
    %c0_4 = arith.constant 0 : index
    %c0_5 = arith.constant 0 : index
    %4 = vector.load %arg4[%c0_4, %c0_5] : memref<1x32xf32, #tpu.memory_space<vmem>>, vector<1x32xf32>
    %c0_6 = arith.constant 0 : index
    %c0_7 = arith.constant 0 : index
    %5 = vector.load %arg5[%c0_6, %c0_7] : memref<1x32xf32, #tpu.memory_space<vmem>>, vector<1x32xf32>
    %cst = arith.constant dense<0.000000e+00> : vector<8xf32>
    %6 = vector.multi_reduction <add>, %3, %cst [1] : vector<8x32xf32> to vector<8xf32>
    %7 = vector.shape_cast %6 : vector<8xf32> to vector<8x1xf32>
    %cst_8 = arith.constant 3.200000e+01 : f32
    %8 = vector.broadcast %cst_8 : f32 to vector<8x1xf32>
    %9 = arith.divf %7, %8 : vector<8x1xf32>
    %10 = vector.broadcast %9 : vector<8x1xf32> to vector<8x32xf32>
    %11 = arith.subf %3, %10 : vector<8x32xf32>
    %12 = arith.mulf %11, %11 : vector<8x32xf32>
    %cst_9 = arith.constant dense<0.000000e+00> : vector<8xf32>
    %13 = vector.multi_reduction <add>, %12, %cst_9 [1] : vector<8x32xf32> to vector<8xf32>
    %14 = vector.shape_cast %13 : vector<8xf32> to vector<8x1xf32>
    %cst_10 = arith.constant 3.200000e+01 : f32
    %15 = vector.broadcast %cst_10 : f32 to vector<8x1xf32>
    %16 = arith.divf %14, %15 : vector<8x1xf32>
    %17 = vector.broadcast %9 : vector<8x1xf32> to vector<8x32xf32>
    %18 = arith.subf %3, %17 : vector<8x32xf32>
    %cst_11 = arith.constant 9.99999997E-7 : f32
    %19 = vector.broadcast %cst_11 : f32 to vector<8x1xf32>
    %20 = arith.addf %16, %19 : vector<8x1xf32>
    %21 = math.rsqrt %20 : vector<8x1xf32>
    %22 = vector.broadcast %21 : vector<8x1xf32> to vector<8x32xf32>
    %23 = arith.mulf %18, %22 : vector<8x32xf32>
    %24 = vector.broadcast %4 : vector<1x32xf32> to vector<8x32xf32>
    %25 = arith.mulf %23, %24 : vector<8x32xf32>
    %26 = vector.broadcast %5 : vector<1x32xf32> to vector<8x32xf32>
    %27 = arith.addf %25, %26 : vector<8x32xf32>
    %28 = arith.truncf %27 : vector<8x32xf32> to vector<8x32xbf16>
    %c0_12 = arith.constant 0 : index
    %c0_13 = arith.constant 0 : index
    %c0_14 = arith.constant 0 : index
    %29 = vector.load %arg6[%c0_12, %c0_13, %c0_14] : memref<1x8x32xbf16, #tpu.memory_space<vmem>>, vector<1x8x32xbf16>
    %30 = vector.shape_cast %29 : vector<1x8x32xbf16> to vector<8x32xbf16>
    %31 = vector.shape_cast %28 : vector<8x32xbf16> to vector<1x8x32xbf16>
    tpu.vector_store %arg6[%c0_12, %c0_13, %c0_14], %31 {strides = array<i32>} : memref<1x8x32xbf16, #tpu.memory_space<vmem>>, vector<1x8x32xbf16>,
    return
  }
  func.func @transform_0(%arg0: i32, %arg1: i32) -> (i32, i32, i32) {
    %c0_i32 = arith.constant 0 : i32
    %c0_i32_0 = arith.constant 0 : i32
    return %arg0, %arg1, %c0_i32 : i32, i32, i32
  }
  func.func @transform_1(%arg0: i32, %arg1: i32) -> (i32, i32) {
    %c0_i32 = arith.constant 0 : i32
    %c0_i32_0 = arith.constant 0 : i32
    return %arg1, %c0_i32 : i32, i32
  }
  func.func @transform_2(%arg0: i32, %arg1: i32) -> (i32, i32) {
    %c0_i32 = arith.constant 0 : i32
    %c0_i32_0 = arith.constant 0 : i32
    %c0_i32_1 = arith.constant 0 : i32
    return %c0_i32, %c0_i32_0 : i32, i32
  }
  func.func @transform_3(%arg0: i32, %arg1: i32) -> (i32, i32) {
    %c0_i32 = arith.constant 0 : i32
    %c0_i32_0 = arith.constant 0 : i32
    %c0_i32_1 = arith.constant 0 : i32
    return %c0_i32, %c0_i32_0 : i32, i32
  }
  func.func @transform_4(%arg0: i32, %arg1: i32) -> (i32, i32, i32) {
    %c0_i32 = arith.constant 0 : i32
    %c0_i32_0 = arith.constant 0 : i32
    return %arg0, %arg1, %c0_i32 : i32, i32, i32
  }
}

module attributes {stable_mosaic.version = 11 : i64} {
  func.func @_proj_add_ln_kernel(%arg0: i32, %arg1: memref<16x32xbf16, #tpu.memory_space<vmem>>, %arg2: memref<32x32xbf16, #tpu.memory_space<vmem>>, %arg3: memref<16x32xbf16, #tpu.memory_space<vmem>>, %arg4: memref<1x32xf32, #tpu.memory_space<vmem>>, %arg5: memref<1x32xf32, #tpu.memory_space<vmem>>, %arg6: memref<16x32xbf16, #tpu.memory_space<vmem>>) attributes {dimension_semantics = [#tpu.dimension_semantics<parallel>], iteration_bounds = array<i64: 1>, scalar_prefetch = 0 : i64, scratch_operands = 0 : i64, tpu.core_type = #tpu.core_type<tc>, window_params = [{transform_indices = @transform_0, window_bounds = array<i64: 16, 32>}, {pipeline_mode = #tpu.pipeline_mode<synchronous>, transform_indices = @transform_1, window_bounds = array<i64: 32, 32>}, {transform_indices = @transform_2, window_bounds = array<i64: 16, 32>}, {pipeline_mode = #tpu.pipeline_mode<synchronous>, transform_indices = @transform_3, window_bounds = array<i64: 1, 32>}, {pipeline_mode = #tpu.pipeline_mode<synchronous>, transform_indices = @transform_4, window_bounds = array<i64: 1, 32>}, {transform_indices = @transform_5, window_bounds = array<i64: 16, 32>}]} {
    %c0 = arith.constant 0 : index
    %c0_0 = arith.constant 0 : index
    %0 = vector.load %arg1[%c0, %c0_0] : memref<16x32xbf16, #tpu.memory_space<vmem>>, vector<16x32xbf16>
    %c0_1 = arith.constant 0 : index
    %c0_2 = arith.constant 0 : index
    %1 = vector.load %arg2[%c0_1, %c0_2] : memref<32x32xbf16, #tpu.memory_space<vmem>>, vector<32x32xbf16>
    %cst = arith.constant dense<0.000000e+00> : vector<16x32xf32>
    %2 = tpu.matmul %0, %1, %cst {dimension_numbers = #tpu.dot_dimension_numbers<[1], [0], [0], [1], [0, 0, 1, 1], [], []>} : vector<16x32xbf16>, vector<32x32xbf16>, vector<16x32xf32> -> vector<16x32xf32>
    %c0_3 = arith.constant 0 : index
    %c0_4 = arith.constant 0 : index
    %3 = vector.load %arg3[%c0_3, %c0_4] : memref<16x32xbf16, #tpu.memory_space<vmem>>, vector<16x32xbf16>
    %4 = arith.extf %3 : vector<16x32xbf16> to vector<16x32xf32>
    %5 = arith.addf %2, %4 : vector<16x32xf32>
    %c0_5 = arith.constant 0 : index
    %c0_6 = arith.constant 0 : index
    %6 = vector.load %arg4[%c0_5, %c0_6] : memref<1x32xf32, #tpu.memory_space<vmem>>, vector<1x32xf32>
    %c0_7 = arith.constant 0 : index
    %c0_8 = arith.constant 0 : index
    %7 = vector.load %arg5[%c0_7, %c0_8] : memref<1x32xf32, #tpu.memory_space<vmem>>, vector<1x32xf32>
    %cst_9 = arith.constant dense<0.000000e+00> : vector<16xf32>
    %8 = vector.multi_reduction <add>, %5, %cst_9 [1] : vector<16x32xf32> to vector<16xf32>
    %9 = vector.shape_cast %8 : vector<16xf32> to vector<16x1xf32>
    %cst_10 = arith.constant 3.200000e+01 : f32
    %10 = vector.broadcast %cst_10 : f32 to vector<16x1xf32>
    %11 = arith.divf %9, %10 : vector<16x1xf32>
    %12 = vector.broadcast %11 : vector<16x1xf32> to vector<16x32xf32>
    %13 = arith.subf %5, %12 : vector<16x32xf32>
    %14 = arith.mulf %13, %13 : vector<16x32xf32>
    %cst_11 = arith.constant dense<0.000000e+00> : vector<16xf32>
    %15 = vector.multi_reduction <add>, %14, %cst_11 [1] : vector<16x32xf32> to vector<16xf32>
    %16 = vector.shape_cast %15 : vector<16xf32> to vector<16x1xf32>
    %cst_12 = arith.constant 3.200000e+01 : f32
    %17 = vector.broadcast %cst_12 : f32 to vector<16x1xf32>
    %18 = arith.divf %16, %17 : vector<16x1xf32>
    %19 = vector.broadcast %11 : vector<16x1xf32> to vector<16x32xf32>
    %20 = arith.subf %5, %19 : vector<16x32xf32>
    %cst_13 = arith.constant 9.99999997E-7 : f32
    %21 = vector.broadcast %cst_13 : f32 to vector<16x1xf32>
    %22 = arith.addf %18, %21 : vector<16x1xf32>
    %23 = math.rsqrt %22 : vector<16x1xf32>
    %24 = vector.broadcast %23 : vector<16x1xf32> to vector<16x32xf32>
    %25 = arith.mulf %20, %24 : vector<16x32xf32>
    %26 = vector.broadcast %6 : vector<1x32xf32> to vector<16x32xf32>
    %27 = arith.mulf %25, %26 : vector<16x32xf32>
    %28 = vector.broadcast %7 : vector<1x32xf32> to vector<16x32xf32>
    %29 = arith.addf %27, %28 : vector<16x32xf32>
    %30 = arith.truncf %29 : vector<16x32xf32> to vector<16x32xbf16>
    %c0_14 = arith.constant 0 : index
    %c0_15 = arith.constant 0 : index
    %31 = vector.load %arg6[%c0_14, %c0_15] : memref<16x32xbf16, #tpu.memory_space<vmem>>, vector<16x32xbf16>
    tpu.vector_store %arg6[%c0_14, %c0_15], %30 {strides = array<i32>} : memref<16x32xbf16, #tpu.memory_space<vmem>>, vector<16x32xbf16>,
    return
  }
  func.func @transform_0(%arg0: i32) -> (i32, i32) {
    %c0_i32 = arith.constant 0 : i32
    %c0_i32_0 = arith.constant 0 : i32
    return %arg0, %c0_i32 : i32, i32
  }
  func.func @transform_1(%arg0: i32) -> (i32, i32) {
    %c0_i32 = arith.constant 0 : i32
    %c0_i32_0 = arith.constant 0 : i32
    %c0_i32_1 = arith.constant 0 : i32
    return %c0_i32, %c0_i32_0 : i32, i32
  }
  func.func @transform_2(%arg0: i32) -> (i32, i32) {
    %c0_i32 = arith.constant 0 : i32
    %c0_i32_0 = arith.constant 0 : i32
    return %arg0, %c0_i32 : i32, i32
  }
  func.func @transform_3(%arg0: i32) -> (i32, i32) {
    %c0_i32 = arith.constant 0 : i32
    %c0_i32_0 = arith.constant 0 : i32
    %c0_i32_1 = arith.constant 0 : i32
    return %c0_i32, %c0_i32_0 : i32, i32
  }
  func.func @transform_4(%arg0: i32) -> (i32, i32) {
    %c0_i32 = arith.constant 0 : i32
    %c0_i32_0 = arith.constant 0 : i32
    %c0_i32_1 = arith.constant 0 : i32
    return %c0_i32, %c0_i32_0 : i32, i32
  }
  func.func @transform_5(%arg0: i32) -> (i32, i32) {
    %c0_i32 = arith.constant 0 : i32
    %c0_i32_0 = arith.constant 0 : i32
    return %arg0, %c0_i32 : i32, i32
  }
}

module attributes {stable_mosaic.version = 11 : i64} {
  func.func @_matmul_single_kernel(%arg0: i32, %arg1: i32, %arg2: memref<16x32xbf16, #tpu.memory_space<vmem>>, %arg3: memref<32x32xbf16, #tpu.memory_space<vmem>>, %arg4: memref<16x32xbf16, #tpu.memory_space<vmem>>) attributes {dimension_semantics = [#tpu.dimension_semantics<parallel>, #tpu.dimension_semantics<parallel>], iteration_bounds = array<i64: 1, 1>, scalar_prefetch = 0 : i64, scratch_operands = 0 : i64, tpu.core_type = #tpu.core_type<tc>, window_params = [{transform_indices = @transform_0, window_bounds = array<i64: 16, 32>}, {transform_indices = @transform_1, window_bounds = array<i64: 32, 32>}, {transform_indices = @transform_2, window_bounds = array<i64: 16, 32>}]} {
    %c0 = arith.constant 0 : index
    %c0_0 = arith.constant 0 : index
    %0 = vector.load %arg2[%c0, %c0_0] : memref<16x32xbf16, #tpu.memory_space<vmem>>, vector<16x32xbf16>
    %c0_1 = arith.constant 0 : index
    %c0_2 = arith.constant 0 : index
    %1 = vector.load %arg3[%c0_1, %c0_2] : memref<32x32xbf16, #tpu.memory_space<vmem>>, vector<32x32xbf16>
    %cst = arith.constant dense<0.000000e+00> : vector<16x32xf32>
    %2 = tpu.matmul %0, %1, %cst {dimension_numbers = #tpu.dot_dimension_numbers<[1], [0], [0], [1], [0, 0, 1, 1], [], []>} : vector<16x32xbf16>, vector<32x32xbf16>, vector<16x32xf32> -> vector<16x32xf32>
    %3 = arith.truncf %2 : vector<16x32xf32> to vector<16x32xbf16>
    %c0_3 = arith.constant 0 : index
    %c0_4 = arith.constant 0 : index
    %4 = vector.load %arg4[%c0_3, %c0_4] : memref<16x32xbf16, #tpu.memory_space<vmem>>, vector<16x32xbf16>
    tpu.vector_store %arg4[%c0_3, %c0_4], %3 {strides = array<i32>} : memref<16x32xbf16, #tpu.memory_space<vmem>>, vector<16x32xbf16>,
    return
  }
  func.func @transform_0(%arg0: i32, %arg1: i32) -> (i32, i32) {
    %c0_i32 = arith.constant 0 : i32
    %c0_i32_0 = arith.constant 0 : i32
    return %arg0, %c0_i32 : i32, i32
  }
  func.func @transform_1(%arg0: i32, %arg1: i32) -> (i32, i32) {
    %c0_i32 = arith.constant 0 : i32
    %c0_i32_0 = arith.constant 0 : i32
    return %c0_i32, %arg1 : i32, i32
  }
  func.func @transform_2(%arg0: i32, %arg1: i32) -> (i32, i32) {
    %c0_i32 = arith.constant 0 : i32
    return %arg0, %arg1 : i32, i32
  }
}

module attributes {stable_mosaic.version = 11 : i64} {
  func.func @_matmul_single_kernel(%arg0: i32, %arg1: i32, %arg2: memref<16x32xbf16, #tpu.memory_space<vmem>>, %arg3: memref<32x64xbf16, #tpu.memory_space<vmem>>, %arg4: memref<16x64xbf16, #tpu.memory_space<vmem>>) attributes {dimension_semantics = [#tpu.dimension_semantics<parallel>, #tpu.dimension_semantics<parallel>], iteration_bounds = array<i64: 1, 1>, scalar_prefetch = 0 : i64, scratch_operands = 0 : i64, tpu.core_type = #tpu.core_type<tc>, window_params = [{transform_indices = @transform_0, window_bounds = array<i64: 16, 32>}, {transform_indices = @transform_1, window_bounds = array<i64: 32, 64>}, {transform_indices = @transform_2, window_bounds = array<i64: 16, 64>}]} {
    %c0 = arith.constant 0 : index
    %c0_0 = arith.constant 0 : index
    %0 = vector.load %arg2[%c0, %c0_0] : memref<16x32xbf16, #tpu.memory_space<vmem>>, vector<16x32xbf16>
    %c0_1 = arith.constant 0 : index
    %c0_2 = arith.constant 0 : index
    %1 = vector.load %arg3[%c0_1, %c0_2] : memref<32x64xbf16, #tpu.memory_space<vmem>>, vector<32x64xbf16>
    %cst = arith.constant dense<0.000000e+00> : vector<16x64xf32>
    %2 = tpu.matmul %0, %1, %cst {dimension_numbers = #tpu.dot_dimension_numbers<[1], [0], [0], [1], [0, 0, 1, 1], [], []>} : vector<16x32xbf16>, vector<32x64xbf16>, vector<16x64xf32> -> vector<16x64xf32>
    %3 = arith.truncf %2 : vector<16x64xf32> to vector<16x64xbf16>
    %c0_3 = arith.constant 0 : index
    %c0_4 = arith.constant 0 : index
    %4 = vector.load %arg4[%c0_3, %c0_4] : memref<16x64xbf16, #tpu.memory_space<vmem>>, vector<16x64xbf16>
    tpu.vector_store %arg4[%c0_3, %c0_4], %3 {strides = array<i32>} : memref<16x64xbf16, #tpu.memory_space<vmem>>, vector<16x64xbf16>,
    return
  }
  func.func @transform_0(%arg0: i32, %arg1: i32) -> (i32, i32) {
    %c0_i32 = arith.constant 0 : i32
    %c0_i32_0 = arith.constant 0 : i32
    return %arg0, %c0_i32 : i32, i32
  }
  func.func @transform_1(%arg0: i32, %arg1: i32) -> (i32, i32) {
    %c0_i32 = arith.constant 0 : i32
    %c0_i32_0 = arith.constant 0 : i32
    return %c0_i32, %arg1 : i32, i32
  }
  func.func @transform_2(%arg0: i32, %arg1: i32) -> (i32, i32) {
    %c0_i32 = arith.constant 0 : i32
    return %arg0, %arg1 : i32, i32
  }
}

module attributes {stable_mosaic.version = 11 : i64} {
  func.func @_cross_attn_kernel(%arg0: i32, %arg1: i32, %arg2: memref<1x8x32xbf16, #tpu.memory_space<vmem>>, %arg3: memref<1x8x64xbf16, #tpu.memory_space<vmem>>, %arg4: memref<1x1x8xi32, #tpu.memory_space<vmem>>, %arg5: memref<1x8x32xbf16, #tpu.memory_space<vmem>>) attributes {dimension_semantics = [#tpu.dimension_semantics<parallel>, #tpu.dimension_semantics<parallel>], iteration_bounds = array<i64: 2, 1>, scalar_prefetch = 0 : i64, scratch_operands = 0 : i64, tpu.core_type = #tpu.core_type<tc>, window_params = [{transform_indices = @transform_0, window_bounds = array<i64: 1, 8, 32>}, {transform_indices = @transform_1, window_bounds = array<i64: 1, 8, 64>}, {transform_indices = @transform_2, window_bounds = array<i64: 1, 1, 8>}, {transform_indices = @transform_3, window_bounds = array<i64: 1, 8, 32>}]} {
    %c0 = arith.constant 0 : index
    %c0_0 = arith.constant 0 : index
    %c0_1 = arith.constant 0 : index
    %0 = vector.load %arg4[%c0, %c0_0, %c0_1] : memref<1x1x8xi32, #tpu.memory_space<vmem>>, vector<1x1x8xi32>
    %1 = vector.shape_cast %0 : vector<1x1x8xi32> to vector<1x8xi32>
    %c0_i32 = arith.constant 0 : i32
    %2 = vector.broadcast %c0_i32 : i32 to vector<1x8xi32>
    %3 = arith.cmpi ne, %1, %2 : vector<1x8xi32>
    %c0_2 = arith.constant 0 : index
    %c0_3 = arith.constant 0 : index
    %c0_4 = arith.constant 0 : index
    %4 = vector.load %arg2[%c0_2, %c0_3, %c0_4] : memref<1x8x32xbf16, #tpu.memory_space<vmem>>, vector<1x8x8xbf16>
    %5 = vector.shape_cast %4 : vector<1x8x8xbf16> to vector<8x8xbf16>
    %c0_5 = arith.constant 0 : index
    %c0_6 = arith.constant 0 : index
    %c0_7 = arith.constant 0 : index
    %6 = vector.load %arg3[%c0_5, %c0_6, %c0_7] : memref<1x8x64xbf16, #tpu.memory_space<vmem>>, vector<1x8x8xbf16>
    %7 = vector.shape_cast %6 : vector<1x8x8xbf16> to vector<8x8xbf16>
    %c0_8 = arith.constant 0 : index
    %c0_9 = arith.constant 0 : index
    %c32 = arith.constant 32 : index
    %8 = vector.load %arg3[%c0_8, %c0_9, %c32] : memref<1x8x64xbf16, #tpu.memory_space<vmem>>, vector<1x8x8xbf16>
    %9 = vector.shape_cast %8 : vector<1x8x8xbf16> to vector<8x8xbf16>
    %cst = arith.constant dense<0.000000e+00> : vector<8x8xf32>
    %10 = tpu.matmul %5, %7, %cst {dimension_numbers = #tpu.dot_dimension_numbers<[1], [1], [0], [0], [0, 0, 1, 0], [], []>} : vector<8x8xbf16>, vector<8x8xbf16>, vector<8x8xf32> -> vector<8x8xf32>
    %cst_10 = arith.constant -1.000000e+09 : f32
    %11 = vector.shape_cast %3 : vector<1x8xi1> to vector<1x8xi1>
    %12 = vector.broadcast %11 : vector<1x8xi1> to vector<8x8xi1>
    %13 = vector.broadcast %cst_10 : f32 to vector<8x8xf32>
    %14 = arith.select %12, %10, %13 : vector<8x8xi1>, vector<8x8xf32>
    %cst_11 = arith.constant dense<0xFF800000> : vector<8xf32>
    %15 = vector.multi_reduction <maximumf>, %14, %cst_11 [1] : vector<8x8xf32> to vector<8xf32>
    %16 = vector.shape_cast %15 : vector<8xf32> to vector<8x1xf32>
    %17 = vector.broadcast %16 : vector<8x1xf32> to vector<8x8xf32>
    %18 = arith.subf %14, %17 : vector<8x8xf32>
    %19 = math.exp %18 : vector<8x8xf32>
    %cst_12 = arith.constant dense<0.000000e+00> : vector<8xf32>
    %20 = vector.multi_reduction <add>, %19, %cst_12 [1] : vector<8x8xf32> to vector<8xf32>
    %21 = vector.shape_cast %20 : vector<8xf32> to vector<8x1xf32>
    %22 = tpu.reciprocal %21 {approx = true} : vector<8x1xf32> -> vector<8x1xf32>
    %23 = vector.broadcast %22 : vector<8x1xf32> to vector<8x8xf32>
    %24 = arith.mulf %19, %23 : vector<8x8xf32>
    %25 = arith.truncf %24 : vector<8x8xf32> to vector<8x8xbf16>
    %cst_13 = arith.constant dense<0.000000e+00> : vector<8x8xf32>
    %26 = tpu.matmul %25, %9, %cst_13 {dimension_numbers = #tpu.dot_dimension_numbers<[1], [0], [0], [1], [0, 0, 1, 1], [], []>} : vector<8x8xbf16>, vector<8x8xbf16>, vector<8x8xf32> -> vector<8x8xf32>
    %c0_14 = arith.constant 0 : index
    %c0_15 = arith.constant 0 : index
    %c8 = arith.constant 8 : index
    %27 = vector.load %arg2[%c0_14, %c0_15, %c8] : memref<1x8x32xbf16, #tpu.memory_space<vmem>>, vector<1x8x8xbf16>
    %28 = vector.shape_cast %27 : vector<1x8x8xbf16> to vector<8x8xbf16>
    %c0_16 = arith.constant 0 : index
    %c0_17 = arith.constant 0 : index
    %c8_18 = arith.constant 8 : index
    %29 = vector.load %arg3[%c0_16, %c0_17, %c8_18] : memref<1x8x64xbf16, #tpu.memory_space<vmem>>, vector<1x8x8xbf16>
    %30 = vector.shape_cast %29 : vector<1x8x8xbf16> to vector<8x8xbf16>
    %c0_19 = arith.constant 0 : index
    %c0_20 = arith.constant 0 : index
    %c40 = arith.constant 40 : index
    %31 = vector.load %arg3[%c0_19, %c0_20, %c40] : memref<1x8x64xbf16, #tpu.memory_space<vmem>>, vector<1x8x8xbf16>
    %32 = vector.shape_cast %31 : vector<1x8x8xbf16> to vector<8x8xbf16>
    %cst_21 = arith.constant dense<0.000000e+00> : vector<8x8xf32>
    %33 = tpu.matmul %28, %30, %cst_21 {dimension_numbers = #tpu.dot_dimension_numbers<[1], [1], [0], [0], [0, 0, 1, 0], [], []>} : vector<8x8xbf16>, vector<8x8xbf16>, vector<8x8xf32> -> vector<8x8xf32>
    %cst_22 = arith.constant -1.000000e+09 : f32
    %34 = vector.shape_cast %3 : vector<1x8xi1> to vector<1x8xi1>
    %35 = vector.broadcast %34 : vector<1x8xi1> to vector<8x8xi1>
    %36 = vector.broadcast %cst_22 : f32 to vector<8x8xf32>
    %37 = arith.select %35, %33, %36 : vector<8x8xi1>, vector<8x8xf32>
    %cst_23 = arith.constant dense<0xFF800000> : vector<8xf32>
    %38 = vector.multi_reduction <maximumf>, %37, %cst_23 [1] : vector<8x8xf32> to vector<8xf32>
    %39 = vector.shape_cast %38 : vector<8xf32> to vector<8x1xf32>
    %40 = vector.broadcast %39 : vector<8x1xf32> to vector<8x8xf32>
    %41 = arith.subf %37, %40 : vector<8x8xf32>
    %42 = math.exp %41 : vector<8x8xf32>
    %cst_24 = arith.constant dense<0.000000e+00> : vector<8xf32>
    %43 = vector.multi_reduction <add>, %42, %cst_24 [1] : vector<8x8xf32> to vector<8xf32>
    %44 = vector.shape_cast %43 : vector<8xf32> to vector<8x1xf32>
    %45 = tpu.reciprocal %44 {approx = true} : vector<8x1xf32> -> vector<8x1xf32>
    %46 = vector.broadcast %45 : vector<8x1xf32> to vector<8x8xf32>
    %47 = arith.mulf %42, %46 : vector<8x8xf32>
    %48 = arith.truncf %47 : vector<8x8xf32> to vector<8x8xbf16>
    %cst_25 = arith.constant dense<0.000000e+00> : vector<8x8xf32>
    %49 = tpu.matmul %48, %32, %cst_25 {dimension_numbers = #tpu.dot_dimension_numbers<[1], [0], [0], [1], [0, 0, 1, 1], [], []>} : vector<8x8xbf16>, vector<8x8xbf16>, vector<8x8xf32> -> vector<8x8xf32>
    %c0_26 = arith.constant 0 : index
    %c0_27 = arith.constant 0 : index
    %c16 = arith.constant 16 : index
    %50 = vector.load %arg2[%c0_26, %c0_27, %c16] : memref<1x8x32xbf16, #tpu.memory_space<vmem>>, vector<1x8x8xbf16>
    %51 = vector.shape_cast %50 : vector<1x8x8xbf16> to vector<8x8xbf16>
    %c0_28 = arith.constant 0 : index
    %c0_29 = arith.constant 0 : index
    %c16_30 = arith.constant 16 : index
    %52 = vector.load %arg3[%c0_28, %c0_29, %c16_30] : memref<1x8x64xbf16, #tpu.memory_space<vmem>>, vector<1x8x8xbf16>
    %53 = vector.shape_cast %52 : vector<1x8x8xbf16> to vector<8x8xbf16>
    %c0_31 = arith.constant 0 : index
    %c0_32 = arith.constant 0 : index
    %c48 = arith.constant 48 : index
    %54 = vector.load %arg3[%c0_31, %c0_32, %c48] : memref<1x8x64xbf16, #tpu.memory_space<vmem>>, vector<1x8x8xbf16>
    %55 = vector.shape_cast %54 : vector<1x8x8xbf16> to vector<8x8xbf16>
    %cst_33 = arith.constant dense<0.000000e+00> : vector<8x8xf32>
    %56 = tpu.matmul %51, %53, %cst_33 {dimension_numbers = #tpu.dot_dimension_numbers<[1], [1], [0], [0], [0, 0, 1, 0], [], []>} : vector<8x8xbf16>, vector<8x8xbf16>, vector<8x8xf32> -> vector<8x8xf32>
    %cst_34 = arith.constant -1.000000e+09 : f32
    %57 = vector.shape_cast %3 : vector<1x8xi1> to vector<1x8xi1>
    %58 = vector.broadcast %57 : vector<1x8xi1> to vector<8x8xi1>
    %59 = vector.broadcast %cst_34 : f32 to vector<8x8xf32>
    %60 = arith.select %58, %56, %59 : vector<8x8xi1>, vector<8x8xf32>
    %cst_35 = arith.constant dense<0xFF800000> : vector<8xf32>
    %61 = vector.multi_reduction <maximumf>, %60, %cst_35 [1] : vector<8x8xf32> to vector<8xf32>
    %62 = vector.shape_cast %61 : vector<8xf32> to vector<8x1xf32>
    %63 = vector.broadcast %62 : vector<8x1xf32> to vector<8x8xf32>
    %64 = arith.subf %60, %63 : vector<8x8xf32>
    %65 = math.exp %64 : vector<8x8xf32>
    %cst_36 = arith.constant dense<0.000000e+00> : vector<8xf32>
    %66 = vector.multi_reduction <add>, %65, %cst_36 [1] : vector<8x8xf32> to vector<8xf32>
    %67 = vector.shape_cast %66 : vector<8xf32> to vector<8x1xf32>
    %68 = tpu.reciprocal %67 {approx = true} : vector<8x1xf32> -> vector<8x1xf32>
    %69 = vector.broadcast %68 : vector<8x1xf32> to vector<8x8xf32>
    %70 = arith.mulf %65, %69 : vector<8x8xf32>
    %71 = arith.truncf %70 : vector<8x8xf32> to vector<8x8xbf16>
    %cst_37 = arith.constant dense<0.000000e+00> : vector<8x8xf32>
    %72 = tpu.matmul %71, %55, %cst_37 {dimension_numbers = #tpu.dot_dimension_numbers<[1], [0], [0], [1], [0, 0, 1, 1], [], []>} : vector<8x8xbf16>, vector<8x8xbf16>, vector<8x8xf32> -> vector<8x8xf32>
    %c0_38 = arith.constant 0 : index
    %c0_39 = arith.constant 0 : index
    %c24 = arith.constant 24 : index
    %73 = vector.load %arg2[%c0_38, %c0_39, %c24] : memref<1x8x32xbf16, #tpu.memory_space<vmem>>, vector<1x8x8xbf16>
    %74 = vector.shape_cast %73 : vector<1x8x8xbf16> to vector<8x8xbf16>
    %c0_40 = arith.constant 0 : index
    %c0_41 = arith.constant 0 : index
    %c24_42 = arith.constant 24 : index
    %75 = vector.load %arg3[%c0_40, %c0_41, %c24_42] : memref<1x8x64xbf16, #tpu.memory_space<vmem>>, vector<1x8x8xbf16>
    %76 = vector.shape_cast %75 : vector<1x8x8xbf16> to vector<8x8xbf16>
    %c0_43 = arith.constant 0 : index
    %c0_44 = arith.constant 0 : index
    %c56 = arith.constant 56 : index
    %77 = vector.load %arg3[%c0_43, %c0_44, %c56] : memref<1x8x64xbf16, #tpu.memory_space<vmem>>, vector<1x8x8xbf16>
    %78 = vector.shape_cast %77 : vector<1x8x8xbf16> to vector<8x8xbf16>
    %cst_45 = arith.constant dense<0.000000e+00> : vector<8x8xf32>
    %79 = tpu.matmul %74, %76, %cst_45 {dimension_numbers = #tpu.dot_dimension_numbers<[1], [1], [0], [0], [0, 0, 1, 0], [], []>} : vector<8x8xbf16>, vector<8x8xbf16>, vector<8x8xf32> -> vector<8x8xf32>
    %cst_46 = arith.constant -1.000000e+09 : f32
    %80 = vector.shape_cast %3 : vector<1x8xi1> to vector<1x8xi1>
    %81 = vector.broadcast %80 : vector<1x8xi1> to vector<8x8xi1>
    %82 = vector.broadcast %cst_46 : f32 to vector<8x8xf32>
    %83 = arith.select %81, %79, %82 : vector<8x8xi1>, vector<8x8xf32>
    %cst_47 = arith.constant dense<0xFF800000> : vector<8xf32>
    %84 = vector.multi_reduction <maximumf>, %83, %cst_47 [1] : vector<8x8xf32> to vector<8xf32>
    %85 = vector.shape_cast %84 : vector<8xf32> to vector<8x1xf32>
    %86 = vector.broadcast %85 : vector<8x1xf32> to vector<8x8xf32>
    %87 = arith.subf %83, %86 : vector<8x8xf32>
    %88 = math.exp %87 : vector<8x8xf32>
    %cst_48 = arith.constant dense<0.000000e+00> : vector<8xf32>
    %89 = vector.multi_reduction <add>, %88, %cst_48 [1] : vector<8x8xf32> to vector<8xf32>
    %90 = vector.shape_cast %89 : vector<8xf32> to vector<8x1xf32>
    %91 = tpu.reciprocal %90 {approx = true} : vector<8x1xf32> -> vector<8x1xf32>
    %92 = vector.broadcast %91 : vector<8x1xf32> to vector<8x8xf32>
    %93 = arith.mulf %88, %92 : vector<8x8xf32>
    %94 = arith.truncf %93 : vector<8x8xf32> to vector<8x8xbf16>
    %cst_49 = arith.constant dense<0.000000e+00> : vector<8x8xf32>
    %95 = tpu.matmul %94, %78, %cst_49 {dimension_numbers = #tpu.dot_dimension_numbers<[1], [0], [0], [1], [0, 0, 1, 1], [], []>} : vector<8x8xbf16>, vector<8x8xbf16>, vector<8x8xf32> -> vector<8x8xf32>
    %96 = tpu.concatenate %26, %49, %72, %95 in 1 : vector<8x8xf32>, vector<8x8xf32>, vector<8x8xf32>, vector<8x8xf32> -> vector<8x32xf32>
    %97 = arith.truncf %96 : vector<8x32xf32> to vector<8x32xbf16>
    %c0_50 = arith.constant 0 : index
    %c0_51 = arith.constant 0 : index
    %c0_52 = arith.constant 0 : index
    %98 = vector.load %arg5[%c0_50, %c0_51, %c0_52] : memref<1x8x32xbf16, #tpu.memory_space<vmem>>, vector<1x8x32xbf16>
    %99 = vector.shape_cast %98 : vector<1x8x32xbf16> to vector<8x32xbf16>
    %100 = vector.shape_cast %97 : vector<8x32xbf16> to vector<1x8x32xbf16>
    tpu.vector_store %arg5[%c0_50, %c0_51, %c0_52], %100 {strides = array<i32>} : memref<1x8x32xbf16, #tpu.memory_space<vmem>>, vector<1x8x32xbf16>,
    return
  }
  func.func @transform_0(%arg0: i32, %arg1: i32) -> (i32, i32, i32) {
    %c0_i32 = arith.constant 0 : i32
    %c0_i32_0 = arith.constant 0 : i32
    return %arg0, %arg1, %c0_i32 : i32, i32, i32
  }
  func.func @transform_1(%arg0: i32, %arg1: i32) -> (i32, i32, i32) {
    %c0_i32 = arith.constant 0 : i32
    %c0_i32_0 = arith.constant 0 : i32
    %c0_i32_1 = arith.constant 0 : i32
    return %arg0, %c0_i32, %c0_i32_0 : i32, i32, i32
  }
  func.func @transform_2(%arg0: i32, %arg1: i32) -> (i32, i32, i32) {
    %c0_i32 = arith.constant 0 : i32
    %c0_i32_0 = arith.constant 0 : i32
    %c0_i32_1 = arith.constant 0 : i32
    return %arg0, %c0_i32, %c0_i32_0 : i32, i32, i32
  }
  func.func @transform_3(%arg0: i32, %arg1: i32) -> (i32, i32, i32) {
    %c0_i32 = arith.constant 0 : i32
    %c0_i32_0 = arith.constant 0 : i32
    return %arg0, %arg1, %c0_i32 : i32, i32, i32
  }
}

module attributes {stable_mosaic.version = 11 : i64} {
  func.func @_ffn_kernel(%arg0: i32, %arg1: i32, %arg2: memref<16x32xbf16, #tpu.memory_space<vmem>>, %arg3: memref<32x64xbf16, #tpu.memory_space<vmem>>, %arg4: memref<1x64xf32, #tpu.memory_space<vmem>>, %arg5: memref<64x32xbf16, #tpu.memory_space<vmem>>, %arg6: memref<1x32xf32, #tpu.memory_space<vmem>>, %arg7: memref<1x32xf32, #tpu.memory_space<vmem>>, %arg8: memref<1x32xf32, #tpu.memory_space<vmem>>, %arg9: memref<16x32xbf16, #tpu.memory_space<vmem>>, %arg10: memref<16x32xf32, #tpu.memory_space<vmem>>) attributes {dimension_semantics = [#tpu.dimension_semantics<parallel>, #tpu.dimension_semantics<arbitrary>], iteration_bounds = array<i64: 1, 1>, scalar_prefetch = 0 : i64, scratch_operands = 1 : i64, tpu.core_type = #tpu.core_type<tc>, window_params = [{transform_indices = @transform_0, window_bounds = array<i64: 16, 32>}, {transform_indices = @transform_1, window_bounds = array<i64: 32, 64>}, {transform_indices = @transform_2, window_bounds = array<i64: 1, 64>}, {transform_indices = @transform_3, window_bounds = array<i64: 64, 32>}, {pipeline_mode = #tpu.pipeline_mode<synchronous>, transform_indices = @transform_4, window_bounds = array<i64: 1, 32>}, {pipeline_mode = #tpu.pipeline_mode<synchronous>, transform_indices = @transform_5, window_bounds = array<i64: 1, 32>}, {pipeline_mode = #tpu.pipeline_mode<synchronous>, transform_indices = @transform_6, window_bounds = array<i64: 1, 32>}, {transform_indices = @transform_7, window_bounds = array<i64: 16, 32>}]} {
    %c0_i32 = arith.constant 0 : i32
    %0 = arith.cmpi eq, %arg1, %c0_i32 : i32
    %1 = arith.extui %0 : i1 to i32
    %c0_i32_0 = arith.constant 0 : i32
    %2 = arith.cmpi ne, %1, %c0_i32_0 : i32
    scf.if %2 {
      %cst_16 = arith.constant 0.000000e+00 : f32
      %20 = vector.broadcast %cst_16 : f32 to vector<16x32xf32>
      %c0_17 = arith.constant 0 : index
      %c0_18 = arith.constant 0 : index
      %21 = vector.load %arg10[%c0_17, %c0_18] : memref<16x32xf32, #tpu.memory_space<vmem>>, vector<16x32xf32>
      tpu.vector_store %arg10[%c0_17, %c0_18], %20 {strides = array<i32>} : memref<16x32xf32, #tpu.memory_space<vmem>>, vector<16x32xf32>,
    } else {
    }
    %c0 = arith.constant 0 : index
    %c0_1 = arith.constant 0 : index
    %3 = vector.load %arg2[%c0, %c0_1] : memref<16x32xbf16, #tpu.memory_space<vmem>>, vector<16x32xbf16>
    %c0_2 = arith.constant 0 : index
    %c0_3 = arith.constant 0 : index
    %4 = vector.load %arg3[%c0_2, %c0_3] : memref<32x64xbf16, #tpu.memory_space<vmem>>, vector<32x64xbf16>
    %cst = arith.constant dense<0.000000e+00> : vector<16x64xf32>
    %5 = tpu.matmul %3, %4, %cst {dimension_numbers = #tpu.dot_dimension_numbers<[1], [0], [0], [1], [0, 0, 1, 1], [], []>} : vector<16x32xbf16>, vector<32x64xbf16>, vector<16x64xf32> -> vector<16x64xf32>
    %c0_4 = arith.constant 0 : index
    %c0_5 = arith.constant 0 : index
    %6 = vector.load %arg4[%c0_4, %c0_5] : memref<1x64xf32, #tpu.memory_space<vmem>>, vector<1x64xf32>
    %7 = vector.broadcast %6 : vector<1x64xf32> to vector<16x64xf32>
    %8 = arith.addf %5, %7 : vector<16x64xf32>
    %cst_6 = arith.constant 0.000000e+00 : f32
    %9 = vector.broadcast %cst_6 : f32 to vector<16x64xf32>
    %10 = arith.maximumf %8, %9 : vector<16x64xf32>
    %c0_7 = arith.constant 0 : index
    %c0_8 = arith.constant 0 : index
    %11 = vector.load %arg10[%c0_7, %c0_8] : memref<16x32xf32, #tpu.memory_space<vmem>>, vector<16x32xf32>
    %12 = arith.truncf %10 : vector<16x64xf32> to vector<16x64xbf16>
    %c0_9 = arith.constant 0 : index
    %c0_10 = arith.constant 0 : index
    %13 = vector.load %arg5[%c0_9, %c0_10] : memref<64x32xbf16, #tpu.memory_space<vmem>>, vector<64x32xbf16>
    %cst_11 = arith.constant dense<0.000000e+00> : vector<16x32xf32>
    %14 = tpu.matmul %12, %13, %cst_11 {dimension_numbers = #tpu.dot_dimension_numbers<[1], [0], [0], [1], [0, 0, 1, 1], [], []>} : vector<16x64xbf16>, vector<64x32xbf16>, vector<16x32xf32> -> vector<16x32xf32>
    %15 = arith.addf %11, %14 : vector<16x32xf32>
    %c0_12 = arith.constant 0 : index
    %c0_13 = arith.constant 0 : index
    %16 = vector.load %arg10[%c0_12, %c0_13] : memref<16x32xf32, #tpu.memory_space<vmem>>, vector<16x32xf32>
    tpu.vector_store %arg10[%c0_12, %c0_13], %15 {strides = array<i32>} : memref<16x32xf32, #tpu.memory_space<vmem>>, vector<16x32xf32>,
    %c0_i32_14 = arith.constant 0 : i32
    %17 = arith.cmpi eq, %arg1, %c0_i32_14 : i32
    %18 = arith.extui %17 : i1 to i32
    %c0_i32_15 = arith.constant 0 : i32
    %19 = arith.cmpi ne, %18, %c0_i32_15 : i32
    scf.if %19 {
      %c0_16 = arith.constant 0 : index
      %c0_17 = arith.constant 0 : index
      %20 = vector.load %arg10[%c0_16, %c0_17] : memref<16x32xf32, #tpu.memory_space<vmem>>, vector<16x32xf32>
      %c0_18 = arith.constant 0 : index
      %c0_19 = arith.constant 0 : index
      %21 = vector.load %arg6[%c0_18, %c0_19] : memref<1x32xf32, #tpu.memory_space<vmem>>, vector<1x32xf32>
      %22 = vector.broadcast %21 : vector<1x32xf32> to vector<16x32xf32>
      %23 = arith.addf %20, %22 : vector<16x32xf32>
      %c0_20 = arith.constant 0 : index
      %c0_21 = arith.constant 0 : index
      %24 = vector.load %arg2[%c0_20, %c0_21] : memref<16x32xbf16, #tpu.memory_space<vmem>>, vector<16x32xbf16>
      %25 = arith.extf %24 : vector<16x32xbf16> to vector<16x32xf32>
      %26 = arith.addf %23, %25 : vector<16x32xf32>
      %c0_22 = arith.constant 0 : index
      %c0_23 = arith.constant 0 : index
      %27 = vector.load %arg7[%c0_22, %c0_23] : memref<1x32xf32, #tpu.memory_space<vmem>>, vector<1x32xf32>
      %c0_24 = arith.constant 0 : index
      %c0_25 = arith.constant 0 : index
      %28 = vector.load %arg8[%c0_24, %c0_25] : memref<1x32xf32, #tpu.memory_space<vmem>>, vector<1x32xf32>
      %cst_26 = arith.constant dense<0.000000e+00> : vector<16xf32>
      %29 = vector.multi_reduction <add>, %26, %cst_26 [1] : vector<16x32xf32> to vector<16xf32>
      %30 = vector.shape_cast %29 : vector<16xf32> to vector<16x1xf32>
      %cst_27 = arith.constant 3.200000e+01 : f32
      %31 = vector.broadcast %cst_27 : f32 to vector<16x1xf32>
      %32 = arith.divf %30, %31 : vector<16x1xf32>
      %33 = vector.broadcast %32 : vector<16x1xf32> to vector<16x32xf32>
      %34 = arith.subf %26, %33 : vector<16x32xf32>
      %35 = arith.mulf %34, %34 : vector<16x32xf32>
      %cst_28 = arith.constant dense<0.000000e+00> : vector<16xf32>
      %36 = vector.multi_reduction <add>, %35, %cst_28 [1] : vector<16x32xf32> to vector<16xf32>
      %37 = vector.shape_cast %36 : vector<16xf32> to vector<16x1xf32>
      %cst_29 = arith.constant 3.200000e+01 : f32
      %38 = vector.broadcast %cst_29 : f32 to vector<16x1xf32>
      %39 = arith.divf %37, %38 : vector<16x1xf32>
      %40 = vector.broadcast %32 : vector<16x1xf32> to vector<16x32xf32>
      %41 = arith.subf %26, %40 : vector<16x32xf32>
      %cst_30 = arith.constant 9.99999997E-7 : f32
      %42 = vector.broadcast %cst_30 : f32 to vector<16x1xf32>
      %43 = arith.addf %39, %42 : vector<16x1xf32>
      %44 = math.rsqrt %43 : vector<16x1xf32>
      %45 = vector.broadcast %44 : vector<16x1xf32> to vector<16x32xf32>
      %46 = arith.mulf %41, %45 : vector<16x32xf32>
      %47 = vector.broadcast %27 : vector<1x32xf32> to vector<16x32xf32>
      %48 = arith.mulf %46, %47 : vector<16x32xf32>
      %49 = vector.broadcast %28 : vector<1x32xf32> to vector<16x32xf32>
      %50 = arith.addf %48, %49 : vector<16x32xf32>
      %51 = arith.truncf %50 : vector<16x32xf32> to vector<16x32xbf16>
      %c0_31 = arith.constant 0 : index
      %c0_32 = arith.constant 0 : index
      %52 = vector.load %arg9[%c0_31, %c0_32] : memref<16x32xbf16, #tpu.memory_space<vmem>>, vector<16x32xbf16>
      tpu.vector_store %arg9[%c0_31, %c0_32], %51 {strides = array<i32>} : memref<16x32xbf16, #tpu.memory_space<vmem>>, vector<16x32xbf16>,
    } else {
    }
    return
  }
  func.func @transform_0(%arg0: i32, %arg1: i32) -> (i32, i32) {
    %c0_i32 = arith.constant 0 : i32
    %c0_i32_0 = arith.constant 0 : i32
    return %arg0, %c0_i32 : i32, i32
  }
  func.func @transform_1(%arg0: i32, %arg1: i32) -> (i32, i32) {
    %c0_i32 = arith.constant 0 : i32
    %c0_i32_0 = arith.constant 0 : i32
    return %c0_i32, %arg1 : i32, i32
  }
  func.func @transform_2(%arg0: i32, %arg1: i32) -> (i32, i32) {
    %c0_i32 = arith.constant 0 : i32
    %c0_i32_0 = arith.constant 0 : i32
    return %c0_i32, %arg1 : i32, i32
  }
  func.func @transform_3(%arg0: i32, %arg1: i32) -> (i32, i32) {
    %c0_i32 = arith.constant 0 : i32
    %c0_i32_0 = arith.constant 0 : i32
    return %arg1, %c0_i32 : i32, i32
  }
  func.func @transform_4(%arg0: i32, %arg1: i32) -> (i32, i32) {
    %c0_i32 = arith.constant 0 : i32
    %c0_i32_0 = arith.constant 0 : i32
    %c0_i32_1 = arith.constant 0 : i32
    return %c0_i32, %c0_i32_0 : i32, i32
  }
  func.func @transform_5(%arg0: i32, %arg1: i32) -> (i32, i32) {
    %c0_i32 = arith.constant 0 : i32
    %c0_i32_0 = arith.constant 0 : i32
    %c0_i32_1 = arith.constant 0 : i32
    return %c0_i32, %c0_i32_0 : i32, i32
  }
  func.func @transform_6(%arg0: i32, %arg1: i32) -> (i32, i32) {
    %c0_i32 = arith.constant 0 : i32
    %c0_i32_0 = arith.constant 0 : i32
    %c0_i32_1 = arith.constant 0 : i32
    return %c0_i32, %c0_i32_0 : i32, i32
  }
  func.func @transform_7(%arg0: i32, %arg1: i32) -> (i32, i32) {
    %c0_i32 = arith.constant 0 : i32
    %c0_i32_0 = arith.constant 0 : i32
    return %arg0, %c0_i32 : i32, i32
  }
}

</mosaic_0001>

<llo_original>
// kernel: decoder_forward.20
$region0: #{decoder_forward.20}
  #allocation0 [shape = 'u32[]', space=smem, size = 0x4, offset = 0x4, fixed_abs, tag = 'smem constant byte address 0x4 - core index']
  #allocation1 [shape = 'u32[144,128]{1,0:T(1,128)}', space=vmem, size = 0x12000, scoped, tag = 'internal scratch']
  %s0 = inlined_call_operand.vmem [shape: bf16[16,32], index: 0, kind: input, shape index: {}]
  %s1 = inlined_call_operand.vmem [shape: bf16[32,32], index: 1, kind: input, shape index: {}]
  %s2 = inlined_call_operand.vmem [shape: bf16[16,32], index: 2, kind: input, shape index: {}]
  %s3 = inlined_call_operand.vmem [shape: f32[1,32], index: 3, kind: input, shape index: {}]
  %s4 = inlined_call_operand.vmem [shape: f32[1,32], index: 4, kind: input, shape index: {}]
  %s5 = inlined_call_operand.vmem [shape: bf16[16,32], index: 5, kind: output, shape index: {}]
  %s6 = sld [smem:[#allocation0]]
  $region30: #{decoder_forward.20} parent=0
    _
  %s8 = ssub.s32 1, %s6
  %s9 = scalar_select 0, %s8, %s6
  // Predicated region
  $region2: #{decoder_forward.20} parent=0 // pred_check
    _
  $region3: #{decoder_forward.20} parent=0 // pred_check_branch
    %11 = sbr.rel (0) target = $region5
  $region4: #{decoder_forward.20} parent=0 // pred_region
    _
  $region5: #{decoder_forward.20} parent=0 // pred_fallthru
    _
  // Predicated region
  $region6: #{decoder_forward.20} parent=0 // pred_check
    _
  $region7: #{decoder_forward.20} parent=0 // pred_check_branch
    %13 = sbr.rel (0) target = $region9
  $region8: #{decoder_forward.20} parent=0 // pred_region
    _
  $region9: #{decoder_forward.20} parent=0 // pred_fallthru
    _
  // Predicated region
  $region10: #{decoder_forward.20} parent=0 // pred_check
    _
  $region11: #{decoder_forward.20} parent=0 // pred_check_branch
    %15 = sbr.rel (0) target = $region13
  $region12: #{decoder_forward.20} parent=0 // pred_region
    _
  $region13: #{decoder_forward.20} parent=0 // pred_fallthru
    _
  // Predicated region
  $region14: #{decoder_forward.20} parent=0 // pred_check
    _
  $region15: #{decoder_forward.20} parent=0 // pred_check_branch
    %17 = sbr.rel (0) target = $region17
  $region16: #{decoder_forward.20} parent=0 // pred_region
    _
  $region17: #{decoder_forward.20} parent=0 // pred_fallthru
    _
  // Predicated region
  $region18: #{decoder_forward.20} parent=0 // pred_check
    _
  $region19: #{decoder_forward.20} parent=0 // pred_check_branch
    %19 = sbr.rel (0) target = $region21
  $region20: #{decoder_forward.20} parent=0 // pred_region
    _
  $region21: #{decoder_forward.20} parent=0 // pred_fallthru
    _
  %v21 = vld [vmem:[%s0] sm:$0xf]
  %v22 = vld [vmem:[%s0 + $0x4] sm:$0xf]
  %v23 = vld [vmem:[%s1] sm:$0xf]
  %v24 = vld [vmem:[%s1 + $0x4] sm:$0xf]
  %v25 = vld [vmem:[%s1 + $0x8] sm:$0xf]
  %v26 = vld [vmem:[%s1 + $0xc] sm:$0xf]
  %v27 = vld [vmem:[%s2] sm:$0xf]
  %v28 = vld [vmem:[%s2 + $0x4] sm:$0xf]
  %v29 = vunpack.c.l.bf16 %v27
  %v30 = vunpack.c.l.bf16 %v28
  %v33 = vunpack.c.l.b16 %v21
  %v34 = vunpack.c.l.b16 %v22
  %v35 = vpack.c.b16 %v34, %v33
  %v40 = vunpack.c.l.b16 %v23
  %v41 = vunpack.c.l.b16 %v24
  %v42 = vunpack.c.l.b16 %v25
  %v43 = vunpack.c.l.b16 %v26
  %v44 = vpack.c.b16 %v41, %v40
  %v45 = vpack.c.b16 %v43, %v42
  %vm48 = vcmask 261120
  %v50 = vsel %vm48, %v35, 0
  %52 = vmatprep.subr.bf16.mxu0 0
  %53 = vmatpush1.bf16.msra.mxu0 0
  %54 = vmatprep.subr.bf16.mxu0 0
  %55 = vmatpush1.bf16.msra.mxu0 0
  %56 = vmatprep.subr.bf16.mxu0 0
  %57 = vmatpush1.bf16.msra.mxu0 0
  %58 = vmatprep.subr.bf16.mxu0 0
  %59 = vmatpush1.bf16.msra.mxu0 0
  %60 = vmatprep.subr.bf16.mxu0 0
  %61 = vmatpush1.bf16.msra.mxu0 0
  %62 = vmatprep.subr.bf16.mxu0 0
  %63 = vmatpush1.bf16.msra.mxu0 0
  %64 = vmatprep.subr.bf16.mxu0 0
  %65 = vmatpush1.bf16.msra.mxu0 %v45
  %66 = vmatprep.subr.bf16.mxu0 0
  %67 = vmatpush1.bf16.msra.mxu0 %v44
  %68 = vmatprep.subr.bf16.mxu0 0
  %69 = vmatpush2.bf16.msra.mxu0 0
  %70 = vmatprep.subr.bf16.mxu0 0
  %71 = vmatpush2.bf16.msra.mxu0 0
  %72 = vmatprep.subr.bf16.mxu0 0
  %73 = vmatpush2.bf16.msra.mxu0 0
  %74 = vmatprep.subr.bf16.mxu0 0
  %75 = vmatpush2.bf16.msra.mxu0 0
  %76 = vmatprep.subr.bf16.mxu0 0
  %77 = vmatpush2.bf16.msra.mxu0 0
  %78 = vmatprep.subr.bf16.mxu0 0
  %79 = vmatpush2.bf16.msra.mxu0 0
  %80 = vmatprep.subr.bf16.mxu0 0
  %81 = vmatpush2.bf16.msra.mxu0 0
  %82 = vmatprep.subr.bf16.mxu0 0
  %83 = vmatpush2.bf16.msra.mxu0 0
  %84 = vmatprep.mubr.bf16.mxu0 0
  %85 = vmatmul.mubr.bf16.gmra.mxu0 %v50
  %v86 = vpop.f32.mrf.mxu0
  %v87 = vadd.f32 %v29, %v86
  %v88 = vpop.f32.mrf.mxu0
  %v89 = vpop.f32.mrf.mxu0
  %v90 = vadd.f32 %v30, %v89
  %v91 = vpop.f32.mrf.mxu0
  %92 = vdwg.mxu0
  %v93 = vld [vmem:[%s3] sm:$0x1]
  %v94 = vld [vmem:[%s4] sm:$0x1]
  %v95 = vsel %vm48, %v87, 0.0
  %96 = vadd.xlane.f32.xlu0 %v95
  %v97 = vpop.xlane.xlu0 %96
  %v98 = vsel %vm48, %v90, 0.0
  %99 = vadd.xlane.f32.xlu0 %v98
  %v100 = vpop.xlane.xlu0 %99
  %v101 = vrcp.pop 32.0
  %v102 = vmul.f32 %v97, %v101
  %v103 = vmul.f32 %v100, %v101
  %v104 = vsub.f32 %v87, %v102
  %v105 = vsub.f32 %v90, %v103
  %v106 = vmul.f32 %v104, %v104
  %v107 = vmul.f32 %v105, %v105
  %v108 = vsel %vm48, %v106, 0.0
  %109 = vadd.xlane.f32.xlu0 %v108
  %v110 = vpop.xlane.xlu0 %109
  %v111 = vsel %vm48, %v107, 0.0
  %112 = vadd.xlane.f32.xlu0 %v111
  %v113 = vpop.xlane.xlu0 %112
  %v114 = vmul.f32 %v110, %v101
  %v115 = vmul.f32 %v113, %v101
  %v116 = vadd.f32 %v114, 1e-06
  %v117 = vadd.f32 %v115, 1e-06
  %v118 = vrsqrt.pop %v116
  %v119 = vrsqrt.pop %v117
  %v120 = vmul.f32 %v104, %v118
  %v121 = vmul.f32 %v105, %v119
  %v123 = vlaneseq
  %v124 = vshrl.u32 %v123, 7
  %v125 = vsub.s32 0, %v124
  %v126 = vrot.slane %v93, %v125
  %v128 = vmul.f32 %v120, %v126
  %v129 = vmul.f32 %v121, %v126
  %v131 = vlaneseq
  %v132 = vshrl.u32 %v131, 7
  %v133 = vsub.s32 0, %v132
  %v134 = vrot.slane %v94, %v133
  %v136 = vadd.f32 %v128, %v134
  %v137 = vadd.f32 %v129, %v134
  %v138 = vpack.c.bf16 %v137, %v136
  %v140 = vunpack.c.l.b16 %v138
  %v141 = vunpack.c.h.b16 %v138
  %v142 = vpack.c.b16 %v140, %v140
  %v143 = vpack.c.b16 %v141, %v141
  %vm146 = vcmask 257024
  %147 = vst.msk [vmem:[%s5] sm:$0xf] %vm146, %v142
  %148 = vst.msk [vmem:[%s5 + $0x4] sm:$0xf] %vm146, %v143
  // Predicated region
  $region22: #{decoder_forward.20} parent=0 // pred_check
    _
  $region23: #{decoder_forward.20} parent=0 // pred_check_branch
    %150 = sbr.rel (0) target = $region25
  $region24: #{decoder_forward.20} parent=0 // pred_region
    _
  $region25: #{decoder_forward.20} parent=0 // pred_fallthru
    _
  // Predicated region
  $region26: #{decoder_forward.20} parent=0 // pred_check
    _
  $region27: #{decoder_forward.20} parent=0 // pred_check_branch
    %152 = sbr.rel (0) target = $region29
  $region28: #{decoder_forward.20} parent=0 // pred_region
    _
  $region29: #{decoder_forward.20} parent=0 // pred_fallthru
    _

// kernel: decoder_forward.17
$region0: #{decoder_forward.17}
  #allocation0 [shape = 'u32[]', space=smem, size = 0x4, offset = 0x4, fixed_abs, tag = 'smem constant byte address 0x4 - core index']
  #allocation1 [shape = 'u32[144,128]{1,0:T(1,128)}', space=vmem, size = 0x12000, scoped, tag = 'internal scratch']
  %s0 = inlined_call_operand.vmem [shape: f32[2,8,32], index: 0, kind: input, shape index: {}]
  %s1 = inlined_call_operand.vmem [shape: f32[8,32], index: 1, kind: input, shape index: {}]
  %s2 = inlined_call_operand.vmem [shape: f32[1,32], index: 2, kind: input, shape index: {}]
  %s3 = inlined_call_operand.vmem [shape: f32[1,32], index: 3, kind: input, shape index: {}]
  %s4 = inlined_call_operand.vmem [shape: bf16[2,8,32], index: 4, kind: output, shape index: {}]
  %s5 = sld [smem:[#allocation0]]
  $region49: #{decoder_forward.17} parent=0
    _
  %s7 = ssub.s32 1, %s5
  %s8 = scalar_select 0, %s7, %s5
  loop: start=0, step=1, limit=4
  $region2: #{decoder_forward.17} parent=0 // loop_pre_header
    _
  $region3: #{decoder_forward.17} parent=0 // loop_header
    %s10 = sphi 0, %s14
    %p11 = scmp.ge.s32.totalorder %s10, 4
    %s17 = sphi 0, %s29
    %s18 = sphi 0, %s25
    %s19 = sphi 0, %s17
    %s20 = sphi 0, %s18
    %s21 = sphi 0, %s19
    %s22 = sphi 0, %s20
    %s34 = sphi 0, %s36
    %s37 = sphi 0, %s34
    %s38 = sphi 0, %s37
    %s54 = sphi 0, %s38
    %s60 = sphi 0, %s62
    %s63 = sphi 0, %s60
    %s64 = sphi 0, %s63
    %s80 = sphi 0, %s64
    %s84 = sphi 0, %s84
    %s86 = sphi 0, %s84
    %s87 = sphi 0, %s86
    %s101 = sphi 0, %s87
    %s105 = sphi 0, %s105
    %s107 = sphi 0, %s105
    %s108 = sphi 0, %s107
    %s122 = sphi 0, %s108
    %s130 = sphi 0, %s132
    %s133 = sphi 0, %s130
    %s134 = sphi 0, %s133
    %s150 = sphi 0, %s134
  $region4: #{decoder_forward.17} parent=0 // loop_header_branch
    %13 = sbr.rel (%p11) target = $region8
  $region5: #{decoder_forward.17} parent=0 // loop_body
    %s15 = ssub.s32 %s10, 1
    %s16 = ssub.s32 %s10, 2
    %s23 = sadd.s32 1, %s18
    %p24 = scmp.ge.s32.totalorder %s23, 1
    %s25 = scalar_select %p24, 0, %s23
    %s26 = sadd.s32 1, %s17
    %s27 = scalar_select %p24, %s26, %s17
    %p28 = scmp.ge.s32.totalorder %s27, 2
    %s29 = scalar_select %p28, 0, %s27
    %s30 = ssub.s32 %s17, %s29
    %s31 = ssub.s32 %s18, %s25
    %s32 = sor.u32 %s30, %s31
    %p33 = scmp.eq.s32.totalorder %s32, 0
    %s35 = sadd.s32 %s34, 1
    %s36 = scalar_select %p33, %s34, %s35
    %p39 = pneg %p33
    %p40 = scmp.eq.s32.totalorder %s10, 1
    %p41 = por %p39, %p40
    %p42 = scmp.ne.s32.totalorder %s34, %s37
    %p43 = scmp.eq.s32.totalorder %s10, 0
    %p44 = por %p42, %p43
    %p45 = scmp.ne.s32.totalorder %s34, %s37
    %p46 = scmp.eq.s32.totalorder %s15, 1
    %p47 = por %p45, %p46
    %p48 = scmp.ne.s32.totalorder %s37, %s38
    %p49 = scmp.eq.s32.totalorder %s15, 0
    %p50 = por %p48, %p49
    %p51 = scmp.ne.s32.totalorder %s37, %s38
    %p52 = scmp.eq.s32.totalorder %s16, 1
    %p53 = por %p51, %p52
    %p55 = scmp.ne.s32.totalorder %s38, %s54
    %p56 = scmp.eq.s32.totalorder %s16, 0
    %p57 = por %p55, %p56
    %s58 = ssub.s32 %s18, %s25
    %p59 = scmp.eq.s32.totalorder %s58, 0
    %s61 = sadd.s32 %s60, 1
    %s62 = scalar_select %p59, %s60, %s61
    %p65 = pneg %p59
    %p66 = scmp.eq.s32.totalorder %s10, 1
    %p67 = por %p65, %p66
    %p68 = scmp.ne.s32.totalorder %s60, %s63
    %p69 = scmp.eq.s32.totalorder %s10, 0
    %p70 = por %p68, %p69
    %p71 = scmp.ne.s32.totalorder %s60, %s63
    %p72 = scmp.eq.s32.totalorder %s15, 1
    %p73 = por %p71, %p72
    %p74 = scmp.ne.s32.totalorder %s63, %s64
    %p75 = scmp.eq.s32.totalorder %s15, 0
    %p76 = por %p74, %p75
    %p77 = scmp.ne.s32.totalorder %s63, %s64
    %p78 = scmp.eq.s32.totalorder %s16, 1
    %p79 = por %p77, %p78
    %p81 = scmp.ne.s32.totalorder %s64, %s80
    %p82 = scmp.eq.s32.totalorder %s16, 0
    %p83 = por %p81, %p82
    %s85 = sadd.s32 %s84, 1
    %p88 = scmp.eq.s32.totalorder %s10, 1
    %p89 = scmp.ne.s32.totalorder %s84, %s86
    %p90 = scmp.eq.s32.totalorder %s10, 0
    %p91 = por %p89, %p90
    %p92 = scmp.ne.s32.totalorder %s84, %s86
    %p93 = scmp.eq.s32.totalorder %s15, 1
    %p94 = por %p92, %p93
    %p95 = scmp.ne.s32.totalorder %s86, %s87
    %p96 = scmp.eq.s32.totalorder %s15, 0
    %p97 = por %p95, %p96
    %p98 = scmp.ne.s32.totalorder %s86, %s87
    %p99 = scmp.eq.s32.totalorder %s16, 1
    %p100 = por %p98, %p99
    %p102 = scmp.ne.s32.totalorder %s87, %s101
    %p103 = scmp.eq.s32.totalorder %s16, 0
    %p104 = por %p102, %p103
    %s106 = sadd.s32 %s105, 1
    %p109 = scmp.eq.s32.totalorder %s10, 1
    %p110 = scmp.ne.s32.totalorder %s105, %s107
    %p111 = scmp.eq.s32.totalorder %s10, 0
    %p112 = por %p110, %p111
    %p113 = scmp.ne.s32.totalorder %s105, %s107
    %p114 = scmp.eq.s32.totalorder %s15, 1
    %p115 = por %p113, %p114
    %p116 = scmp.ne.s32.totalorder %s107, %s108
    %p117 = scmp.eq.s32.totalorder %s15, 0
    %p118 = por %p116, %p117
    %p119 = scmp.ne.s32.totalorder %s107, %s108
    %p120 = scmp.eq.s32.totalorder %s16, 1
    %p121 = por %p119, %p120
    %p123 = scmp.ne.s32.totalorder %s108, %s122
    %p124 = scmp.eq.s32.totalorder %s16, 0
    %p125 = por %p123, %p124
    %s126 = ssub.s32 %s17, %s29
    %s127 = ssub.s32 %s18, %s25
    %s128 = sor.u32 %s126, %s127
    %p129 = scmp.eq.s32.totalorder %s128, 0
    %s131 = sadd.s32 %s130, 1
    %s132 = scalar_select %p129, %s130, %s131
    %p135 = pneg %p129
    %p136 = scmp.eq.s32.totalorder %s10, 1
    %p137 = por %p135, %p136
    %p138 = scmp.ne.s32.totalorder %s130, %s133
    %p139 = scmp.eq.s32.totalorder %s10, 0
    %p140 = por %p138, %p139
    %p141 = scmp.ne.s32.totalorder %s130, %s133
    %p142 = scmp.eq.s32.totalorder %s15, 1
    %p143 = por %p141, %p142
    %p144 = scmp.ne.s32.totalorder %s133, %s134
    %p145 = scmp.eq.s32.totalorder %s15, 0
    %p146 = por %p144, %p145
    %p147 = scmp.ne.s32.totalorder %s133, %s134
    %p148 = scmp.eq.s32.totalorder %s16, 1
    %p149 = por %p147, %p148
    %p151 = scmp.ne.s32.totalorder %s134, %s150
    %p152 = scmp.eq.s32.totalorder %s16, 0
    %p153 = por %p151, %p152
    %p154 = scmp.le.s32.totalorder 1, %s10
    %p155 = scmp.lt.s32.totalorder %s10, 3
    %p156 = pnand %p154, %p155
    %p157 = pneg %p156
    // Predicated region
    $region9: #{decoder_forward.17} parent=5 // pred_check
      _
    $region10: #{decoder_forward.17} parent=5 // pred_check_branch
      %159 = sbr.rel (%p156) target = $region12
    $region11: #{decoder_forward.17} parent=5 // pred_region
      %s160 = ssub.s32 %s10, 1
      // Predicated region
      $region13: #{decoder_forward.17} parent=11 // pred_check
        %p161 = pneg %p76
      $region14: #{decoder_forward.17} parent=11 // pred_check_branch
        %163 = sbr.rel (%p161) target = $region16
      $region15: #{decoder_forward.17} parent=11 // pred_region
        %p164 = scmp.lt.s32.totalorder %s20, 0
        %s165 = scalar_select %p164, %s20, 0
        %s166 = smul.addr %s165, 8
        %s167 = scalar_lea.vmem %s1, %s166
      $region16: #{decoder_forward.17} parent=11 // pred_fallthru
        _
      // Predicated region
      $region17: #{decoder_forward.17} parent=11 // pred_check
        %p168 = pneg %p97
      $region18: #{decoder_forward.17} parent=11 // pred_check_branch
        %170 = sbr.rel (%p168) target = $region20
      $region19: #{decoder_forward.17} parent=11 // pred_region
        _
      $region20: #{decoder_forward.17} parent=11 // pred_fallthru
        _
      // Predicated region
      $region21: #{decoder_forward.17} parent=11 // pred_check
        %p171 = pneg %p118
      $region22: #{decoder_forward.17} parent=11 // pred_check_branch
        %173 = sbr.rel (%p171) target = $region24
      $region23: #{decoder_forward.17} parent=11 // pred_region
        _
      $region24: #{decoder_forward.17} parent=11 // pred_fallthru
        _
    $region12: #{decoder_forward.17} parent=5 // pred_fallthru
      _
    %p174 = scmp.lt.s32.totalorder %s10, 2
    // Predicated region
    $region25: #{decoder_forward.17} parent=5 // pred_check
      %p175 = pneg %p174
    $region26: #{decoder_forward.17} parent=5 // pred_check_branch
      %177 = sbr.rel (%p175) target = $region28
    $region27: #{decoder_forward.17} parent=5 // pred_region
      // Predicated region
      $region29: #{decoder_forward.17} parent=27 // pred_check
        %p178 = pneg %p44
      $region30: #{decoder_forward.17} parent=27 // pred_check_branch
        %180 = sbr.rel (%p178) target = $region32
      $region31: #{decoder_forward.17} parent=27 // pred_region
        %p181 = scmp.lt.s32.totalorder %s17, 1
        %s182 = scalar_select %p181, %s17, 1
        %p183 = scmp.lt.s32.totalorder %s18, 0
        %s184 = scalar_select %p183, %s18, 0
        %s185 = sadd.s32 %s184, %s182
        %s186 = smul.addr %s185, 8
        %s187 = scalar_lea.vmem %s0, %s186
      $region32: #{decoder_forward.17} parent=27 // pred_fallthru
        _
    $region28: #{decoder_forward.17} parent=5 // pred_fallthru
      _
    %p188 = scmp.le.s32.totalorder 1, %s10
    %p189 = scmp.lt.s32.totalorder %s10, 3
    %p190 = pnand %p188, %p189
    %p191 = pneg %p190
    // Predicated region
    $region33: #{decoder_forward.17} parent=5 // pred_check
      _
    $region34: #{decoder_forward.17} parent=5 // pred_check_branch
      %193 = sbr.rel (%p190) target = $region36
    $region35: #{decoder_forward.17} parent=5 // pred_region
      %s194 = ssub.s32 %s10, 1
      %p195 = scmp.lt.s32.totalorder %s19, 1
      %s196 = scalar_select %p195, %s19, 1
      %p197 = scmp.lt.s32.totalorder %s20, 0
      %s198 = scalar_select %p197, %s20, 0
      %s199 = sadd.s32 %s198, %s196
      %s200 = smul.addr %s199, 8
      %s201 = scalar_lea.vmem %s0, %s200
      %p202 = pneg %p50
      %p203 = pneg %p47
      %p204 = scmp.lt.s32.totalorder %s20, 0
      %s205 = scalar_select %p204, %s20, 0
      %s206 = smul.addr %s205, 8
      %s207 = scalar_lea.vmem %s1, %s206
      %p208 = pneg %p76
      %p209 = pneg %p73
      %p210 = pneg %p97
      %p211 = pneg %p94
      %p212 = pneg %p118
      %p213 = pneg %p115
      %p214 = pneg %p146
      %p215 = pneg %p143
      %p216 = scmp.lt.s32.totalorder %s19, 1
      %s217 = scalar_select %p216, %s19, 1
      %p218 = scmp.lt.s32.totalorder %s20, 0
      %s219 = scalar_select %p218, %s20, 0
      %s220 = sadd.s32 %s219, %s217
      %s221 = smul.addr %s220, 4
      %s222 = scalar_lea.vmem %s4, %s221
      %p223 = scmp.lt.s32.totalorder %s19, 1
      %s224 = scalar_select %p223, %s19, 1
      %p225 = scmp.lt.s32.totalorder %s20, 0
      %s226 = scalar_select %p225, %s20, 0
      %s227 = sadd.s32 %s226, %s224
      %s228 = smul.addr %s227, 8
      %s229 = scalar_lea.vmem %s0, %s228
      %p230 = scmp.lt.s32.totalorder %s20, 0
      %s231 = scalar_select %p230, %s20, 0
      %s232 = smul.addr %s231, 8
      %s233 = scalar_lea.vmem %s1, %s232
      %p234 = scmp.lt.s32.totalorder %s19, 1
      %s235 = scalar_select %p234, %s19, 1
      %p236 = scmp.lt.s32.totalorder %s20, 0
      %s237 = scalar_select %p236, %s20, 0
      %s238 = sadd.s32 %s237, %s235
      %s239 = smul.addr %s238, 4
      %s240 = scalar_lea.vmem %s4, %s239
      %v241 = vld [vmem:[%s229] sm:$0xff]
      %v242 = vld [vmem:[%s233] sm:$0xff]
      %v243 = vadd.f32 %v241, %v242
      %v244 = vld [vmem:[%s2] sm:$0x1]
      %v245 = vld [vmem:[%s3] sm:$0x1]
      %vm246 = vcmask 261120
      %v247 = vsel %vm246, %v243, 0.0
      %248 = vadd.xlane.f32.xlu0 %v247
      %v249 = vpop.xlane.xlu0 %248
      %v250 = vrcp.pop 32.0
      %v251 = vmul.f32 %v249, %v250
      %v252 = vsub.f32 %v243, %v251
      %v253 = vmul.f32 %v252, %v252
      %v254 = vsel %vm246, %v253, 0.0
      %255 = vadd.xlane.f32.xlu0 %v254
      %v256 = vpop.xlane.xlu0 %255
      %v257 = vmul.f32 %v256, %v250
      %v258 = vadd.f32 %v257, 1e-06
      %v259 = vrsqrt.pop %v258
      %v260 = vmul.f32 %v252, %v259
      %v262 = vlaneseq
      %v263 = vshrl.u32 %v262, 7
      %v264 = vsub.s32 0, %v263
      %v265 = vrot.slane %v244, %v264
      %v267 = vmul.f32 %v260, %v265
      %v269 = vlaneseq
      %v270 = vshrl.u32 %v269, 7
      %v271 = vsub.s32 0, %v270
      %v272 = vrot.slane %v245, %v271
      %v274 = vadd.f32 %v267, %v272
      %v275 = vpack.c.bf16 %v274, %v274
      %vm276 = vcmask 257024
      %277 = vst.msk [vmem:[%s240] sm:$0xf] %vm276, %v275
      %p278 = scmp.lt.s32.totalorder %s19, 1
      %s279 = scalar_select %p278, %s19, 1
      %p280 = scmp.lt.s32.totalorder %s20, 0
      %s281 = scalar_select %p280, %s20, 0
      %s282 = sadd.s32 %s281, %s279
      %s283 = smul.addr %s282, 4
      %s284 = scalar_lea.vmem %s4, %s283
      // Predicated region
      $region37: #{decoder_forward.17} parent=35 // pred_check
        %p285 = pneg %p143
      $region38: #{decoder_forward.17} parent=35 // pred_check_branch
        %287 = sbr.rel (%p285) target = $region40
      $region39: #{decoder_forward.17} parent=35 // pred_region
        _
      $region40: #{decoder_forward.17} parent=35 // pred_fallthru
        _
    $region36: #{decoder_forward.17} parent=5 // pred_fallthru
      _
    %p288 = scmp.le.s32.totalorder 2, %s10
    // Predicated region
    $region41: #{decoder_forward.17} parent=5 // pred_check
      %p289 = pneg %p288
    $region42: #{decoder_forward.17} parent=5 // pred_check_branch
      %291 = sbr.rel (%p289) target = $region44
    $region43: #{decoder_forward.17} parent=5 // pred_region
      %s292 = ssub.s32 %s10, 2
      // Predicated region
      $region45: #{decoder_forward.17} parent=43 // pred_check
        %p293 = pneg %p149
      $region46: #{decoder_forward.17} parent=43 // pred_check_branch
        %295 = sbr.rel (%p293) target = $region48
      $region47: #{decoder_forward.17} parent=43 // pred_region
        %p296 = scmp.lt.s32.totalorder %s21, 1
        %s297 = scalar_select %p296, %s21, 1
        %p298 = scmp.lt.s32.totalorder %s22, 0
        %s299 = scalar_select %p298, %s22, 0
        %s300 = sadd.s32 %s299, %s297
        %s301 = smul.addr %s300, 4
        %s302 = scalar_lea.vmem %s4, %s301
      $region48: #{decoder_forward.17} parent=43 // pred_fallthru
        _
    $region44: #{decoder_forward.17} parent=5 // pred_fallthru
      _
  $region6: #{decoder_forward.17} parent=0 // loop_footer
    %s14 = sadd.s32 1, %s10
  $region7: #{decoder_forward.17} parent=0 // loop_footer_branch
    %9 = sbr.rel target = $region3
  $region8: #{decoder_forward.17} parent=0 // loop_exit
    _

// kernel: decoder_forward.18
$region0: #{decoder_forward.18}
  #allocation0 [shape = 'u32[]', space=smem, size = 0x4, offset = 0x4, fixed_abs, tag = 'smem constant byte address 0x4 - core index']
  #allocation1 [shape = 'u32[144,128]{1,0:T(1,128)}', space=vmem, size = 0x12000, scoped, tag = 'internal scratch']
  %s0 = inlined_call_operand.vmem [shape: bf16[16,32], index: 0, kind: input, shape index: {}]
  %s1 = inlined_call_operand.vmem [shape: bf16[32,96], index: 1, kind: input, shape index: {}]
  %s2 = inlined_call_operand.vmem [shape: bf16[16,96], index: 2, kind: output, shape index: {}]
  %s3 = sld [smem:[#allocation0]]
  $region18: #{decoder_forward.18} parent=0
    _
  %s5 = ssub.s32 1, %s3
  %s6 = scalar_select 0, %s5, %s3
  // Predicated region
  $region2: #{decoder_forward.18} parent=0 // pred_check
    _
  $region3: #{decoder_forward.18} parent=0 // pred_check_branch
    %8 = sbr.rel (0) target = $region5
  $region4: #{decoder_forward.18} parent=0 // pred_region
    _
  $region5: #{decoder_forward.18} parent=0 // pred_fallthru
    _
  // Predicated region
  $region6: #{decoder_forward.18} parent=0 // pred_check
    _
  $region7: #{decoder_forward.18} parent=0 // pred_check_branch
    %10 = sbr.rel (0) target = $region9
  $region8: #{decoder_forward.18} parent=0 // pred_region
    _
  $region9: #{decoder_forward.18} parent=0 // pred_fallthru
    _
  %v12 = vld [vmem:[%s0] sm:$0xf]
  %v13 = vld [vmem:[%s0 + $0x4] sm:$0xf]
  %v14 = vld [vmem:[%s1] sm:$0xf]
  %v15 = vld [vmem:[%s1 + $0x4] sm:$0xf]
  %v16 = vld [vmem:[%s1 + $0x8] sm:$0xf]
  %v17 = vld [vmem:[%s1 + $0xc] sm:$0xf]
  %v20 = vunpack.c.l.b16 %v12
  %v21 = vunpack.c.l.b16 %v13
  %v22 = vpack.c.b16 %v21, %v20
  %v27 = vunpack.c.l.b16 %v14
  %v28 = vunpack.c.l.b16 %v15
  %v29 = vunpack.c.l.b16 %v16
  %v30 = vunpack.c.l.b16 %v17
  %v31 = vpack.c.b16 %v28, %v27
  %v32 = vpack.c.b16 %v30, %v29
  %vm35 = vcmask 261120
  %v37 = vsel %vm35, %v22, 0
  %39 = vmatprep.subr.bf16.mxu0 0
  %40 = vmatpush1.bf16.msra.mxu0 0
  %41 = vmatprep.subr.bf16.mxu0 0
  %42 = vmatpush1.bf16.msra.mxu0 0
  %43 = vmatprep.subr.bf16.mxu0 0
  %44 = vmatpush1.bf16.msra.mxu0 0
  %45 = vmatprep.subr.bf16.mxu0 0
  %46 = vmatpush1.bf16.msra.mxu0 0
  %47 = vmatprep.subr.bf16.mxu0 0
  %48 = vmatpush1.bf16.msra.mxu0 0
  %49 = vmatprep.subr.bf16.mxu0 0
  %50 = vmatpush1.bf16.msra.mxu0 0
  %51 = vmatprep.subr.bf16.mxu0 0
  %52 = vmatpush1.bf16.msra.mxu0 %v32
  %53 = vmatprep.subr.bf16.mxu0 0
  %54 = vmatpush1.bf16.msra.mxu0 %v31
  %55 = vmatprep.subr.bf16.mxu0 0
  %56 = vmatpush2.bf16.msra.mxu0 0
  %57 = vmatprep.subr.bf16.mxu0 0
  %58 = vmatpush2.bf16.msra.mxu0 0
  %59 = vmatprep.subr.bf16.mxu0 0
  %60 = vmatpush2.bf16.msra.mxu0 0
  %61 = vmatprep.subr.bf16.mxu0 0
  %62 = vmatpush2.bf16.msra.mxu0 0
  %63 = vmatprep.subr.bf16.mxu0 0
  %64 = vmatpush2.bf16.msra.mxu0 0
  %65 = vmatprep.subr.bf16.mxu0 0
  %66 = vmatpush2.bf16.msra.mxu0 0
  %67 = vmatprep.subr.bf16.mxu0 0
  %68 = vmatpush2.bf16.msra.mxu0 0
  %69 = vmatprep.subr.bf16.mxu0 0
  %70 = vmatpush2.bf16.msra.mxu0 0
  %71 = vmatprep.mubr.bf16.mxu0 0
  %72 = vmatmul.mubr.bf16.gmra.mxu0 %v37
  %v73 = vpop.f32.mrf.mxu0
  %v74 = vadd.f32 0.0, %v73
  %v75 = vpop.f32.mrf.mxu0
  %v76 = vpop.f32.mrf.mxu0
  %v77 = vadd.f32 0.0, %v76
  %v78 = vpop.f32.mrf.mxu0
  %79 = vdwg.mxu0
  %v80 = vpack.c.bf16 %v77, %v74
  %v82 = vunpack.c.l.b16 %v80
  %v83 = vunpack.c.h.b16 %v80
  %v84 = vpack.c.b16 %v82, %v82
  %v85 = vpack.c.b16 %v83, %v83
  %vm88 = vcmask 781312
  %89 = vst.msk [vmem:[%s2] sm:$0xf] %vm88, %v84
  %90 = vst.msk [vmem:[%s2 + $0x4] sm:$0xf] %vm88, %v85
  // Predicated region
  $region10: #{decoder_forward.18} parent=0 // pred_check
    _
  $region11: #{decoder_forward.18} parent=0 // pred_check_branch
    %92 = sbr.rel (0) target = $region13
  $region12: #{decoder_forward.18} parent=0 // pred_region
    _
  $region13: #{decoder_forward.18} parent=0 // pred_fallthru
    _
  // Predicated region
  $region14: #{decoder_forward.18} parent=0 // pred_check
    _
  $region15: #{decoder_forward.18} parent=0 // pred_check_branch
    %94 = sbr.rel (0) target = $region17
  $region16: #{decoder_forward.18} parent=0 // pred_region
    _
  $region17: #{decoder_forward.18} parent=0 // pred_fallthru
    _

// kernel: decoder_forward.19
$region0: #{decoder_forward.19}
  #allocation0 [shape = 'u32[]', space=smem, size = 0x4, offset = 0x4, fixed_abs, tag = 'smem constant byte address 0x4 - core index']
  #allocation1 [shape = 'u32[144,128]{1,0:T(1,128)}', space=vmem, size = 0x12000, scoped, tag = 'internal scratch']
  %s0 = inlined_call_operand.vmem [shape: bf16[2,8,96], index: 0, kind: input, shape index: {}, may-alias: {0,1}]
  %s1 = inlined_call_operand.vmem [shape: bf16[2,8,96], index: 1, kind: input, shape index: {}, may-alias: {0,1}]
  %s2 = inlined_call_operand.vmem [shape: s32[2,1,8], index: 2, kind: input, shape index: {}]
  %s3 = inlined_call_operand.vmem [shape: bf16[2,8,32], index: 3, kind: output, shape index: {}]
  %s4 = sld [smem:[#allocation0]]
  $region45: #{decoder_forward.19} parent=0
    _
  %s6 = ssub.s32 1, %s4
  %s7 = scalar_select 0, %s6, %s4
  loop: start=0, step=1, limit=4
  $region2: #{decoder_forward.19} parent=0 // loop_pre_header
    _
  $region3: #{decoder_forward.19} parent=0 // loop_header
    %s9 = sphi 0, %s13
    %p10 = scmp.ge.s32.totalorder %s9, 4
    %s16 = sphi 0, %s28
    %s17 = sphi 0, %s24
    %s18 = sphi 0, %s16
    %s19 = sphi 0, %s17
    %s20 = sphi 0, %s18
    %s21 = sphi 0, %s19
    %s33 = sphi 0, %s35
    %s36 = sphi 0, %s33
    %s37 = sphi 0, %s36
    %s53 = sphi 0, %s37
    %s59 = sphi 0, %s61
    %s62 = sphi 0, %s59
    %s63 = sphi 0, %s62
    %s79 = sphi 0, %s63
    %s85 = sphi 0, %s87
    %s88 = sphi 0, %s85
    %s89 = sphi 0, %s88
    %s105 = sphi 0, %s89
    %s113 = sphi 0, %s115
    %s116 = sphi 0, %s113
    %s117 = sphi 0, %s116
    %s133 = sphi 0, %s117
  $region4: #{decoder_forward.19} parent=0 // loop_header_branch
    %12 = sbr.rel (%p10) target = $region8
  $region5: #{decoder_forward.19} parent=0 // loop_body
    %s14 = ssub.s32 %s9, 1
    %s15 = ssub.s32 %s9, 2
    %s22 = sadd.s32 1, %s17
    %p23 = scmp.ge.s32.totalorder %s22, 1
    %s24 = scalar_select %p23, 0, %s22
    %s25 = sadd.s32 1, %s16
    %s26 = scalar_select %p23, %s25, %s16
    %p27 = scmp.ge.s32.totalorder %s26, 2
    %s28 = scalar_select %p27, 0, %s26
    %s29 = ssub.s32 %s16, %s28
    %s30 = ssub.s32 %s17, %s24
    %s31 = sor.u32 %s29, %s30
    %p32 = scmp.eq.s32.totalorder %s31, 0
    %s34 = sadd.s32 %s33, 1
    %s35 = scalar_select %p32, %s33, %s34
    %p38 = pneg %p32
    %p39 = scmp.eq.s32.totalorder %s9, 1
    %p40 = por %p38, %p39
    %p41 = scmp.ne.s32.totalorder %s33, %s36
    %p42 = scmp.eq.s32.totalorder %s9, 0
    %p43 = por %p41, %p42
    %p44 = scmp.ne.s32.totalorder %s33, %s36
    %p45 = scmp.eq.s32.totalorder %s14, 1
    %p46 = por %p44, %p45
    %p47 = scmp.ne.s32.totalorder %s36, %s37
    %p48 = scmp.eq.s32.totalorder %s14, 0
    %p49 = por %p47, %p48
    %p50 = scmp.ne.s32.totalorder %s36, %s37
    %p51 = scmp.eq.s32.totalorder %s15, 1
    %p52 = por %p50, %p51
    %p54 = scmp.ne.s32.totalorder %s37, %s53
    %p55 = scmp.eq.s32.totalorder %s15, 0
    %p56 = por %p54, %p55
    %s57 = ssub.s32 %s16, %s28
    %p58 = scmp.eq.s32.totalorder %s57, 0
    %s60 = sadd.s32 %s59, 1
    %s61 = scalar_select %p58, %s59, %s60
    %p64 = pneg %p58
    %p65 = scmp.eq.s32.totalorder %s9, 1
    %p66 = por %p64, %p65
    %p67 = scmp.ne.s32.totalorder %s59, %s62
    %p68 = scmp.eq.s32.totalorder %s9, 0
    %p69 = por %p67, %p68
    %p70 = scmp.ne.s32.totalorder %s59, %s62
    %p71 = scmp.eq.s32.totalorder %s14, 1
    %p72 = por %p70, %p71
    %p73 = scmp.ne.s32.totalorder %s62, %s63
    %p74 = scmp.eq.s32.totalorder %s14, 0
    %p75 = por %p73, %p74
    %p76 = scmp.ne.s32.totalorder %s62, %s63
    %p77 = scmp.eq.s32.totalorder %s15, 1
    %p78 = por %p76, %p77
    %p80 = scmp.ne.s32.totalorder %s63, %s79
    %p81 = scmp.eq.s32.totalorder %s15, 0
    %p82 = por %p80, %p81
    %s83 = ssub.s32 %s16, %s28
    %p84 = scmp.eq.s32.totalorder %s83, 0
    %s86 = sadd.s32 %s85, 1
    %s87 = scalar_select %p84, %s85, %s86
    %p90 = pneg %p84
    %p91 = scmp.eq.s32.totalorder %s9, 1
    %p92 = por %p90, %p91
    %p93 = scmp.ne.s32.totalorder %s85, %s88
    %p94 = scmp.eq.s32.totalorder %s9, 0
    %p95 = por %p93, %p94
    %p96 = scmp.ne.s32.totalorder %s85, %s88
    %p97 = scmp.eq.s32.totalorder %s14, 1
    %p98 = por %p96, %p97
    %p99 = scmp.ne.s32.totalorder %s88, %s89
    %p100 = scmp.eq.s32.totalorder %s14, 0
    %p101 = por %p99, %p100
    %p102 = scmp.ne.s32.totalorder %s88, %s89
    %p103 = scmp.eq.s32.totalorder %s15, 1
    %p104 = por %p102, %p103
    %p106 = scmp.ne.s32.totalorder %s89, %s105
    %p107 = scmp.eq.s32.totalorder %s15, 0
    %p108 = por %p106, %p107
    %s109 = ssub.s32 %s16, %s28
    %s110 = ssub.s32 %s17, %s24
    %s111 = sor.u32 %s109, %s110
    %p112 = scmp.eq.s32.totalorder %s111, 0
    %s114 = sadd.s32 %s113, 1
    %s115 = scalar_select %p112, %s113, %s114
    %p118 = pneg %p112
    %p119 = scmp.eq.s32.totalorder %s9, 1
    %p120 = por %p118, %p119
    %p121 = scmp.ne.s32.totalorder %s113, %s116
    %p122 = scmp.eq.s32.totalorder %s9, 0
    %p123 = por %p121, %p122
    %p124 = scmp.ne.s32.totalorder %s113, %s116
    %p125 = scmp.eq.s32.totalorder %s14, 1
    %p126 = por %p124, %p125
    %p127 = scmp.ne.s32.totalorder %s116, %s117
    %p128 = scmp.eq.s32.totalorder %s14, 0
    %p129 = por %p127, %p128
    %p130 = scmp.ne.s32.totalorder %s116, %s117
    %p131 = scmp.eq.s32.totalorder %s15, 1
    %p132 = por %p130, %p131
    %p134 = scmp.ne.s32.totalorder %s117, %s133
    %p135 = scmp.eq.s32.totalorder %s15, 0
    %p136 = por %p134, %p135
    %p137 = scmp.le.s32.totalorder 1, %s9
    %p138 = scmp.lt.s32.totalorder %s9, 3
    %p139 = pnand %p137, %p138
    %p140 = pneg %p139
    // Predicated region
    $region9: #{decoder_forward.19} parent=5 // pred_check
      _
    $region10: #{decoder_forward.19} parent=5 // pred_check_branch
      %142 = sbr.rel (%p139) target = $region12
    $region11: #{decoder_forward.19} parent=5 // pred_region
      %s143 = ssub.s32 %s9, 1
    $region12: #{decoder_forward.19} parent=5 // pred_fallthru
      _
    %p144 = scmp.lt.s32.totalorder %s9, 2
    // Predicated region
    $region13: #{decoder_forward.19} parent=5 // pred_check
      %p145 = pneg %p144
    $region14: #{decoder_forward.19} parent=5 // pred_check_branch
      %147 = sbr.rel (%p145) target = $region16
    $region15: #{decoder_forward.19} parent=5 // pred_region
      // Predicated region
      $region17: #{decoder_forward.19} parent=15 // pred_check
        %p148 = pneg %p43
      $region18: #{decoder_forward.19} parent=15 // pred_check_branch
        %150 = sbr.rel (%p148) target = $region20
      $region19: #{decoder_forward.19} parent=15 // pred_region
        %p151 = scmp.lt.s32.totalorder %s16, 1
        %s152 = scalar_select %p151, %s16, 1
        %p153 = scmp.lt.s32.totalorder %s17, 0
        %s154 = scalar_select %p153, %s17, 0
        %s155 = sadd.s32 %s154, %s152
        %s156 = smul.addr %s155, 4
        %s157 = scalar_lea.vmem %s0, %s156
      $region20: #{decoder_forward.19} parent=15 // pred_fallthru
        _
      // Predicated region
      $region21: #{decoder_forward.19} parent=15 // pred_check
        %p158 = pneg %p69
      $region22: #{decoder_forward.19} parent=15 // pred_check_branch
        %160 = sbr.rel (%p158) target = $region24
      $region23: #{decoder_forward.19} parent=15 // pred_region
        %p161 = scmp.lt.s32.totalorder %s16, 1
        %s162 = scalar_select %p161, %s16, 1
        %s163 = smul.addr %s162, 4
        %s164 = scalar_lea.vmem %s1, %s163
      $region24: #{decoder_forward.19} parent=15 // pred_fallthru
        _
      // Predicated region
      $region25: #{decoder_forward.19} parent=15 // pred_check
        %p165 = pneg %p95
      $region26: #{decoder_forward.19} parent=15 // pred_check_branch
        %167 = sbr.rel (%p165) target = $region28
      $region27: #{decoder_forward.19} parent=15 // pred_region
        %p168 = scmp.lt.s32.totalorder %s16, 1
        %s169 = scalar_select %p168, %s16, 1
        %s170 = scalar_lea.vmem %s2, %s169
      $region28: #{decoder_forward.19} parent=15 // pred_fallthru
        _
    $region16: #{decoder_forward.19} parent=5 // pred_fallthru
      _
    %p171 = scmp.le.s32.totalorder 1, %s9
    %p172 = scmp.lt.s32.totalorder %s9, 3
    %p173 = pnand %p171, %p172
    %p174 = pneg %p173
    // Predicated region
    $region29: #{decoder_forward.19} parent=5 // pred_check
      _
    $region30: #{decoder_forward.19} parent=5 // pred_check_branch
      %176 = sbr.rel (%p173) target = $region32
    $region31: #{decoder_forward.19} parent=5 // pred_region
      %s177 = ssub.s32 %s9, 1
      %p178 = scmp.lt.s32.totalorder %s18, 1
      %s179 = scalar_select %p178, %s18, 1
      %p180 = scmp.lt.s32.totalorder %s19, 0
      %s181 = scalar_select %p180, %s19, 0
      %s182 = sadd.s32 %s181, %s179
      %s183 = smul.addr %s182, 4
      %s184 = scalar_lea.vmem %s0, %s183
      %p185 = pneg %p49
      %p186 = pneg %p46
      %p187 = scmp.lt.s32.totalorder %s18, 1
      %s188 = scalar_select %p187, %s18, 1
      %s189 = smul.addr %s188, 4
      %s190 = scalar_lea.vmem %s1, %s189
      %p191 = pneg %p75
      %p192 = pneg %p72
      %p193 = scmp.lt.s32.totalorder %s18, 1
      %s194 = scalar_select %p193, %s18, 1
      %s195 = scalar_lea.vmem %s2, %s194
      %p196 = pneg %p101
      %p197 = pneg %p98
      %p198 = pneg %p129
      %p199 = pneg %p126
      %p200 = scmp.lt.s32.totalorder %s18, 1
      %s201 = scalar_select %p200, %s18, 1
      %p202 = scmp.lt.s32.totalorder %s19, 0
      %s203 = scalar_select %p202, %s19, 0
      %s204 = sadd.s32 %s203, %s201
      %s205 = smul.addr %s204, 4
      %s206 = scalar_lea.vmem %s3, %s205
      %p207 = scmp.lt.s32.totalorder %s18, 1
      %s208 = scalar_select %p207, %s18, 1
      %p209 = scmp.lt.s32.totalorder %s19, 0
      %s210 = scalar_select %p209, %s19, 0
      %s211 = sadd.s32 %s210, %s208
      %s212 = smul.addr %s211, 4
      %s213 = scalar_lea.vmem %s0, %s212
      %p214 = scmp.lt.s32.totalorder %s18, 1
      %s215 = scalar_select %p214, %s18, 1
      %s216 = smul.addr %s215, 4
      %s217 = scalar_lea.vmem %s1, %s216
      %p218 = scmp.lt.s32.totalorder %s18, 1
      %s219 = scalar_select %p218, %s18, 1
      %s220 = scalar_lea.vmem %s2, %s219
      %p221 = scmp.lt.s32.totalorder %s18, 1
      %s222 = scalar_select %p221, %s18, 1
      %p223 = scmp.lt.s32.totalorder %s19, 0
      %s224 = scalar_select %p223, %s19, 0
      %s225 = sadd.s32 %s224, %s222
      %s226 = smul.addr %s225, 4
      %s227 = scalar_lea.vmem %s3, %s226
      %v229 = vld [vmem:[%s220] sm:$0x1]
      %v230 = vlaneseq
      %v231 = vshrl.u32 %v230, 7
      %s232 = smul.u32 %s19, 8
      %v233 = vstv %s232
      %v234 = vadd.s32 %v231, %v233
      %v235 = vlaneseq
      %v236 = vand.u32 %v235, 127
      %vm237 = vcmp.ne.s32.totalorder %v229, 0
      %vm238 = vcmp.le.s32.totalorder %v236, %v234
      %v239 = vsel %vm237, 1, 0
      %v240 = vlaneseq
      %v241 = vshrl.u32 %v240, 7
      %v242 = vsub.s32 0, %v241
      %v243 = vrot.slane %v239, %v242
      %vm244 = vcmp.eq.s32.totalorder %v243, 1
      %vm245 = vmand %vm244, %vm238
      %v246 = vld [vmem:[%s213] sm:$0xf]
      %v247 = vld [vmem:[%s217] sm:$0xf]
      %v249 = vunpack.c.l.b16 %v247
      %v250 = vpack.c.b16 %v249, %v249
      %251 = vrot.lane.b32.xlu0 %v250, 96
      %v252 = vpop.permute.xlu0 %251
      %vm253 = vcmask 64512
      %v255 = vsel %vm253, %v246, 0
      %v258 = vsel %vm253, %v252, 0
      %260 = vmatprep.subr.bf16.mxu0 0
      %261 = vmatpush1.bf16.xpose.msra.mxu0 0
      %262 = vmatprep.subr.bf16.mxu0 0
      %263 = vmatpush1.bf16.xpose.msra.mxu0 0
      %264 = vmatprep.subr.bf16.mxu0 0
      %265 = vmatpush1.bf16.xpose.msra.mxu0 0
      %266 = vmatprep.subr.bf16.mxu0 0
      %267 = vmatpush1.bf16.xpose.msra.mxu0 0
      %268 = vmatprep.subr.bf16.mxu0 0
      %269 = vmatpush1.bf16.xpose.msra.mxu0 0
      %270 = vmatprep.subr.bf16.mxu0 0
      %271 = vmatpush1.bf16.xpose.msra.mxu0 0
      %272 = vmatprep.subr.bf16.mxu0 0
      %273 = vmatpush1.bf16.xpose.msra.mxu0 0
      %274 = vmatprep.subr.bf16.mxu0 0
      %275 = vmatpush1.bf16.xpose.msra.mxu0 %v258
      %276 = vmatprep.subr.bf16.mxu0 0
      %277 = vmatpush2.bf16.xpose.msra.mxu0 0
      %278 = vmatprep.subr.bf16.mxu0 0
      %279 = vmatpush2.bf16.xpose.msra.mxu0 0
      %280 = vmatprep.subr.bf16.mxu0 0
      %281 = vmatpush2.bf16.xpose.msra.mxu0 0
      %282 = vmatprep.subr.bf16.mxu0 0
      %283 = vmatpush2.bf16.xpose.msra.mxu0 0
      %284 = vmatprep.subr.bf16.mxu0 0
      %285 = vmatpush2.bf16.xpose.msra.mxu0 0
      %286 = vmatprep.subr.bf16.mxu0 0
      %287 = vmatpush2.bf16.xpose.msra.mxu0 0
      %288 = vmatprep.subr.bf16.mxu0 0
      %289 = vmatpush2.bf16.xpose.msra.mxu0 0
      %290 = vmatprep.subr.bf16.mxu0 0
      %291 = vmatpush2.bf16.xpose.msra.mxu0 0
      %292 = vmatprep.mubr.bf16.mxu0 0
      %293 = vmatmul.mubr.bf16.gmra.mxu0 %v255
      %v294 = vpop.f32.mrf.mxu0
      %v295 = vadd.f32 0.0, %v294
      %v296 = vpop.f32.mrf.mxu0
      %v297 = vpop.f32.mrf.mxu0
      %v298 = vpop.f32.mrf.mxu0
      %299 = vdwg.mxu0
      %v300 = vsel %vm245, %v295, -1e+09
      %v301 = vsel %vm253, %v300, -inf
      %302 = vmax.xlane.f32.xlu0 %v301
      %v303 = vpop.xlane.xlu0 %302
      %v304 = vsub.f32 %v300, %v303
      %v305 = vmul.f32 %v304, 1.442695
      %v306 = vpow.pop %v305
      %v307 = vsel %vm253, %v306, 0.0
      %308 = vadd.xlane.f32.xlu0 %v307
      %v309 = vpop.xlane.xlu0 %308
      %v310 = vrcp.pop %v309
      %v311 = vmul.f32 %v306, %v310
      %v312 = vpack.c.bf16 %v311, %v311
      %313 = vrot.lane.b32.xlu0 %v250, 64
      %v314 = vpop.permute.xlu0 %313
      %v316 = vsel %vm253, %v312, 0
      %vm318 = vcmask 1043456
      %v320 = vsel %vm318, %v314, 0
      %322 = vmatprep.subr.bf16.mxu0 0
      %323 = vmatpush1.bf16.msra.mxu0 0
      %324 = vmatprep.subr.bf16.mxu0 0
      %325 = vmatpush1.bf16.msra.mxu0 0
      %326 = vmatprep.subr.bf16.mxu0 0
      %327 = vmatpush1.bf16.msra.mxu0 0
      %328 = vmatprep.subr.bf16.mxu0 0
      %329 = vmatpush1.bf16.msra.mxu0 0
      %330 = vmatprep.subr.bf16.mxu0 0
      %331 = vmatpush1.bf16.msra.mxu0 0
      %332 = vmatprep.subr.bf16.mxu0 0
      %333 = vmatpush1.bf16.msra.mxu0 0
      %334 = vmatprep.subr.bf16.mxu0 0
      %335 = vmatpush1.bf16.msra.mxu0 0
      %336 = vmatprep.subr.bf16.mxu0 0
      %337 = vmatpush1.bf16.msra.mxu0 %v320
      %338 = vmatprep.subr.bf16.mxu0 0
      %339 = vmatpush2.bf16.msra.mxu0 0
      %340 = vmatprep.subr.bf16.mxu0 0
      %341 = vmatpush2.bf16.msra.mxu0 0
      %342 = vmatprep.subr.bf16.mxu0 0
      %343 = vmatpush2.bf16.msra.mxu0 0
      %344 = vmatprep.subr.bf16.mxu0 0
      %345 = vmatpush2.bf16.msra.mxu0 0
      %346 = vmatprep.subr.bf16.mxu0 0
      %347 = vmatpush2.bf16.msra.mxu0 0
      %348 = vmatprep.subr.bf16.mxu0 0
      %349 = vmatpush2.bf16.msra.mxu0 0
      %350 = vmatprep.subr.bf16.mxu0 0
      %351 = vmatpush2.bf16.msra.mxu0 0
      %352 = vmatprep.subr.bf16.mxu0 0
      %353 = vmatpush2.bf16.msra.mxu0 0
      %354 = vmatprep.mubr.bf16.mxu0 0
      %355 = vmatmul.mubr.bf16.gmra.mxu0 %v316
      %v356 = vpop.f32.mrf.mxu0
      %v357 = vadd.f32 0.0, %v356
      %v358 = vpop.f32.mrf.mxu0
      %v359 = vpop.f32.mrf.mxu0
      %v360 = vpop.f32.mrf.mxu0
      %361 = vdwg.mxu0
      %v363 = vunpack.c.l.b16 %v246
      %v364 = vpack.c.b16 %v363, %v363
      %365 = vrot.lane.b32.xlu0 %v364, 120
      %v366 = vpop.permute.xlu0 %365
      %367 = vrot.lane.b32.xlu0 %v250, 88
      %v368 = vpop.permute.xlu0 %367
      %v370 = vsel %vm253, %v366, 0
      %v373 = vsel %vm253, %v368, 0
      %375 = vmatprep.subr.bf16.mxu0 0
      %376 = vmatpush1.bf16.xpose.msra.mxu0 0
      %377 = vmatprep.subr.bf16.mxu0 0
      %378 = vmatpush1.bf16.xpose.msra.mxu0 0
      %379 = vmatprep.subr.bf16.mxu0 0
      %380 = vmatpush1.bf16.xpose.msra.mxu0 0
      %381 = vmatprep.subr.bf16.mxu0 0
      %382 = vmatpush1.bf16.xpose.msra.mxu0 0
      %383 = vmatprep.subr.bf16.mxu0 0
      %384 = vmatpush1.bf16.xpose.msra.mxu0 0
      %385 = vmatprep.subr.bf16.mxu0 0
      %386 = vmatpush1.bf16.xpose.msra.mxu0 0
      %387 = vmatprep.subr.bf16.mxu0 0
      %388 = vmatpush1.bf16.xpose.msra.mxu0 0
      %389 = vmatprep.subr.bf16.mxu0 0
      %390 = vmatpush1.bf16.xpose.msra.mxu0 %v373
      %391 = vmatprep.subr.bf16.mxu0 0
      %392 = vmatpush2.bf16.xpose.msra.mxu0 0
      %393 = vmatprep.subr.bf16.mxu0 0
      %394 = vmatpush2.bf16.xpose.msra.mxu0 0
      %395 = vmatprep.subr.bf16.mxu0 0
      %396 = vmatpush2.bf16.xpose.msra.mxu0 0
      %397 = vmatprep.subr.bf16.mxu0 0
      %398 = vmatpush2.bf16.xpose.msra.mxu0 0
      %399 = vmatprep.subr.bf16.mxu0 0
      %400 = vmatpush2.bf16.xpose.msra.mxu0 0
      %401 = vmatprep.subr.bf16.mxu0 0
      %402 = vmatpush2.bf16.xpose.msra.mxu0 0
      %403 = vmatprep.subr.bf16.mxu0 0
      %404 = vmatpush2.bf16.xpose.msra.mxu0 0
      %405 = vmatprep.subr.bf16.mxu0 0
      %406 = vmatpush2.bf16.xpose.msra.mxu0 0
      %407 = vmatprep.mubr.bf16.mxu0 0
      %408 = vmatmul.mubr.bf16.gmra.mxu0 %v370
      %v409 = vpop.f32.mrf.mxu0
      %v410 = vadd.f32 0.0, %v409
      %v411 = vpop.f32.mrf.mxu0
      %v412 = vpop.f32.mrf.mxu0
      %v413 = vpop.f32.mrf.mxu0
      %414 = vdwg.mxu0
      %v415 = vsel %vm245, %v410, -1e+09
      %v416 = vsel %vm253, %v415, -inf
      %417 = vmax.xlane.f32.xlu0 %v416
      %v418 = vpop.xlane.xlu0 %417
      %v419 = vsub.f32 %v415, %v418
      %v420 = vmul.f32 %v419, 1.442695
      %v421 = vpow.pop %v420
      %v422 = vsel %vm253, %v421, 0.0
      %423 = vadd.xlane.f32.xlu0 %v422
      %v424 = vpop.xlane.xlu0 %423
      %v425 = vrcp.pop %v424
      %v426 = vmul.f32 %v421, %v425
      %v427 = vpack.c.bf16 %v426, %v426
      %428 = vrot.lane.b32.xlu0 %v250, 56
      %v429 = vpop.permute.xlu0 %428
      %v431 = vsel %vm253, %v427, 0
      %v434 = vsel %vm318, %v429, 0
      %436 = vmatprep.subr.bf16.mxu0 0
      %437 = vmatpush1.bf16.msra.mxu0 0
      %438 = vmatprep.subr.bf16.mxu0 0
      %439 = vmatpush1.bf16.msra.mxu0 0
      %440 = vmatprep.subr.bf16.mxu0 0
      %441 = vmatpush1.bf16.msra.mxu0 0
      %442 = vmatprep.subr.bf16.mxu0 0
      %443 = vmatpush1.bf16.msra.mxu0 0
      %444 = vmatprep.subr.bf16.mxu0 0
      %445 = vmatpush1.bf16.msra.mxu0 0
      %446 = vmatprep.subr.bf16.mxu0 0
      %447 = vmatpush1.bf16.msra.mxu0 0
      %448 = vmatprep.subr.bf16.mxu0 0
      %449 = vmatpush1.bf16.msra.mxu0 0
      %450 = vmatprep.subr.bf16.mxu0 0
      %451 = vmatpush1.bf16.msra.mxu0 %v434
      %452 = vmatprep.subr.bf16.mxu0 0
      %453 = vmatpush2.bf16.msra.mxu0 0
      %454 = vmatprep.subr.bf16.mxu0 0
      %455 = vmatpush2.bf16.msra.mxu0 0
      %456 = vmatprep.subr.bf16.mxu0 0
      %457 = vmatpush2.bf16.msra.mxu0 0
      %458 = vmatprep.subr.bf16.mxu0 0
      %459 = vmatpush2.bf16.msra.mxu0 0
      %460 = vmatprep.subr.bf16.mxu0 0
      %461 = vmatpush2.bf16.msra.mxu0 0
      %462 = vmatprep.subr.bf16.mxu0 0
      %463 = vmatpush2.bf16.msra.mxu0 0
      %464 = vmatprep.subr.bf16.mxu0 0
      %465 = vmatpush2.bf16.msra.mxu0 0
      %466 = vmatprep.subr.bf16.mxu0 0
      %467 = vmatpush2.bf16.msra.mxu0 0
      %468 = vmatprep.mubr.bf16.mxu0 0
      %469 = vmatmul.mubr.bf16.gmra.mxu0 %v431
      %v470 = vpop.f32.mrf.mxu0
      %v471 = vadd.f32 0.0, %v470
      %v472 = vpop.f32.mrf.mxu0
      %v473 = vpop.f32.mrf.mxu0
      %v474 = vpop.f32.mrf.mxu0
      %475 = vdwg.mxu0
      %476 = vrot.lane.b32.xlu0 %v364, 112
      %v477 = vpop.permute.xlu0 %476
      %478 = vrot.lane.b32.xlu0 %v250, 80
      %v479 = vpop.permute.xlu0 %478
      %v481 = vsel %vm253, %v477, 0
      %v484 = vsel %vm253, %v479, 0
      %486 = vmatprep.subr.bf16.mxu0 0
      %487 = vmatpush1.bf16.xpose.msra.mxu0 0
      %488 = vmatprep.subr.bf16.mxu0 0
      %489 = vmatpush1.bf16.xpose.msra.mxu0 0
      %490 = vmatprep.subr.bf16.mxu0 0
      %491 = vmatpush1.bf16.xpose.msra.mxu0 0
      %492 = vmatprep.subr.bf16.mxu0 0
      %493 = vmatpush1.bf16.xpose.msra.mxu0 0
      %494 = vmatprep.subr.bf16.mxu0 0
      %495 = vmatpush1.bf16.xpose.msra.mxu0 0
      %496 = vmatprep.subr.bf16.mxu0 0
      %497 = vmatpush1.bf16.xpose.msra.mxu0 0
      %498 = vmatprep.subr.bf16.mxu0 0
      %499 = vmatpush1.bf16.xpose.msra.mxu0 0
      %500 = vmatprep.subr.bf16.mxu0 0
      %501 = vmatpush1.bf16.xpose.msra.mxu0 %v484
      %502 = vmatprep.subr.bf16.mxu0 0
      %503 = vmatpush2.bf16.xpose.msra.mxu0 0
      %504 = vmatprep.subr.bf16.mxu0 0
      %505 = vmatpush2.bf16.xpose.msra.mxu0 0
      %506 = vmatprep.subr.bf16.mxu0 0
      %507 = vmatpush2.bf16.xpose.msra.mxu0 0
      %508 = vmatprep.subr.bf16.mxu0 0
      %509 = vmatpush2.bf16.xpose.msra.mxu0 0
      %510 = vmatprep.subr.bf16.mxu0 0
      %511 = vmatpush2.bf16.xpose.msra.mxu0 0
      %512 = vmatprep.subr.bf16.mxu0 0
      %513 = vmatpush2.bf16.xpose.msra.mxu0 0
      %514 = vmatprep.subr.bf16.mxu0 0
      %515 = vmatpush2.bf16.xpose.msra.mxu0 0
      %516 = vmatprep.subr.bf16.mxu0 0
      %517 = vmatpush2.bf16.xpose.msra.mxu0 0
      %518 = vmatprep.mubr.bf16.mxu0 0
      %519 = vmatmul.mubr.bf16.gmra.mxu0 %v481
      %v520 = vpop.f32.mrf.mxu0
      %v521 = vadd.f32 0.0, %v520
      %v522 = vpop.f32.mrf.mxu0
      %v523 = vpop.f32.mrf.mxu0
      %v524 = vpop.f32.mrf.mxu0
      %525 = vdwg.mxu0
      %v526 = vsel %vm245, %v521, -1e+09
      %v527 = vsel %vm253, %v526, -inf
      %528 = vmax.xlane.f32.xlu0 %v527
      %v529 = vpop.xlane.xlu0 %528
      %v530 = vsub.f32 %v526, %v529
      %v531 = vmul.f32 %v530, 1.442695
      %v532 = vpow.pop %v531
      %v533 = vsel %vm253, %v532, 0.0
      %534 = vadd.xlane.f32.xlu0 %v533
      %v535 = vpop.xlane.xlu0 %534
      %v536 = vrcp.pop %v535
      %v537 = vmul.f32 %v532, %v536
      %v538 = vpack.c.bf16 %v537, %v537
      %539 = vrot.lane.b32.xlu0 %v250, 48
      %v540 = vpop.permute.xlu0 %539
      %v542 = vsel %vm253, %v538, 0
      %v545 = vsel %vm318, %v540, 0
      %547 = vmatprep.subr.bf16.mxu0 0
      %548 = vmatpush1.bf16.msra.mxu0 0
      %549 = vmatprep.subr.bf16.mxu0 0
      %550 = vmatpush1.bf16.msra.mxu0 0
      %551 = vmatprep.subr.bf16.mxu0 0
      %552 = vmatpush1.bf16.msra.mxu0 0
      %553 = vmatprep.subr.bf16.mxu0 0
      %554 = vmatpush1.bf16.msra.mxu0 0
      %555 = vmatprep.subr.bf16.mxu0 0
      %556 = vmatpush1.bf16.msra.mxu0 0
      %557 = vmatprep.subr.bf16.mxu0 0
      %558 = vmatpush1.bf16.msra.mxu0 0
      %559 = vmatprep.subr.bf16.mxu0 0
      %560 = vmatpush1.bf16.msra.mxu0 0
      %561 = vmatprep.subr.bf16.mxu0 0
      %562 = vmatpush1.bf16.msra.mxu0 %v545
      %563 = vmatprep.subr.bf16.mxu0 0
      %564 = vmatpush2.bf16.msra.mxu0 0
      %565 = vmatprep.subr.bf16.mxu0 0
      %566 = vmatpush2.bf16.msra.mxu0 0
      %567 = vmatprep.subr.bf16.mxu0 0
      %568 = vmatpush2.bf16.msra.mxu0 0
      %569 = vmatprep.subr.bf16.mxu0 0
      %570 = vmatpush2.bf16.msra.mxu0 0
      %571 = vmatprep.subr.bf16.mxu0 0
      %572 = vmatpush2.bf16.msra.mxu0 0
      %573 = vmatprep.subr.bf16.mxu0 0
      %574 = vmatpush2.bf16.msra.mxu0 0
      %575 = vmatprep.subr.bf16.mxu0 0
      %576 = vmatpush2.bf16.msra.mxu0 0
      %577 = vmatprep.subr.bf16.mxu0 0
      %578 = vmatpush2.bf16.msra.mxu0 0
      %579 = vmatprep.mubr.bf16.mxu0 0
      %580 = vmatmul.mubr.bf16.gmra.mxu0 %v542
      %v581 = vpop.f32.mrf.mxu0
      %v582 = vadd.f32 0.0, %v581
      %v583 = vpop.f32.mrf.mxu0
      %v584 = vpop.f32.mrf.mxu0
      %v585 = vpop.f32.mrf.mxu0
      %586 = vdwg.mxu0
      %587 = vrot.lane.b32.xlu0 %v364, 104
      %v588 = vpop.permute.xlu0 %587
      %589 = vrot.lane.b32.xlu0 %v250, 72
      %v590 = vpop.permute.xlu0 %589
      %v592 = vsel %vm253, %v588, 0
      %v595 = vsel %vm253, %v590, 0
      %597 = vmatprep.subr.bf16.mxu0 0
      %598 = vmatpush1.bf16.xpose.msra.mxu0 0
      %599 = vmatprep.subr.bf16.mxu0 0
      %600 = vmatpush1.bf16.xpose.msra.mxu0 0
      %601 = vmatprep.subr.bf16.mxu0 0
      %602 = vmatpush1.bf16.xpose.msra.mxu0 0
      %603 = vmatprep.subr.bf16.mxu0 0
      %604 = vmatpush1.bf16.xpose.msra.mxu0 0
      %605 = vmatprep.subr.bf16.mxu0 0
      %606 = vmatpush1.bf16.xpose.msra.mxu0 0
      %607 = vmatprep.subr.bf16.mxu0 0
      %608 = vmatpush1.bf16.xpose.msra.mxu0 0
      %609 = vmatprep.subr.bf16.mxu0 0
      %610 = vmatpush1.bf16.xpose.msra.mxu0 0
      %611 = vmatprep.subr.bf16.mxu0 0
      %612 = vmatpush1.bf16.xpose.msra.mxu0 %v595
      %613 = vmatprep.subr.bf16.mxu0 0
      %614 = vmatpush2.bf16.xpose.msra.mxu0 0
      %615 = vmatprep.subr.bf16.mxu0 0
      %616 = vmatpush2.bf16.xpose.msra.mxu0 0
      %617 = vmatprep.subr.bf16.mxu0 0
      %618 = vmatpush2.bf16.xpose.msra.mxu0 0
      %619 = vmatprep.subr.bf16.mxu0 0
      %620 = vmatpush2.bf16.xpose.msra.mxu0 0
      %621 = vmatprep.subr.bf16.mxu0 0
      %622 = vmatpush2.bf16.xpose.msra.mxu0 0
      %623 = vmatprep.subr.bf16.mxu0 0
      %624 = vmatpush2.bf16.xpose.msra.mxu0 0
      %625 = vmatprep.subr.bf16.mxu0 0
      %626 = vmatpush2.bf16.xpose.msra.mxu0 0
      %627 = vmatprep.subr.bf16.mxu0 0
      %628 = vmatpush2.bf16.xpose.msra.mxu0 0
      %629 = vmatprep.mubr.bf16.mxu0 0
      %630 = vmatmul.mubr.bf16.gmra.mxu0 %v592
      %v631 = vpop.f32.mrf.mxu0
      %v632 = vadd.f32 0.0, %v631
      %v633 = vpop.f32.mrf.mxu0
      %v634 = vpop.f32.mrf.mxu0
      %v635 = vpop.f32.mrf.mxu0
      %636 = vdwg.mxu0
      %v637 = vsel %vm245, %v632, -1e+09
      %v638 = vsel %vm253, %v637, -inf
      %639 = vmax.xlane.f32.xlu0 %v638
      %v640 = vpop.xlane.xlu0 %639
      %v641 = vsub.f32 %v637, %v640
      %v642 = vmul.f32 %v641, 1.442695
      %v643 = vpow.pop %v642
      %v644 = vsel %vm253, %v643, 0.0
      %645 = vadd.xlane.f32.xlu0 %v644
      %v646 = vpop.xlane.xlu0 %645
      %v647 = vrcp.pop %v646
      %v648 = vmul.f32 %v643, %v647
      %v649 = vpack.c.bf16 %v648, %v648
      %650 = vrot.lane.b32.xlu0 %v250, 40
      %v651 = vpop.permute.xlu0 %650
      %v653 = vsel %vm253, %v649, 0
      %v656 = vsel %vm318, %v651, 0
      %658 = vmatprep.subr.bf16.mxu0 0
      %659 = vmatpush1.bf16.msra.mxu0 0
      %660 = vmatprep.subr.bf16.mxu0 0
      %661 = vmatpush1.bf16.msra.mxu0 0
      %662 = vmatprep.subr.bf16.mxu0 0
      %663 = vmatpush1.bf16.msra.mxu0 0
      %664 = vmatprep.subr.bf16.mxu0 0
      %665 = vmatpush1.bf16.msra.mxu0 0
      %666 = vmatprep.subr.bf16.mxu0 0
      %667 = vmatpush1.bf16.msra.mxu0 0
      %668 = vmatprep.subr.bf16.mxu0 0
      %669 = vmatpush1.bf16.msra.mxu0 0
      %670 = vmatprep.subr.bf16.mxu0 0
      %671 = vmatpush1.bf16.msra.mxu0 0
      %672 = vmatprep.subr.bf16.mxu0 0
      %673 = vmatpush1.bf16.msra.mxu0 %v656
      %674 = vmatprep.subr.bf16.mxu0 0
      %675 = vmatpush2.bf16.msra.mxu0 0
      %676 = vmatprep.subr.bf16.mxu0 0
      %677 = vmatpush2.bf16.msra.mxu0 0
      %678 = vmatprep.subr.bf16.mxu0 0
      %679 = vmatpush2.bf16.msra.mxu0 0
      %680 = vmatprep.subr.bf16.mxu0 0
      %681 = vmatpush2.bf16.msra.mxu0 0
      %682 = vmatprep.subr.bf16.mxu0 0
      %683 = vmatpush2.bf16.msra.mxu0 0
      %684 = vmatprep.subr.bf16.mxu0 0
      %685 = vmatpush2.bf16.msra.mxu0 0
      %686 = vmatprep.subr.bf16.mxu0 0
      %687 = vmatpush2.bf16.msra.mxu0 0
      %688 = vmatprep.subr.bf16.mxu0 0
      %689 = vmatpush2.bf16.msra.mxu0 0
      %690 = vmatprep.mubr.bf16.mxu0 0
      %691 = vmatmul.mubr.bf16.gmra.mxu0 %v653
      %v692 = vpop.f32.mrf.mxu0
      %v693 = vadd.f32 0.0, %v692
      %v694 = vpop.f32.mrf.mxu0
      %v695 = vpop.f32.mrf.mxu0
      %v696 = vpop.f32.mrf.mxu0
      %697 = vdwg.mxu0
      %699 = vrot.lane.b32.xlu0 %v471, 8
      %v700 = vpop.permute.xlu0 %699
      %703 = vrot.lane.b32.xlu0 %v582, 16
      %v704 = vpop.permute.xlu0 %703
      %707 = vrot.lane.b32.xlu0 %v693, 24
      %v708 = vpop.permute.xlu0 %707
      %v710 = vsel %vm253, %v357, %v700
      %vm711 = vcmask 130048
      %v712 = vsel %vm711, %v710, %v704
      %vm713 = vcmask 195584
      %v714 = vsel %vm713, %v712, %v708
      %v715 = vpack.c.bf16 %v714, %v714
      %vm716 = vcmask 257024
      %717 = vst.msk [vmem:[%s227] sm:$0xf] %vm716, %v715
      %p718 = scmp.lt.s32.totalorder %s18, 1
      %s719 = scalar_select %p718, %s18, 1
      %p720 = scmp.lt.s32.totalorder %s19, 0
      %s721 = scalar_select %p720, %s19, 0
      %s722 = sadd.s32 %s721, %s719
      %s723 = smul.addr %s722, 4
      %s724 = scalar_lea.vmem %s3, %s723
      // Predicated region
      $region33: #{decoder_forward.19} parent=31 // pred_check
        %p725 = pneg %p126
      $region34: #{decoder_forward.19} parent=31 // pred_check_branch
        %727 = sbr.rel (%p725) target = $region36
      $region35: #{decoder_forward.19} parent=31 // pred_region
        _
      $region36: #{decoder_forward.19} parent=31 // pred_fallthru
        _
    $region32: #{decoder_forward.19} parent=5 // pred_fallthru
      _
    %p728 = scmp.le.s32.totalorder 2, %s9
    // Predicated region
    $region37: #{decoder_forward.19} parent=5 // pred_check
      %p729 = pneg %p728
    $region38: #{decoder_forward.19} parent=5 // pred_check_branch
      %731 = sbr.rel (%p729) target = $region40
    $region39: #{decoder_forward.19} parent=5 // pred_region
      %s732 = ssub.s32 %s9, 2
      // Predicated region
      $region41: #{decoder_forward.19} parent=39 // pred_check
        %p733 = pneg %p132
      $region42: #{decoder_forward.19} parent=39 // pred_check_branch
        %735 = sbr.rel (%p733) target = $region44
      $region43: #{decoder_forward.19} parent=39 // pred_region
        %p736 = scmp.lt.s32.totalorder %s20, 1
        %s737 = scalar_select %p736, %s20, 1
        %p738 = scmp.lt.s32.totalorder %s21, 0
        %s739 = scalar_select %p738, %s21, 0
        %s740 = sadd.s32 %s739, %s737
        %s741 = smul.addr %s740, 4
        %s742 = scalar_lea.vmem %s3, %s741
      $region44: #{decoder_forward.19} parent=39 // pred_fallthru
        _
    $region40: #{decoder_forward.19} parent=5 // pred_fallthru
      _
  $region6: #{decoder_forward.19} parent=0 // loop_footer
    %s13 = sadd.s32 1, %s9
  $region7: #{decoder_forward.19} parent=0 // loop_footer_branch
    %8 = sbr.rel target = $region3
  $region8: #{decoder_forward.19} parent=0 // loop_exit
    _

// kernel: decoder_forward.22
$region0: #{decoder_forward.22}
  #allocation0 [shape = 'u32[]', space=smem, size = 0x4, offset = 0x4, fixed_abs, tag = 'smem constant byte address 0x4 - core index']
  #allocation1 [shape = 'u32[144,128]{1,0:T(1,128)}', space=vmem, size = 0x12000, scoped, tag = 'internal scratch']
  %s0 = inlined_call_operand.vmem [shape: bf16[16,32], index: 0, kind: input, shape index: {}]
  %s1 = inlined_call_operand.vmem [shape: bf16[32,64], index: 1, kind: input, shape index: {}]
  %s2 = inlined_call_operand.vmem [shape: bf16[16,64], index: 2, kind: output, shape index: {}]
  %s3 = sld [smem:[#allocation0]]
  $region18: #{decoder_forward.22} parent=0
    _
  %s5 = ssub.s32 1, %s3
  %s6 = scalar_select 0, %s5, %s3
  // Predicated region
  $region2: #{decoder_forward.22} parent=0 // pred_check
    _
  $region3: #{decoder_forward.22} parent=0 // pred_check_branch
    %8 = sbr.rel (0) target = $region5
  $region4: #{decoder_forward.22} parent=0 // pred_region
    _
  $region5: #{decoder_forward.22} parent=0 // pred_fallthru
    _
  // Predicated region
  $region6: #{decoder_forward.22} parent=0 // pred_check
    _
  $region7: #{decoder_forward.22} parent=0 // pred_check_branch
    %10 = sbr.rel (0) target = $region9
  $region8: #{decoder_forward.22} parent=0 // pred_region
    _
  $region9: #{decoder_forward.22} parent=0 // pred_fallthru
    _
  %v12 = vld [vmem:[%s0] sm:$0xf]
  %v13 = vld [vmem:[%s0 + $0x4] sm:$0xf]
  %v14 = vld [vmem:[%s1] sm:$0xf]
  %v15 = vld [vmem:[%s1 + $0x4] sm:$0xf]
  %v16 = vld [vmem:[%s1 + $0x8] sm:$0xf]
  %v17 = vld [vmem:[%s1 + $0xc] sm:$0xf]
  %v20 = vunpack.c.l.b16 %v12
  %v21 = vunpack.c.l.b16 %v13
  %v22 = vpack.c.b16 %v21, %v20
  %v27 = vunpack.c.l.b16 %v14
  %v28 = vunpack.c.l.b16 %v15
  %v29 = vunpack.c.l.b16 %v16
  %v30 = vunpack.c.l.b16 %v17
  %v31 = vpack.c.b16 %v28, %v27
  %v32 = vpack.c.b16 %v30, %v29
  %vm35 = vcmask 261120
  %v37 = vsel %vm35, %v22, 0
  %39 = vmatprep.subr.bf16.mxu0 0
  %40 = vmatpush1.bf16.msra.mxu0 0
  %41 = vmatprep.subr.bf16.mxu0 0
  %42 = vmatpush1.bf16.msra.mxu0 0
  %43 = vmatprep.subr.bf16.mxu0 0
  %44 = vmatpush1.bf16.msra.mxu0 0
  %45 = vmatprep.subr.bf16.mxu0 0
  %46 = vmatpush1.bf16.msra.mxu0 0
  %47 = vmatprep.subr.bf16.mxu0 0
  %48 = vmatpush1.bf16.msra.mxu0 0
  %49 = vmatprep.subr.bf16.mxu0 0
  %50 = vmatpush1.bf16.msra.mxu0 0
  %51 = vmatprep.subr.bf16.mxu0 0
  %52 = vmatpush1.bf16.msra.mxu0 %v32
  %53 = vmatprep.subr.bf16.mxu0 0
  %54 = vmatpush1.bf16.msra.mxu0 %v31
  %55 = vmatprep.subr.bf16.mxu0 0
  %56 = vmatpush2.bf16.msra.mxu0 0
  %57 = vmatprep.subr.bf16.mxu0 0
  %58 = vmatpush2.bf16.msra.mxu0 0
  %59 = vmatprep.subr.bf16.mxu0 0
  %60 = vmatpush2.bf16.msra.mxu0 0
  %61 = vmatprep.subr.bf16.mxu0 0
  %62 = vmatpush2.bf16.msra.mxu0 0
  %63 = vmatprep.subr.bf16.mxu0 0
  %64 = vmatpush2.bf16.msra.mxu0 0
  %65 = vmatprep.subr.bf16.mxu0 0
  %66 = vmatpush2.bf16.msra.mxu0 0
  %67 = vmatprep.subr.bf16.mxu0 0
  %68 = vmatpush2.bf16.msra.mxu0 0
  %69 = vmatprep.subr.bf16.mxu0 0
  %70 = vmatpush2.bf16.msra.mxu0 0
  %71 = vmatprep.mubr.bf16.mxu0 0
  %72 = vmatmul.mubr.bf16.gmra.mxu0 %v37
  %v73 = vpop.f32.mrf.mxu0
  %v74 = vadd.f32 0.0, %v73
  %v75 = vpop.f32.mrf.mxu0
  %v76 = vpop.f32.mrf.mxu0
  %v77 = vadd.f32 0.0, %v76
  %v78 = vpop.f32.mrf.mxu0
  %79 = vdwg.mxu0
  %v80 = vpack.c.bf16 %v77, %v74
  %v82 = vunpack.c.l.b16 %v80
  %v83 = vunpack.c.h.b16 %v80
  %v84 = vpack.c.b16 %v82, %v82
  %v85 = vpack.c.b16 %v83, %v83
  %vm88 = vcmask 519168
  %89 = vst.msk [vmem:[%s2] sm:$0xf] %vm88, %v84
  %90 = vst.msk [vmem:[%s2 + $0x4] sm:$0xf] %vm88, %v85
  // Predicated region
  $region10: #{decoder_forward.22} parent=0 // pred_check
    _
  $region11: #{decoder_forward.22} parent=0 // pred_check_branch
    %92 = sbr.rel (0) target = $region13
  $region12: #{decoder_forward.22} parent=0 // pred_region
    _
  $region13: #{decoder_forward.22} parent=0 // pred_fallthru
    _
  // Predicated region
  $region14: #{decoder_forward.22} parent=0 // pred_check
    _
  $region15: #{decoder_forward.22} parent=0 // pred_check_branch
    %94 = sbr.rel (0) target = $region17
  $region16: #{decoder_forward.22} parent=0 // pred_region
    _
  $region17: #{decoder_forward.22} parent=0 // pred_fallthru
    _

// kernel: decoder_forward.21
$region0: #{decoder_forward.21}
  #allocation0 [shape = 'u32[]', space=smem, size = 0x4, offset = 0x4, fixed_abs, tag = 'smem constant byte address 0x4 - core index']
  #allocation1 [shape = 'u32[144,128]{1,0:T(1,128)}', space=vmem, size = 0x12000, scoped, tag = 'internal scratch']
  %s0 = inlined_call_operand.vmem [shape: bf16[16,32], index: 0, kind: input, shape index: {}]
  %s1 = inlined_call_operand.vmem [shape: bf16[32,32], index: 1, kind: input, shape index: {}]
  %s2 = inlined_call_operand.vmem [shape: bf16[16,32], index: 2, kind: output, shape index: {}]
  %s3 = sld [smem:[#allocation0]]
  $region18: #{decoder_forward.21} parent=0
    _
  %s5 = ssub.s32 1, %s3
  %s6 = scalar_select 0, %s5, %s3
  // Predicated region
  $region2: #{decoder_forward.21} parent=0 // pred_check
    _
  $region3: #{decoder_forward.21} parent=0 // pred_check_branch
    %8 = sbr.rel (0) target = $region5
  $region4: #{decoder_forward.21} parent=0 // pred_region
    _
  $region5: #{decoder_forward.21} parent=0 // pred_fallthru
    _
  // Predicated region
  $region6: #{decoder_forward.21} parent=0 // pred_check
    _
  $region7: #{decoder_forward.21} parent=0 // pred_check_branch
    %10 = sbr.rel (0) target = $region9
  $region8: #{decoder_forward.21} parent=0 // pred_region
    _
  $region9: #{decoder_forward.21} parent=0 // pred_fallthru
    _
  %v12 = vld [vmem:[%s0] sm:$0xf]
  %v13 = vld [vmem:[%s0 + $0x4] sm:$0xf]
  %v14 = vld [vmem:[%s1] sm:$0xf]
  %v15 = vld [vmem:[%s1 + $0x4] sm:$0xf]
  %v16 = vld [vmem:[%s1 + $0x8] sm:$0xf]
  %v17 = vld [vmem:[%s1 + $0xc] sm:$0xf]
  %v20 = vunpack.c.l.b16 %v12
  %v21 = vunpack.c.l.b16 %v13
  %v22 = vpack.c.b16 %v21, %v20
  %v27 = vunpack.c.l.b16 %v14
  %v28 = vunpack.c.l.b16 %v15
  %v29 = vunpack.c.l.b16 %v16
  %v30 = vunpack.c.l.b16 %v17
  %v31 = vpack.c.b16 %v28, %v27
  %v32 = vpack.c.b16 %v30, %v29
  %vm35 = vcmask 261120
  %v37 = vsel %vm35, %v22, 0
  %39 = vmatprep.subr.bf16.mxu0 0
  %40 = vmatpush1.bf16.msra.mxu0 0
  %41 = vmatprep.subr.bf16.mxu0 0
  %42 = vmatpush1.bf16.msra.mxu0 0
  %43 = vmatprep.subr.bf16.mxu0 0
  %44 = vmatpush1.bf16.msra.mxu0 0
  %45 = vmatprep.subr.bf16.mxu0 0
  %46 = vmatpush1.bf16.msra.mxu0 0
  %47 = vmatprep.subr.bf16.mxu0 0
  %48 = vmatpush1.bf16.msra.mxu0 0
  %49 = vmatprep.subr.bf16.mxu0 0
  %50 = vmatpush1.bf16.msra.mxu0 0
  %51 = vmatprep.subr.bf16.mxu0 0
  %52 = vmatpush1.bf16.msra.mxu0 %v32
  %53 = vmatprep.subr.bf16.mxu0 0
  %54 = vmatpush1.bf16.msra.mxu0 %v31
  %55 = vmatprep.subr.bf16.mxu0 0
  %56 = vmatpush2.bf16.msra.mxu0 0
  %57 = vmatprep.subr.bf16.mxu0 0
  %58 = vmatpush2.bf16.msra.mxu0 0
  %59 = vmatprep.subr.bf16.mxu0 0
  %60 = vmatpush2.bf16.msra.mxu0 0
  %61 = vmatprep.subr.bf16.mxu0 0
  %62 = vmatpush2.bf16.msra.mxu0 0
  %63 = vmatprep.subr.bf16.mxu0 0
  %64 = vmatpush2.bf16.msra.mxu0 0
  %65 = vmatprep.subr.bf16.mxu0 0
  %66 = vmatpush2.bf16.msra.mxu0 0
  %67 = vmatprep.subr.bf16.mxu0 0
  %68 = vmatpush2.bf16.msra.mxu0 0
  %69 = vmatprep.subr.bf16.mxu0 0
  %70 = vmatpush2.bf16.msra.mxu0 0
  %71 = vmatprep.mubr.bf16.mxu0 0
  %72 = vmatmul.mubr.bf16.gmra.mxu0 %v37
  %v73 = vpop.f32.mrf.mxu0
  %v74 = vadd.f32 0.0, %v73
  %v75 = vpop.f32.mrf.mxu0
  %v76 = vpop.f32.mrf.mxu0
  %v77 = vadd.f32 0.0, %v76
  %v78 = vpop.f32.mrf.mxu0
  %79 = vdwg.mxu0
  %v80 = vpack.c.bf16 %v77, %v74
  %v82 = vunpack.c.l.b16 %v80
  %v83 = vunpack.c.h.b16 %v80
  %v84 = vpack.c.b16 %v82, %v82
  %v85 = vpack.c.b16 %v83, %v83
  %vm88 = vcmask 257024
  %89 = vst.msk [vmem:[%s2] sm:$0xf] %vm88, %v84
  %90 = vst.msk [vmem:[%s2 + $0x4] sm:$0xf] %vm88, %v85
  // Predicated region
  $region10: #{decoder_forward.21} parent=0 // pred_check
    _
  $region11: #{decoder_forward.21} parent=0 // pred_check_branch
    %92 = sbr.rel (0) target = $region13
  $region12: #{decoder_forward.21} parent=0 // pred_region
    _
  $region13: #{decoder_forward.21} parent=0 // pred_fallthru
    _
  // Predicated region
  $region14: #{decoder_forward.21} parent=0 // pred_check
    _
  $region15: #{decoder_forward.21} parent=0 // pred_check_branch
    %94 = sbr.rel (0) target = $region17
  $region16: #{decoder_forward.21} parent=0 // pred_region
    _
  $region17: #{decoder_forward.21} parent=0 // pred_fallthru
    _

// kernel: decoder_forward.23
$region0: #{decoder_forward.23}
  #allocation0 [shape = 'u32[]', space=smem, size = 0x4, offset = 0x4, fixed_abs, tag = 'smem constant byte address 0x4 - core index']
  #allocation1 [shape = 'u32[144,128]{1,0:T(1,128)}', space=vmem, size = 0x12000, scoped, tag = 'internal scratch']
  %s0 = inlined_call_operand.vmem [shape: bf16[2,8,32], index: 0, kind: input, shape index: {}]
  %s1 = inlined_call_operand.vmem [shape: bf16[2,8,64], index: 1, kind: input, shape index: {}]
  %s2 = inlined_call_operand.vmem [shape: s32[2,1,8], index: 2, kind: input, shape index: {}]
  %s3 = inlined_call_operand.vmem [shape: bf16[2,8,32], index: 3, kind: output, shape index: {}]
  %s4 = sld [smem:[#allocation0]]
  $region45: #{decoder_forward.23} parent=0
    _
  %s6 = ssub.s32 1, %s4
  %s7 = scalar_select 0, %s6, %s4
  loop: start=0, step=1, limit=4
  $region2: #{decoder_forward.23} parent=0 // loop_pre_header
    _
  $region3: #{decoder_forward.23} parent=0 // loop_header
    %s9 = sphi 0, %s13
    %p10 = scmp.ge.s32.totalorder %s9, 4
    %s16 = sphi 0, %s28
    %s17 = sphi 0, %s24
    %s18 = sphi 0, %s16
    %s19 = sphi 0, %s17
    %s20 = sphi 0, %s18
    %s21 = sphi 0, %s19
    %s33 = sphi 0, %s35
    %s36 = sphi 0, %s33
    %s37 = sphi 0, %s36
    %s53 = sphi 0, %s37
    %s59 = sphi 0, %s61
    %s62 = sphi 0, %s59
    %s63 = sphi 0, %s62
    %s79 = sphi 0, %s63
    %s85 = sphi 0, %s87
    %s88 = sphi 0, %s85
    %s89 = sphi 0, %s88
    %s105 = sphi 0, %s89
    %s113 = sphi 0, %s115
    %s116 = sphi 0, %s113
    %s117 = sphi 0, %s116
    %s133 = sphi 0, %s117
  $region4: #{decoder_forward.23} parent=0 // loop_header_branch
    %12 = sbr.rel (%p10) target = $region8
  $region5: #{decoder_forward.23} parent=0 // loop_body
    %s14 = ssub.s32 %s9, 1
    %s15 = ssub.s32 %s9, 2
    %s22 = sadd.s32 1, %s17
    %p23 = scmp.ge.s32.totalorder %s22, 1
    %s24 = scalar_select %p23, 0, %s22
    %s25 = sadd.s32 1, %s16
    %s26 = scalar_select %p23, %s25, %s16
    %p27 = scmp.ge.s32.totalorder %s26, 2
    %s28 = scalar_select %p27, 0, %s26
    %s29 = ssub.s32 %s16, %s28
    %s30 = ssub.s32 %s17, %s24
    %s31 = sor.u32 %s29, %s30
    %p32 = scmp.eq.s32.totalorder %s31, 0
    %s34 = sadd.s32 %s33, 1
    %s35 = scalar_select %p32, %s33, %s34
    %p38 = pneg %p32
    %p39 = scmp.eq.s32.totalorder %s9, 1
    %p40 = por %p38, %p39
    %p41 = scmp.ne.s32.totalorder %s33, %s36
    %p42 = scmp.eq.s32.totalorder %s9, 0
    %p43 = por %p41, %p42
    %p44 = scmp.ne.s32.totalorder %s33, %s36
    %p45 = scmp.eq.s32.totalorder %s14, 1
    %p46 = por %p44, %p45
    %p47 = scmp.ne.s32.totalorder %s36, %s37
    %p48 = scmp.eq.s32.totalorder %s14, 0
    %p49 = por %p47, %p48
    %p50 = scmp.ne.s32.totalorder %s36, %s37
    %p51 = scmp.eq.s32.totalorder %s15, 1
    %p52 = por %p50, %p51
    %p54 = scmp.ne.s32.totalorder %s37, %s53
    %p55 = scmp.eq.s32.totalorder %s15, 0
    %p56 = por %p54, %p55
    %s57 = ssub.s32 %s16, %s28
    %p58 = scmp.eq.s32.totalorder %s57, 0
    %s60 = sadd.s32 %s59, 1
    %s61 = scalar_select %p58, %s59, %s60
    %p64 = pneg %p58
    %p65 = scmp.eq.s32.totalorder %s9, 1
    %p66 = por %p64, %p65
    %p67 = scmp.ne.s32.totalorder %s59, %s62
    %p68 = scmp.eq.s32.totalorder %s9, 0
    %p69 = por %p67, %p68
    %p70 = scmp.ne.s32.totalorder %s59, %s62
    %p71 = scmp.eq.s32.totalorder %s14, 1
    %p72 = por %p70, %p71
    %p73 = scmp.ne.s32.totalorder %s62, %s63
    %p74 = scmp.eq.s32.totalorder %s14, 0
    %p75 = por %p73, %p74
    %p76 = scmp.ne.s32.totalorder %s62, %s63
    %p77 = scmp.eq.s32.totalorder %s15, 1
    %p78 = por %p76, %p77
    %p80 = scmp.ne.s32.totalorder %s63, %s79
    %p81 = scmp.eq.s32.totalorder %s15, 0
    %p82 = por %p80, %p81
    %s83 = ssub.s32 %s16, %s28
    %p84 = scmp.eq.s32.totalorder %s83, 0
    %s86 = sadd.s32 %s85, 1
    %s87 = scalar_select %p84, %s85, %s86
    %p90 = pneg %p84
    %p91 = scmp.eq.s32.totalorder %s9, 1
    %p92 = por %p90, %p91
    %p93 = scmp.ne.s32.totalorder %s85, %s88
    %p94 = scmp.eq.s32.totalorder %s9, 0
    %p95 = por %p93, %p94
    %p96 = scmp.ne.s32.totalorder %s85, %s88
    %p97 = scmp.eq.s32.totalorder %s14, 1
    %p98 = por %p96, %p97
    %p99 = scmp.ne.s32.totalorder %s88, %s89
    %p100 = scmp.eq.s32.totalorder %s14, 0
    %p101 = por %p99, %p100
    %p102 = scmp.ne.s32.totalorder %s88, %s89
    %p103 = scmp.eq.s32.totalorder %s15, 1
    %p104 = por %p102, %p103
    %p106 = scmp.ne.s32.totalorder %s89, %s105
    %p107 = scmp.eq.s32.totalorder %s15, 0
    %p108 = por %p106, %p107
    %s109 = ssub.s32 %s16, %s28
    %s110 = ssub.s32 %s17, %s24
    %s111 = sor.u32 %s109, %s110
    %p112 = scmp.eq.s32.totalorder %s111, 0
    %s114 = sadd.s32 %s113, 1
    %s115 = scalar_select %p112, %s113, %s114
    %p118 = pneg %p112
    %p119 = scmp.eq.s32.totalorder %s9, 1
    %p120 = por %p118, %p119
    %p121 = scmp.ne.s32.totalorder %s113, %s116
    %p122 = scmp.eq.s32.totalorder %s9, 0
    %p123 = por %p121, %p122
    %p124 = scmp.ne.s32.totalorder %s113, %s116
    %p125 = scmp.eq.s32.totalorder %s14, 1
    %p126 = por %p124, %p125
    %p127 = scmp.ne.s32.totalorder %s116, %s117
    %p128 = scmp.eq.s32.totalorder %s14, 0
    %p129 = por %p127, %p128
    %p130 = scmp.ne.s32.totalorder %s116, %s117
    %p131 = scmp.eq.s32.totalorder %s15, 1
    %p132 = por %p130, %p131
    %p134 = scmp.ne.s32.totalorder %s117, %s133
    %p135 = scmp.eq.s32.totalorder %s15, 0
    %p136 = por %p134, %p135
    %p137 = scmp.le.s32.totalorder 1, %s9
    %p138 = scmp.lt.s32.totalorder %s9, 3
    %p139 = pnand %p137, %p138
    %p140 = pneg %p139
    // Predicated region
    $region9: #{decoder_forward.23} parent=5 // pred_check
      _
    $region10: #{decoder_forward.23} parent=5 // pred_check_branch
      %142 = sbr.rel (%p139) target = $region12
    $region11: #{decoder_forward.23} parent=5 // pred_region
      %s143 = ssub.s32 %s9, 1
    $region12: #{decoder_forward.23} parent=5 // pred_fallthru
      _
    %p144 = scmp.lt.s32.totalorder %s9, 2
    // Predicated region
    $region13: #{decoder_forward.23} parent=5 // pred_check
      %p145 = pneg %p144
    $region14: #{decoder_forward.23} parent=5 // pred_check_branch
      %147 = sbr.rel (%p145) target = $region16
    $region15: #{decoder_forward.23} parent=5 // pred_region
      // Predicated region
      $region17: #{decoder_forward.23} parent=15 // pred_check
        %p148 = pneg %p43
      $region18: #{decoder_forward.23} parent=15 // pred_check_branch
        %150 = sbr.rel (%p148) target = $region20
      $region19: #{decoder_forward.23} parent=15 // pred_region
        %p151 = scmp.lt.s32.totalorder %s16, 1
        %s152 = scalar_select %p151, %s16, 1
        %p153 = scmp.lt.s32.totalorder %s17, 0
        %s154 = scalar_select %p153, %s17, 0
        %s155 = sadd.s32 %s154, %s152
        %s156 = smul.addr %s155, 4
        %s157 = scalar_lea.vmem %s0, %s156
      $region20: #{decoder_forward.23} parent=15 // pred_fallthru
        _
      // Predicated region
      $region21: #{decoder_forward.23} parent=15 // pred_check
        %p158 = pneg %p69
      $region22: #{decoder_forward.23} parent=15 // pred_check_branch
        %160 = sbr.rel (%p158) target = $region24
      $region23: #{decoder_forward.23} parent=15 // pred_region
        %p161 = scmp.lt.s32.totalorder %s16, 1
        %s162 = scalar_select %p161, %s16, 1
        %s163 = smul.addr %s162, 4
        %s164 = scalar_lea.vmem %s1, %s163
      $region24: #{decoder_forward.23} parent=15 // pred_fallthru
        _
      // Predicated region
      $region25: #{decoder_forward.23} parent=15 // pred_check
        %p165 = pneg %p95
      $region26: #{decoder_forward.23} parent=15 // pred_check_branch
        %167 = sbr.rel (%p165) target = $region28
      $region27: #{decoder_forward.23} parent=15 // pred_region
        %p168 = scmp.lt.s32.totalorder %s16, 1
        %s169 = scalar_select %p168, %s16, 1
        %s170 = scalar_lea.vmem %s2, %s169
      $region28: #{decoder_forward.23} parent=15 // pred_fallthru
        _
    $region16: #{decoder_forward.23} parent=5 // pred_fallthru
      _
    %p171 = scmp.le.s32.totalorder 1, %s9
    %p172 = scmp.lt.s32.totalorder %s9, 3
    %p173 = pnand %p171, %p172
    %p174 = pneg %p173
    // Predicated region
    $region29: #{decoder_forward.23} parent=5 // pred_check
      _
    $region30: #{decoder_forward.23} parent=5 // pred_check_branch
      %176 = sbr.rel (%p173) target = $region32
    $region31: #{decoder_forward.23} parent=5 // pred_region
      %s177 = ssub.s32 %s9, 1
      %p178 = scmp.lt.s32.totalorder %s18, 1
      %s179 = scalar_select %p178, %s18, 1
      %p180 = scmp.lt.s32.totalorder %s19, 0
      %s181 = scalar_select %p180, %s19, 0
      %s182 = sadd.s32 %s181, %s179
      %s183 = smul.addr %s182, 4
      %s184 = scalar_lea.vmem %s0, %s183
      %p185 = pneg %p49
      %p186 = pneg %p46
      %p187 = scmp.lt.s32.totalorder %s18, 1
      %s188 = scalar_select %p187, %s18, 1
      %s189 = smul.addr %s188, 4
      %s190 = scalar_lea.vmem %s1, %s189
      %p191 = pneg %p75
      %p192 = pneg %p72
      %p193 = scmp.lt.s32.totalorder %s18, 1
      %s194 = scalar_select %p193, %s18, 1
      %s195 = scalar_lea.vmem %s2, %s194
      %p196 = pneg %p101
      %p197 = pneg %p98
      %p198 = pneg %p129
      %p199 = pneg %p126
      %p200 = scmp.lt.s32.totalorder %s18, 1
      %s201 = scalar_select %p200, %s18, 1
      %p202 = scmp.lt.s32.totalorder %s19, 0
      %s203 = scalar_select %p202, %s19, 0
      %s204 = sadd.s32 %s203, %s201
      %s205 = smul.addr %s204, 4
      %s206 = scalar_lea.vmem %s3, %s205
      %p207 = scmp.lt.s32.totalorder %s18, 1
      %s208 = scalar_select %p207, %s18, 1
      %p209 = scmp.lt.s32.totalorder %s19, 0
      %s210 = scalar_select %p209, %s19, 0
      %s211 = sadd.s32 %s210, %s208
      %s212 = smul.addr %s211, 4
      %s213 = scalar_lea.vmem %s0, %s212
      %p214 = scmp.lt.s32.totalorder %s18, 1
      %s215 = scalar_select %p214, %s18, 1
      %s216 = smul.addr %s215, 4
      %s217 = scalar_lea.vmem %s1, %s216
      %p218 = scmp.lt.s32.totalorder %s18, 1
      %s219 = scalar_select %p218, %s18, 1
      %s220 = scalar_lea.vmem %s2, %s219
      %p221 = scmp.lt.s32.totalorder %s18, 1
      %s222 = scalar_select %p221, %s18, 1
      %p223 = scmp.lt.s32.totalorder %s19, 0
      %s224 = scalar_select %p223, %s19, 0
      %s225 = sadd.s32 %s224, %s222
      %s226 = smul.addr %s225, 4
      %s227 = scalar_lea.vmem %s3, %s226
      %v229 = vld [vmem:[%s220] sm:$0x1]
      %vm230 = vcmp.ne.s32.totalorder %v229, 0
      %v231 = vld [vmem:[%s213] sm:$0xf]
      %v232 = vld [vmem:[%s217] sm:$0xf]
      %vm233 = vcmask 64512
      %v235 = vsel %vm233, %v231, 0
      %v238 = vsel %vm233, %v232, 0
      %240 = vmatprep.subr.bf16.mxu0 0
      %241 = vmatpush1.bf16.xpose.msra.mxu0 0
      %242 = vmatprep.subr.bf16.mxu0 0
      %243 = vmatpush1.bf16.xpose.msra.mxu0 0
      %244 = vmatprep.subr.bf16.mxu0 0
      %245 = vmatpush1.bf16.xpose.msra.mxu0 0
      %246 = vmatprep.subr.bf16.mxu0 0
      %247 = vmatpush1.bf16.xpose.msra.mxu0 0
      %248 = vmatprep.subr.bf16.mxu0 0
      %249 = vmatpush1.bf16.xpose.msra.mxu0 0
      %250 = vmatprep.subr.bf16.mxu0 0
      %251 = vmatpush1.bf16.xpose.msra.mxu0 0
      %252 = vmatprep.subr.bf16.mxu0 0
      %253 = vmatpush1.bf16.xpose.msra.mxu0 0
      %254 = vmatprep.subr.bf16.mxu0 0
      %255 = vmatpush1.bf16.xpose.msra.mxu0 %v238
      %256 = vmatprep.subr.bf16.mxu0 0
      %257 = vmatpush2.bf16.xpose.msra.mxu0 0
      %258 = vmatprep.subr.bf16.mxu0 0
      %259 = vmatpush2.bf16.xpose.msra.mxu0 0
      %260 = vmatprep.subr.bf16.mxu0 0
      %261 = vmatpush2.bf16.xpose.msra.mxu0 0
      %262 = vmatprep.subr.bf16.mxu0 0
      %263 = vmatpush2.bf16.xpose.msra.mxu0 0
      %264 = vmatprep.subr.bf16.mxu0 0
      %265 = vmatpush2.bf16.xpose.msra.mxu0 0
      %266 = vmatprep.subr.bf16.mxu0 0
      %267 = vmatpush2.bf16.xpose.msra.mxu0 0
      %268 = vmatprep.subr.bf16.mxu0 0
      %269 = vmatpush2.bf16.xpose.msra.mxu0 0
      %270 = vmatprep.subr.bf16.mxu0 0
      %271 = vmatpush2.bf16.xpose.msra.mxu0 0
      %272 = vmatprep.mubr.bf16.mxu0 0
      %273 = vmatmul.mubr.bf16.gmra.mxu0 %v235
      %v274 = vpop.f32.mrf.mxu0
      %v275 = vadd.f32 0.0, %v274
      %v276 = vpop.f32.mrf.mxu0
      %v277 = vpop.f32.mrf.mxu0
      %v278 = vpop.f32.mrf.mxu0
      %279 = vdwg.mxu0
      %v280 = vsel %vm230, 1, 0
      %v281 = vlaneseq
      %v282 = vshrl.u32 %v281, 7
      %v283 = vsub.s32 0, %v282
      %v284 = vrot.slane %v280, %v283
      %vm285 = vcmp.eq.s32.totalorder %v284, 1
      %v286 = vsel %vm285, %v275, -1e+09
      %v287 = vsel %vm233, %v286, -inf
      %288 = vmax.xlane.f32.xlu0 %v287
      %v289 = vpop.xlane.xlu0 %288
      %v290 = vsub.f32 %v286, %v289
      %v291 = vmul.f32 %v290, 1.442695
      %v292 = vpow.pop %v291
      %v293 = vsel %vm233, %v292, 0.0
      %294 = vadd.xlane.f32.xlu0 %v293
      %v295 = vpop.xlane.xlu0 %294
      %v296 = vrcp.pop %v295
      %v297 = vmul.f32 %v292, %v296
      %v298 = vpack.c.bf16 %v297, %v297
      %v300 = vunpack.c.l.b16 %v232
      %v301 = vpack.c.b16 %v300, %v300
      %302 = vrot.lane.b32.xlu0 %v301, 96
      %v303 = vpop.permute.xlu0 %302
      %v305 = vsel %vm233, %v298, 0
      %vm307 = vcmask 1043456
      %v309 = vsel %vm307, %v303, 0
      %311 = vmatprep.subr.bf16.mxu0 0
      %312 = vmatpush1.bf16.msra.mxu0 0
      %313 = vmatprep.subr.bf16.mxu0 0
      %314 = vmatpush1.bf16.msra.mxu0 0
      %315 = vmatprep.subr.bf16.mxu0 0
      %316 = vmatpush1.bf16.msra.mxu0 0
      %317 = vmatprep.subr.bf16.mxu0 0
      %318 = vmatpush1.bf16.msra.mxu0 0
      %319 = vmatprep.subr.bf16.mxu0 0
      %320 = vmatpush1.bf16.msra.mxu0 0
      %321 = vmatprep.subr.bf16.mxu0 0
      %322 = vmatpush1.bf16.msra.mxu0 0
      %323 = vmatprep.subr.bf16.mxu0 0
      %324 = vmatpush1.bf16.msra.mxu0 0
      %325 = vmatprep.subr.bf16.mxu0 0
      %326 = vmatpush1.bf16.msra.mxu0 %v309
      %327 = vmatprep.subr.bf16.mxu0 0
      %328 = vmatpush2.bf16.msra.mxu0 0
      %329 = vmatprep.subr.bf16.mxu0 0
      %330 = vmatpush2.bf16.msra.mxu0 0
      %331 = vmatprep.subr.bf16.mxu0 0
      %332 = vmatpush2.bf16.msra.mxu0 0
      %333 = vmatprep.subr.bf16.mxu0 0
      %334 = vmatpush2.bf16.msra.mxu0 0
      %335 = vmatprep.subr.bf16.mxu0 0
      %336 = vmatpush2.bf16.msra.mxu0 0
      %337 = vmatprep.subr.bf16.mxu0 0
      %338 = vmatpush2.bf16.msra.mxu0 0
      %339 = vmatprep.subr.bf16.mxu0 0
      %340 = vmatpush2.bf16.msra.mxu0 0
      %341 = vmatprep.subr.bf16.mxu0 0
      %342 = vmatpush2.bf16.msra.mxu0 0
      %343 = vmatprep.mubr.bf16.mxu0 0
      %344 = vmatmul.mubr.bf16.gmra.mxu0 %v305
      %v345 = vpop.f32.mrf.mxu0
      %v346 = vadd.f32 0.0, %v345
      %v347 = vpop.f32.mrf.mxu0
      %v348 = vpop.f32.mrf.mxu0
      %v349 = vpop.f32.mrf.mxu0
      %350 = vdwg.mxu0
      %v352 = vunpack.c.l.b16 %v231
      %v353 = vpack.c.b16 %v352, %v352
      %354 = vrot.lane.b32.xlu0 %v353, 120
      %v355 = vpop.permute.xlu0 %354
      %356 = vrot.lane.b32.xlu0 %v301, 120
      %v357 = vpop.permute.xlu0 %356
      %v359 = vsel %vm233, %v355, 0
      %v362 = vsel %vm233, %v357, 0
      %364 = vmatprep.subr.bf16.mxu0 0
      %365 = vmatpush1.bf16.xpose.msra.mxu0 0
      %366 = vmatprep.subr.bf16.mxu0 0
      %367 = vmatpush1.bf16.xpose.msra.mxu0 0
      %368 = vmatprep.subr.bf16.mxu0 0
      %369 = vmatpush1.bf16.xpose.msra.mxu0 0
      %370 = vmatprep.subr.bf16.mxu0 0
      %371 = vmatpush1.bf16.xpose.msra.mxu0 0
      %372 = vmatprep.subr.bf16.mxu0 0
      %373 = vmatpush1.bf16.xpose.msra.mxu0 0
      %374 = vmatprep.subr.bf16.mxu0 0
      %375 = vmatpush1.bf16.xpose.msra.mxu0 0
      %376 = vmatprep.subr.bf16.mxu0 0
      %377 = vmatpush1.bf16.xpose.msra.mxu0 0
      %378 = vmatprep.subr.bf16.mxu0 0
      %379 = vmatpush1.bf16.xpose.msra.mxu0 %v362
      %380 = vmatprep.subr.bf16.mxu0 0
      %381 = vmatpush2.bf16.xpose.msra.mxu0 0
      %382 = vmatprep.subr.bf16.mxu0 0
      %383 = vmatpush2.bf16.xpose.msra.mxu0 0
      %384 = vmatprep.subr.bf16.mxu0 0
      %385 = vmatpush2.bf16.xpose.msra.mxu0 0
      %386 = vmatprep.subr.bf16.mxu0 0
      %387 = vmatpush2.bf16.xpose.msra.mxu0 0
      %388 = vmatprep.subr.bf16.mxu0 0
      %389 = vmatpush2.bf16.xpose.msra.mxu0 0
      %390 = vmatprep.subr.bf16.mxu0 0
      %391 = vmatpush2.bf16.xpose.msra.mxu0 0
      %392 = vmatprep.subr.bf16.mxu0 0
      %393 = vmatpush2.bf16.xpose.msra.mxu0 0
      %394 = vmatprep.subr.bf16.mxu0 0
      %395 = vmatpush2.bf16.xpose.msra.mxu0 0
      %396 = vmatprep.mubr.bf16.mxu0 0
      %397 = vmatmul.mubr.bf16.gmra.mxu0 %v359
      %v398 = vpop.f32.mrf.mxu0
      %v399 = vadd.f32 0.0, %v398
      %v400 = vpop.f32.mrf.mxu0
      %v401 = vpop.f32.mrf.mxu0
      %v402 = vpop.f32.mrf.mxu0
      %403 = vdwg.mxu0
      %v404 = vsel %vm285, %v399, -1e+09
      %v405 = vsel %vm233, %v404, -inf
      %406 = vmax.xlane.f32.xlu0 %v405
      %v407 = vpop.xlane.xlu0 %406
      %v408 = vsub.f32 %v404, %v407
      %v409 = vmul.f32 %v408, 1.442695
      %v410 = vpow.pop %v409
      %v411 = vsel %vm233, %v410, 0.0
      %412 = vadd.xlane.f32.xlu0 %v411
      %v413 = vpop.xlane.xlu0 %412
      %v414 = vrcp.pop %v413
      %v415 = vmul.f32 %v410, %v414
      %v416 = vpack.c.bf16 %v415, %v415
      %417 = vrot.lane.b32.xlu0 %v301, 88
      %v418 = vpop.permute.xlu0 %417
      %v420 = vsel %vm233, %v416, 0
      %v423 = vsel %vm307, %v418, 0
      %425 = vmatprep.subr.bf16.mxu0 0
      %426 = vmatpush1.bf16.msra.mxu0 0
      %427 = vmatprep.subr.bf16.mxu0 0
      %428 = vmatpush1.bf16.msra.mxu0 0
      %429 = vmatprep.subr.bf16.mxu0 0
      %430 = vmatpush1.bf16.msra.mxu0 0
      %431 = vmatprep.subr.bf16.mxu0 0
      %432 = vmatpush1.bf16.msra.mxu0 0
      %433 = vmatprep.subr.bf16.mxu0 0
      %434 = vmatpush1.bf16.msra.mxu0 0
      %435 = vmatprep.subr.bf16.mxu0 0
      %436 = vmatpush1.bf16.msra.mxu0 0
      %437 = vmatprep.subr.bf16.mxu0 0
      %438 = vmatpush1.bf16.msra.mxu0 0
      %439 = vmatprep.subr.bf16.mxu0 0
      %440 = vmatpush1.bf16.msra.mxu0 %v423
      %441 = vmatprep.subr.bf16.mxu0 0
      %442 = vmatpush2.bf16.msra.mxu0 0
      %443 = vmatprep.subr.bf16.mxu0 0
      %444 = vmatpush2.bf16.msra.mxu0 0
      %445 = vmatprep.subr.bf16.mxu0 0
      %446 = vmatpush2.bf16.msra.mxu0 0
      %447 = vmatprep.subr.bf16.mxu0 0
      %448 = vmatpush2.bf16.msra.mxu0 0
      %449 = vmatprep.subr.bf16.mxu0 0
      %450 = vmatpush2.bf16.msra.mxu0 0
      %451 = vmatprep.subr.bf16.mxu0 0
      %452 = vmatpush2.bf16.msra.mxu0 0
      %453 = vmatprep.subr.bf16.mxu0 0
      %454 = vmatpush2.bf16.msra.mxu0 0
      %455 = vmatprep.subr.bf16.mxu0 0
      %456 = vmatpush2.bf16.msra.mxu0 0
      %457 = vmatprep.mubr.bf16.mxu0 0
      %458 = vmatmul.mubr.bf16.gmra.mxu0 %v420
      %v459 = vpop.f32.mrf.mxu0
      %v460 = vadd.f32 0.0, %v459
      %v461 = vpop.f32.mrf.mxu0
      %v462 = vpop.f32.mrf.mxu0
      %v463 = vpop.f32.mrf.mxu0
      %464 = vdwg.mxu0
      %465 = vrot.lane.b32.xlu0 %v353, 112
      %v466 = vpop.permute.xlu0 %465
      %467 = vrot.lane.b32.xlu0 %v301, 112
      %v468 = vpop.permute.xlu0 %467
      %v470 = vsel %vm233, %v466, 0
      %v473 = vsel %vm233, %v468, 0
      %475 = vmatprep.subr.bf16.mxu0 0
      %476 = vmatpush1.bf16.xpose.msra.mxu0 0
      %477 = vmatprep.subr.bf16.mxu0 0
      %478 = vmatpush1.bf16.xpose.msra.mxu0 0
      %479 = vmatprep.subr.bf16.mxu0 0
      %480 = vmatpush1.bf16.xpose.msra.mxu0 0
      %481 = vmatprep.subr.bf16.mxu0 0
      %482 = vmatpush1.bf16.xpose.msra.mxu0 0
      %483 = vmatprep.subr.bf16.mxu0 0
      %484 = vmatpush1.bf16.xpose.msra.mxu0 0
      %485 = vmatprep.subr.bf16.mxu0 0
      %486 = vmatpush1.bf16.xpose.msra.mxu0 0
      %487 = vmatprep.subr.bf16.mxu0 0
      %488 = vmatpush1.bf16.xpose.msra.mxu0 0
      %489 = vmatprep.subr.bf16.mxu0 0
      %490 = vmatpush1.bf16.xpose.msra.mxu0 %v473
      %491 = vmatprep.subr.bf16.mxu0 0
      %492 = vmatpush2.bf16.xpose.msra.mxu0 0
      %493 = vmatprep.subr.bf16.mxu0 0
      %494 = vmatpush2.bf16.xpose.msra.mxu0 0
      %495 = vmatprep.subr.bf16.mxu0 0
      %496 = vmatpush2.bf16.xpose.msra.mxu0 0
      %497 = vmatprep.subr.bf16.mxu0 0
      %498 = vmatpush2.bf16.xpose.msra.mxu0 0
      %499 = vmatprep.subr.bf16.mxu0 0
      %500 = vmatpush2.bf16.xpose.msra.mxu0 0
      %501 = vmatprep.subr.bf16.mxu0 0
      %502 = vmatpush2.bf16.xpose.msra.mxu0 0
      %503 = vmatprep.subr.bf16.mxu0 0
      %504 = vmatpush2.bf16.xpose.msra.mxu0 0
      %505 = vmatprep.subr.bf16.mxu0 0
      %506 = vmatpush2.bf16.xpose.msra.mxu0 0
      %507 = vmatprep.mubr.bf16.mxu0 0
      %508 = vmatmul.mubr.bf16.gmra.mxu0 %v470
      %v509 = vpop.f32.mrf.mxu0
      %v510 = vadd.f32 0.0, %v509
      %v511 = vpop.f32.mrf.mxu0
      %v512 = vpop.f32.mrf.mxu0
      %v513 = vpop.f32.mrf.mxu0
      %514 = vdwg.mxu0
      %v515 = vsel %vm285, %v510, -1e+09
      %v516 = vsel %vm233, %v515, -inf
      %517 = vmax.xlane.f32.xlu0 %v516
      %v518 = vpop.xlane.xlu0 %517
      %v519 = vsub.f32 %v515, %v518
      %v520 = vmul.f32 %v519, 1.442695
      %v521 = vpow.pop %v520
      %v522 = vsel %vm233, %v521, 0.0
      %523 = vadd.xlane.f32.xlu0 %v522
      %v524 = vpop.xlane.xlu0 %523
      %v525 = vrcp.pop %v524
      %v526 = vmul.f32 %v521, %v525
      %v527 = vpack.c.bf16 %v526, %v526
      %528 = vrot.lane.b32.xlu0 %v301, 80
      %v529 = vpop.permute.xlu0 %528
      %v531 = vsel %vm233, %v527, 0
      %v534 = vsel %vm307, %v529, 0
      %536 = vmatprep.subr.bf16.mxu0 0
      %537 = vmatpush1.bf16.msra.mxu0 0
      %538 = vmatprep.subr.bf16.mxu0 0
      %539 = vmatpush1.bf16.msra.mxu0 0
      %540 = vmatprep.subr.bf16.mxu0 0
      %541 = vmatpush1.bf16.msra.mxu0 0
      %542 = vmatprep.subr.bf16.mxu0 0
      %543 = vmatpush1.bf16.msra.mxu0 0
      %544 = vmatprep.subr.bf16.mxu0 0
      %545 = vmatpush1.bf16.msra.mxu0 0
      %546 = vmatprep.subr.bf16.mxu0 0
      %547 = vmatpush1.bf16.msra.mxu0 0
      %548 = vmatprep.subr.bf16.mxu0 0
      %549 = vmatpush1.bf16.msra.mxu0 0
      %550 = vmatprep.subr.bf16.mxu0 0
      %551 = vmatpush1.bf16.msra.mxu0 %v534
      %552 = vmatprep.subr.bf16.mxu0 0
      %553 = vmatpush2.bf16.msra.mxu0 0
      %554 = vmatprep.subr.bf16.mxu0 0
      %555 = vmatpush2.bf16.msra.mxu0 0
      %556 = vmatprep.subr.bf16.mxu0 0
      %557 = vmatpush2.bf16.msra.mxu0 0
      %558 = vmatprep.subr.bf16.mxu0 0
      %559 = vmatpush2.bf16.msra.mxu0 0
      %560 = vmatprep.subr.bf16.mxu0 0
      %561 = vmatpush2.bf16.msra.mxu0 0
      %562 = vmatprep.subr.bf16.mxu0 0
      %563 = vmatpush2.bf16.msra.mxu0 0
      %564 = vmatprep.subr.bf16.mxu0 0
      %565 = vmatpush2.bf16.msra.mxu0 0
      %566 = vmatprep.subr.bf16.mxu0 0
      %567 = vmatpush2.bf16.msra.mxu0 0
      %568 = vmatprep.mubr.bf16.mxu0 0
      %569 = vmatmul.mubr.bf16.gmra.mxu0 %v531
      %v570 = vpop.f32.mrf.mxu0
      %v571 = vadd.f32 0.0, %v570
      %v572 = vpop.f32.mrf.mxu0
      %v573 = vpop.f32.mrf.mxu0
      %v574 = vpop.f32.mrf.mxu0
      %575 = vdwg.mxu0
      %576 = vrot.lane.b32.xlu0 %v353, 104
      %v577 = vpop.permute.xlu0 %576
      %578 = vrot.lane.b32.xlu0 %v301, 104
      %v579 = vpop.permute.xlu0 %578
      %v581 = vsel %vm233, %v577, 0
      %v584 = vsel %vm233, %v579, 0
      %586 = vmatprep.subr.bf16.mxu0 0
      %587 = vmatpush1.bf16.xpose.msra.mxu0 0
      %588 = vmatprep.subr.bf16.mxu0 0
      %589 = vmatpush1.bf16.xpose.msra.mxu0 0
      %590 = vmatprep.subr.bf16.mxu0 0
      %591 = vmatpush1.bf16.xpose.msra.mxu0 0
      %592 = vmatprep.subr.bf16.mxu0 0
      %593 = vmatpush1.bf16.xpose.msra.mxu0 0
      %594 = vmatprep.subr.bf16.mxu0 0
      %595 = vmatpush1.bf16.xpose.msra.mxu0 0
      %596 = vmatprep.subr.bf16.mxu0 0
      %597 = vmatpush1.bf16.xpose.msra.mxu0 0
      %598 = vmatprep.subr.bf16.mxu0 0
      %599 = vmatpush1.bf16.xpose.msra.mxu0 0
      %600 = vmatprep.subr.bf16.mxu0 0
      %601 = vmatpush1.bf16.xpose.msra.mxu0 %v584
      %602 = vmatprep.subr.bf16.mxu0 0
      %603 = vmatpush2.bf16.xpose.msra.mxu0 0
      %604 = vmatprep.subr.bf16.mxu0 0
      %605 = vmatpush2.bf16.xpose.msra.mxu0 0
      %606 = vmatprep.subr.bf16.mxu0 0
      %607 = vmatpush2.bf16.xpose.msra.mxu0 0
      %608 = vmatprep.subr.bf16.mxu0 0
      %609 = vmatpush2.bf16.xpose.msra.mxu0 0
      %610 = vmatprep.subr.bf16.mxu0 0
      %611 = vmatpush2.bf16.xpose.msra.mxu0 0
      %612 = vmatprep.subr.bf16.mxu0 0
      %613 = vmatpush2.bf16.xpose.msra.mxu0 0
      %614 = vmatprep.subr.bf16.mxu0 0
      %615 = vmatpush2.bf16.xpose.msra.mxu0 0
      %616 = vmatprep.subr.bf16.mxu0 0
      %617 = vmatpush2.bf16.xpose.msra.mxu0 0
      %618 = vmatprep.mubr.bf16.mxu0 0
      %619 = vmatmul.mubr.bf16.gmra.mxu0 %v581
      %v620 = vpop.f32.mrf.mxu0
      %v621 = vadd.f32 0.0, %v620
      %v622 = vpop.f32.mrf.mxu0
      %v623 = vpop.f32.mrf.mxu0
      %v624 = vpop.f32.mrf.mxu0
      %625 = vdwg.mxu0
      %v626 = vsel %vm285, %v621, -1e+09
      %v627 = vsel %vm233, %v626, -inf
      %628 = vmax.xlane.f32.xlu0 %v627
      %v629 = vpop.xlane.xlu0 %628
      %v630 = vsub.f32 %v626, %v629
      %v631 = vmul.f32 %v630, 1.442695
      %v632 = vpow.pop %v631
      %v633 = vsel %vm233, %v632, 0.0
      %634 = vadd.xlane.f32.xlu0 %v633
      %v635 = vpop.xlane.xlu0 %634
      %v636 = vrcp.pop %v635
      %v637 = vmul.f32 %v632, %v636
      %v638 = vpack.c.bf16 %v637, %v637
      %639 = vrot.lane.b32.xlu0 %v301, 72
      %v640 = vpop.permute.xlu0 %639
      %v642 = vsel %vm233, %v638, 0
      %v645 = vsel %vm307, %v640, 0
      %647 = vmatprep.subr.bf16.mxu0 0
      %648 = vmatpush1.bf16.msra.mxu0 0
      %649 = vmatprep.subr.bf16.mxu0 0
      %650 = vmatpush1.bf16.msra.mxu0 0
      %651 = vmatprep.subr.bf16.mxu0 0
      %652 = vmatpush1.bf16.msra.mxu0 0
      %653 = vmatprep.subr.bf16.mxu0 0
      %654 = vmatpush1.bf16.msra.mxu0 0
      %655 = vmatprep.subr.bf16.mxu0 0
      %656 = vmatpush1.bf16.msra.mxu0 0
      %657 = vmatprep.subr.bf16.mxu0 0
      %658 = vmatpush1.bf16.msra.mxu0 0
      %659 = vmatprep.subr.bf16.mxu0 0
      %660 = vmatpush1.bf16.msra.mxu0 0
      %661 = vmatprep.subr.bf16.mxu0 0
      %662 = vmatpush1.bf16.msra.mxu0 %v645
      %663 = vmatprep.subr.bf16.mxu0 0
      %664 = vmatpush2.bf16.msra.mxu0 0
      %665 = vmatprep.subr.bf16.mxu0 0
      %666 = vmatpush2.bf16.msra.mxu0 0
      %667 = vmatprep.subr.bf16.mxu0 0
      %668 = vmatpush2.bf16.msra.mxu0 0
      %669 = vmatprep.subr.bf16.mxu0 0
      %670 = vmatpush2.bf16.msra.mxu0 0
      %671 = vmatprep.subr.bf16.mxu0 0
      %672 = vmatpush2.bf16.msra.mxu0 0
      %673 = vmatprep.subr.bf16.mxu0 0
      %674 = vmatpush2.bf16.msra.mxu0 0
      %675 = vmatprep.subr.bf16.mxu0 0
      %676 = vmatpush2.bf16.msra.mxu0 0
      %677 = vmatprep.subr.bf16.mxu0 0
      %678 = vmatpush2.bf16.msra.mxu0 0
      %679 = vmatprep.mubr.bf16.mxu0 0
      %680 = vmatmul.mubr.bf16.gmra.mxu0 %v642
      %v681 = vpop.f32.mrf.mxu0
      %v682 = vadd.f32 0.0, %v681
      %v683 = vpop.f32.mrf.mxu0
      %v684 = vpop.f32.mrf.mxu0
      %v685 = vpop.f32.mrf.mxu0
      %686 = vdwg.mxu0
      %688 = vrot.lane.b32.xlu0 %v460, 8
      %v689 = vpop.permute.xlu0 %688
      %692 = vrot.lane.b32.xlu0 %v571, 16
      %v693 = vpop.permute.xlu0 %692
      %696 = vrot.lane.b32.xlu0 %v682, 24
      %v697 = vpop.permute.xlu0 %696
      %v699 = vsel %vm233, %v346, %v689
      %vm700 = vcmask 130048
      %v701 = vsel %vm700, %v699, %v693
      %vm702 = vcmask 195584
      %v703 = vsel %vm702, %v701, %v697
      %v704 = vpack.c.bf16 %v703, %v703
      %vm705 = vcmask 257024
      %706 = vst.msk [vmem:[%s227] sm:$0xf] %vm705, %v704
      %p707 = scmp.lt.s32.totalorder %s18, 1
      %s708 = scalar_select %p707, %s18, 1
      %p709 = scmp.lt.s32.totalorder %s19, 0
      %s710 = scalar_select %p709, %s19, 0
      %s711 = sadd.s32 %s710, %s708
      %s712 = smul.addr %s711, 4
      %s713 = scalar_lea.vmem %s3, %s712
      // Predicated region
      $region33: #{decoder_forward.23} parent=31 // pred_check
        %p714 = pneg %p126
      $region34: #{decoder_forward.23} parent=31 // pred_check_branch
        %716 = sbr.rel (%p714) target = $region36
      $region35: #{decoder_forward.23} parent=31 // pred_region
        _
      $region36: #{decoder_forward.23} parent=31 // pred_fallthru
        _
    $region32: #{decoder_forward.23} parent=5 // pred_fallthru
      _
    %p717 = scmp.le.s32.totalorder 2, %s9
    // Predicated region
    $region37: #{decoder_forward.23} parent=5 // pred_check
      %p718 = pneg %p717
    $region38: #{decoder_forward.23} parent=5 // pred_check_branch
      %720 = sbr.rel (%p718) target = $region40
    $region39: #{decoder_forward.23} parent=5 // pred_region
      %s721 = ssub.s32 %s9, 2
      // Predicated region
      $region41: #{decoder_forward.23} parent=39 // pred_check
        %p722 = pneg %p132
      $region42: #{decoder_forward.23} parent=39 // pred_check_branch
        %724 = sbr.rel (%p722) target = $region44
      $region43: #{decoder_forward.23} parent=39 // pred_region
        %p725 = scmp.lt.s32.totalorder %s20, 1
        %s726 = scalar_select %p725, %s20, 1
        %p727 = scmp.lt.s32.totalorder %s21, 0
        %s728 = scalar_select %p727, %s21, 0
        %s729 = sadd.s32 %s728, %s726
        %s730 = smul.addr %s729, 4
        %s731 = scalar_lea.vmem %s3, %s730
      $region44: #{decoder_forward.23} parent=39 // pred_fallthru
        _
    $region40: #{decoder_forward.23} parent=5 // pred_fallthru
      _
  $region6: #{decoder_forward.23} parent=0 // loop_footer
    %s13 = sadd.s32 1, %s9
  $region7: #{decoder_forward.23} parent=0 // loop_footer_branch
    %8 = sbr.rel target = $region3
  $region8: #{decoder_forward.23} parent=0 // loop_exit
    _

// kernel: decoder_forward.25
$region0: #{decoder_forward.25}
  #allocation0 [shape = 'u32[]', space=smem, size = 0x4, offset = 0x4, fixed_abs, tag = 'smem constant byte address 0x4 - core index']
  #allocation1 [shape = 'u32[144,128]{1,0:T(1,128)}', space=vmem, size = 0x12000, scoped, tag = 'internal scratch']
  #allocation2 [shape = 'f32[16,32]{1,0:T(8,128)}', space=vmem, size = 0x2000, scoped, tag = 'scratch operand']
  %s0 = inlined_call_operand.vmem [shape: bf16[16,32], index: 0, kind: input, shape index: {}]
  %s1 = inlined_call_operand.vmem [shape: bf16[32,64], index: 1, kind: input, shape index: {}]
  %s2 = inlined_call_operand.vmem [shape: f32[1,64], index: 2, kind: input, shape index: {}]
  %s3 = inlined_call_operand.vmem [shape: bf16[64,32], index: 3, kind: input, shape index: {}]
  %s4 = inlined_call_operand.vmem [shape: f32[1,32], index: 4, kind: input, shape index: {}]
  %s5 = inlined_call_operand.vmem [shape: f32[1,32], index: 5, kind: input, shape index: {}]
  %s6 = inlined_call_operand.vmem [shape: f32[1,32], index: 6, kind: input, shape index: {}]
  %s7 = inlined_call_operand.vmem [shape: bf16[16,32], index: 7, kind: output, shape index: {}]
  %s8 = sld [smem:[#allocation0]]
  $region46: #{decoder_forward.25} parent=0
    _
  %s10 = ssub.s32 1, %s8
  %s11 = scalar_select 0, %s10, %s8
  // Predicated region
  $region2: #{decoder_forward.25} parent=0 // pred_check
    _
  $region3: #{decoder_forward.25} parent=0 // pred_check_branch
    %13 = sbr.rel (0) target = $region5
  $region4: #{decoder_forward.25} parent=0 // pred_region
    _
  $region5: #{decoder_forward.25} parent=0 // pred_fallthru
    _
  // Predicated region
  $region6: #{decoder_forward.25} parent=0 // pred_check
    _
  $region7: #{decoder_forward.25} parent=0 // pred_check_branch
    %15 = sbr.rel (0) target = $region9
  $region8: #{decoder_forward.25} parent=0 // pred_region
    _
  $region9: #{decoder_forward.25} parent=0 // pred_fallthru
    _
  // Predicated region
  $region10: #{decoder_forward.25} parent=0 // pred_check
    _
  $region11: #{decoder_forward.25} parent=0 // pred_check_branch
    %17 = sbr.rel (0) target = $region13
  $region12: #{decoder_forward.25} parent=0 // pred_region
    _
  $region13: #{decoder_forward.25} parent=0 // pred_fallthru
    _
  // Predicated region
  $region14: #{decoder_forward.25} parent=0 // pred_check
    _
  $region15: #{decoder_forward.25} parent=0 // pred_check_branch
    %19 = sbr.rel (0) target = $region17
  $region16: #{decoder_forward.25} parent=0 // pred_region
    _
  $region17: #{decoder_forward.25} parent=0 // pred_fallthru
    _
  // Predicated region
  $region18: #{decoder_forward.25} parent=0 // pred_check
    _
  $region19: #{decoder_forward.25} parent=0 // pred_check_branch
    %21 = sbr.rel (0) target = $region21
  $region20: #{decoder_forward.25} parent=0 // pred_region
    _
  $region21: #{decoder_forward.25} parent=0 // pred_fallthru
    _
  // Predicated region
  $region22: #{decoder_forward.25} parent=0 // pred_check
    _
  $region23: #{decoder_forward.25} parent=0 // pred_check_branch
    %23 = sbr.rel (0) target = $region25
  $region24: #{decoder_forward.25} parent=0 // pred_region
    _
  $region25: #{decoder_forward.25} parent=0 // pred_fallthru
    _
  // Predicated region
  $region26: #{decoder_forward.25} parent=0 // pred_check
    _
  $region27: #{decoder_forward.25} parent=0 // pred_check_branch
    %25 = sbr.rel (0) target = $region29
  $region28: #{decoder_forward.25} parent=0 // pred_region
    _
  $region29: #{decoder_forward.25} parent=0 // pred_fallthru
    _
  %p27 = scmp.eq.s32.totalorder 0, 0
  // Predicated region
  $region30: #{decoder_forward.25} parent=0 // pred_check
    %p28 = pneg %p27
  $region31: #{decoder_forward.25} parent=0 // pred_check_branch
    %30 = sbr.rel (%p28) target = $region33
  $region32: #{decoder_forward.25} parent=0 // pred_region
    %vm31 = vcmask 261120
    %32 = vst.msk [vmem:[#allocation2] sm:$0xff] %vm31, 0.0
    %33 = vst.msk [vmem:[#allocation2 + $0x8] sm:$0xff] %vm31, 0.0
  $region33: #{decoder_forward.25} parent=0 // pred_fallthru
    _
  %v34 = vld [vmem:[%s0] sm:$0xf]
  %v35 = vld [vmem:[%s0 + $0x4] sm:$0xf]
  %v36 = vld [vmem:[%s1] sm:$0xf]
  %v37 = vld [vmem:[%s1 + $0x4] sm:$0xf]
  %v38 = vld [vmem:[%s1 + $0x8] sm:$0xf]
  %v39 = vld [vmem:[%s1 + $0xc] sm:$0xf]
  %v40 = vld [vmem:[%s2] sm:$0x1]
  %v42 = vlaneseq
  %v43 = vshrl.u32 %v42, 7
  %v44 = vsub.s32 0, %v43
  %v45 = vrot.slane %v40, %v44
  %v49 = vunpack.c.l.b16 %v34
  %v50 = vunpack.c.l.b16 %v35
  %v51 = vpack.c.b16 %v50, %v49
  %v56 = vunpack.c.l.b16 %v36
  %v57 = vunpack.c.l.b16 %v37
  %v58 = vunpack.c.l.b16 %v38
  %v59 = vunpack.c.l.b16 %v39
  %v60 = vpack.c.b16 %v57, %v56
  %v61 = vpack.c.b16 %v59, %v58
  %vm64 = vcmask 261120
  %v66 = vsel %vm64, %v51, 0
  %68 = vmatprep.subr.bf16.mxu0 0
  %69 = vmatpush1.bf16.msra.mxu0 0
  %70 = vmatprep.subr.bf16.mxu0 0
  %71 = vmatpush1.bf16.msra.mxu0 0
  %72 = vmatprep.subr.bf16.mxu0 0
  %73 = vmatpush1.bf16.msra.mxu0 0
  %74 = vmatprep.subr.bf16.mxu0 0
  %75 = vmatpush1.bf16.msra.mxu0 0
  %76 = vmatprep.subr.bf16.mxu0 0
  %77 = vmatpush1.bf16.msra.mxu0 0
  %78 = vmatprep.subr.bf16.mxu0 0
  %79 = vmatpush1.bf16.msra.mxu0 0
  %80 = vmatprep.subr.bf16.mxu0 0
  %81 = vmatpush1.bf16.msra.mxu0 %v61
  %82 = vmatprep.subr.bf16.mxu0 0
  %83 = vmatpush1.bf16.msra.mxu0 %v60
  %84 = vmatprep.subr.bf16.mxu0 0
  %85 = vmatpush2.bf16.msra.mxu0 0
  %86 = vmatprep.subr.bf16.mxu0 0
  %87 = vmatpush2.bf16.msra.mxu0 0
  %88 = vmatprep.subr.bf16.mxu0 0
  %89 = vmatpush2.bf16.msra.mxu0 0
  %90 = vmatprep.subr.bf16.mxu0 0
  %91 = vmatpush2.bf16.msra.mxu0 0
  %92 = vmatprep.subr.bf16.mxu0 0
  %93 = vmatpush2.bf16.msra.mxu0 0
  %94 = vmatprep.subr.bf16.mxu0 0
  %95 = vmatpush2.bf16.msra.mxu0 0
  %96 = vmatprep.subr.bf16.mxu0 0
  %97 = vmatpush2.bf16.msra.mxu0 0
  %98 = vmatprep.subr.bf16.mxu0 0
  %99 = vmatpush2.bf16.msra.mxu0 0
  %100 = vmatprep.mubr.bf16.mxu0 0
  %101 = vmatmul.mubr.bf16.gmra.mxu0 %v66
  %v102 = vpop.f32.mrf.mxu0
  %v103 = vadd.f32 %v45, %v102
  %v104 = vpop.f32.mrf.mxu0
  %v105 = vpop.f32.mrf.mxu0
  %v106 = vadd.f32 %v45, %v105
  %v107 = vpop.f32.mrf.mxu0
  %108 = vdwg.mxu0
  %v109 = vmax.f32 %v103, 0.0
  %v110 = vmax.f32 %v106, 0.0
  %v111 = vld [vmem:[#allocation2] sm:$0xff]
  %v112 = vld [vmem:[#allocation2 + $0x8] sm:$0xff]
  %v113 = vpack.c.bf16 %v110, %v109
  %v114 = vld [vmem:[%s3] sm:$0xf]
  %v115 = vld [vmem:[%s3 + $0x4] sm:$0xf]
  %v116 = vld [vmem:[%s3 + $0x8] sm:$0xf]
  %v117 = vld [vmem:[%s3 + $0xc] sm:$0xf]
  %v118 = vld [vmem:[%s3 + $0x10] sm:$0xf]
  %v119 = vld [vmem:[%s3 + $0x14] sm:$0xf]
  %v120 = vld [vmem:[%s3 + $0x18] sm:$0xf]
  %v121 = vld [vmem:[%s3 + $0x1c] sm:$0xf]
  %v130 = vunpack.c.l.b16 %v114
  %v131 = vunpack.c.l.b16 %v115
  %v132 = vunpack.c.l.b16 %v116
  %v133 = vunpack.c.l.b16 %v117
  %v134 = vunpack.c.l.b16 %v118
  %v135 = vunpack.c.l.b16 %v119
  %v136 = vunpack.c.l.b16 %v120
  %v137 = vunpack.c.l.b16 %v121
  %v138 = vpack.c.b16 %v131, %v130
  %v139 = vpack.c.b16 %v133, %v132
  %v140 = vpack.c.b16 %v135, %v134
  %v141 = vpack.c.b16 %v137, %v136
  %vm146 = vcmask 523264
  %v148 = vsel %vm146, %v113, 0
  %150 = vmatprep.subr.bf16.mxu0 0
  %151 = vmatpush1.bf16.msra.mxu0 0
  %152 = vmatprep.subr.bf16.mxu0 0
  %153 = vmatpush1.bf16.msra.mxu0 0
  %154 = vmatprep.subr.bf16.mxu0 0
  %155 = vmatpush1.bf16.msra.mxu0 0
  %156 = vmatprep.subr.bf16.mxu0 0
  %157 = vmatpush1.bf16.msra.mxu0 0
  %158 = vmatprep.subr.bf16.mxu0 0
  %159 = vmatpush1.bf16.msra.mxu0 %v141
  %160 = vmatprep.subr.bf16.mxu0 0
  %161 = vmatpush1.bf16.msra.mxu0 %v140
  %162 = vmatprep.subr.bf16.mxu0 0
  %163 = vmatpush1.bf16.msra.mxu0 %v139
  %164 = vmatprep.subr.bf16.mxu0 0
  %165 = vmatpush1.bf16.msra.mxu0 %v138
  %166 = vmatprep.subr.bf16.mxu0 0
  %167 = vmatpush2.bf16.msra.mxu0 0
  %168 = vmatprep.subr.bf16.mxu0 0
  %169 = vmatpush2.bf16.msra.mxu0 0
  %170 = vmatprep.subr.bf16.mxu0 0
  %171 = vmatpush2.bf16.msra.mxu0 0
  %172 = vmatprep.subr.bf16.mxu0 0
  %173 = vmatpush2.bf16.msra.mxu0 0
  %174 = vmatprep.subr.bf16.mxu0 0
  %175 = vmatpush2.bf16.msra.mxu0 0
  %176 = vmatprep.subr.bf16.mxu0 0
  %177 = vmatpush2.bf16.msra.mxu0 0
  %178 = vmatprep.subr.bf16.mxu0 0
  %179 = vmatpush2.bf16.msra.mxu0 0
  %180 = vmatprep.subr.bf16.mxu0 0
  %181 = vmatpush2.bf16.msra.mxu0 0
  %182 = vmatprep.mubr.bf16.mxu0 0
  %183 = vmatmul.mubr.bf16.gmra.mxu0 %v148
  %v184 = vpop.f32.mrf.mxu0
  %v185 = vadd.f32 0.0, %v184
  %v186 = vpop.f32.mrf.mxu0
  %v187 = vpop.f32.mrf.mxu0
  %v188 = vadd.f32 0.0, %v187
  %v189 = vpop.f32.mrf.mxu0
  %190 = vdwg.mxu0
  %v191 = vadd.f32 %v111, %v185
  %v192 = vadd.f32 %v112, %v188
  %193 = vst.msk [vmem:[#allocation2] sm:$0xff] %vm64, %v191
  %194 = vst.msk [vmem:[#allocation2 + $0x8] sm:$0xff] %vm64, %v192
  // Predicated region
  $region34: #{decoder_forward.25} parent=0 // pred_check
    %p195 = pneg %p27
  $region35: #{decoder_forward.25} parent=0 // pred_check_branch
    %197 = sbr.rel (%p195) target = $region37
  $region36: #{decoder_forward.25} parent=0 // pred_region
    %v198 = vld [vmem:[#allocation2] sm:$0xff]
    %v199 = vld [vmem:[#allocation2 + $0x8] sm:$0xff]
    %v200 = vld [vmem:[%s4] sm:$0x1]
    %v202 = vlaneseq
    %v203 = vshrl.u32 %v202, 7
    %v204 = vsub.s32 0, %v203
    %v205 = vrot.slane %v200, %v204
    %v207 = vadd.f32 %v198, %v205
    %v208 = vadd.f32 %v199, %v205
    %v209 = vld [vmem:[%s0] sm:$0xf]
    %v210 = vld [vmem:[%s0 + $0x4] sm:$0xf]
    %v211 = vunpack.c.l.bf16 %v209
    %v212 = vunpack.c.l.bf16 %v210
    %v213 = vadd.f32 %v207, %v211
    %v214 = vadd.f32 %v208, %v212
    %v215 = vld [vmem:[%s5] sm:$0x1]
    %v216 = vld [vmem:[%s6] sm:$0x1]
    %v217 = vsel %vm64, %v213, 0.0
    %218 = vadd.xlane.f32.xlu0 %v217
    %v219 = vpop.xlane.xlu0 %218
    %v220 = vsel %vm64, %v214, 0.0
    %221 = vadd.xlane.f32.xlu0 %v220
    %v222 = vpop.xlane.xlu0 %221
    %v223 = vrcp.pop 32.0
    %v224 = vmul.f32 %v219, %v223
    %v225 = vmul.f32 %v222, %v223
    %v226 = vsub.f32 %v213, %v224
    %v227 = vsub.f32 %v214, %v225
    %v228 = vmul.f32 %v226, %v226
    %v229 = vmul.f32 %v227, %v227
    %v230 = vsel %vm64, %v228, 0.0
    %231 = vadd.xlane.f32.xlu0 %v230
    %v232 = vpop.xlane.xlu0 %231
    %v233 = vsel %vm64, %v229, 0.0
    %234 = vadd.xlane.f32.xlu0 %v233
    %v235 = vpop.xlane.xlu0 %234
    %v236 = vmul.f32 %v232, %v223
    %v237 = vmul.f32 %v235, %v223
    %v238 = vadd.f32 %v236, 1e-06
    %v239 = vadd.f32 %v237, 1e-06
    %v240 = vrsqrt.pop %v238
    %v241 = vrsqrt.pop %v239
    %v242 = vmul.f32 %v226, %v240
    %v243 = vmul.f32 %v227, %v241
    %v245 = vlaneseq
    %v246 = vshrl.u32 %v245, 7
    %v247 = vsub.s32 0, %v246
    %v248 = vrot.slane %v215, %v247
    %v250 = vmul.f32 %v242, %v248
    %v251 = vmul.f32 %v243, %v248
    %v253 = vlaneseq
    %v254 = vshrl.u32 %v253, 7
    %v255 = vsub.s32 0, %v254
    %v256 = vrot.slane %v216, %v255
    %v258 = vadd.f32 %v250, %v256
    %v259 = vadd.f32 %v251, %v256
    %v260 = vpack.c.bf16 %v259, %v258
    %v262 = vunpack.c.l.b16 %v260
    %v263 = vunpack.c.h.b16 %v260
    %v264 = vpack.c.b16 %v262, %v262
    %v265 = vpack.c.b16 %v263, %v263
    %vm268 = vcmask 257024
    %269 = vst.msk [vmem:[%s7] sm:$0xf] %vm268, %v264
    %270 = vst.msk [vmem:[%s7 + $0x4] sm:$0xf] %vm268, %v265
  $region37: #{decoder_forward.25} parent=0 // pred_fallthru
    _
  // Predicated region
  $region38: #{decoder_forward.25} parent=0 // pred_check
    _
  $region39: #{decoder_forward.25} parent=0 // pred_check_branch
    %272 = sbr.rel (0) target = $region41
  $region40: #{decoder_forward.25} parent=0 // pred_region
    _
  $region41: #{decoder_forward.25} parent=0 // pred_fallthru
    _
  // Predicated region
  $region42: #{decoder_forward.25} parent=0 // pred_check
    _
  $region43: #{decoder_forward.25} parent=0 // pred_check_branch
    %274 = sbr.rel (0) target = $region45
  $region44: #{decoder_forward.25} parent=0 // pred_region
    _
  $region45: #{decoder_forward.25} parent=0 // pred_fallthru
    _

</llo_original>
